<compile_context>
chip_gen: v7x
topology: tpu7x:2x2x1
jax: 0.10.0
libtpu: 0.0.40
codegen_flags: <defaults>
</compile_context>

<pallas_src>
import jax
import jax.numpy as jnp
from jax import lax
from jax.experimental import pallas as pl
from jax.experimental.pallas import tpu as pltpu


# ----------------------------------------------------------------------------
# Model sizes (synthetic reduced MobileNetV3-small-style backbone).
# ----------------------------------------------------------------------------
C_IN = 3
C_STEM = 16       # stem channels
C_EXP = 32        # inverted-residual expansion channels
C_OUT = 128       # embedding dim (lane-dense stand-in for mobilenet's 576)

H_IN = W_IN = 32
OH = OW = H_IN // 2            # 16x16 feature map after the stride-2 stem
M = OH * OW                    # 256 spatial positions per image
KP = 32                        # im2col K per image: 3*3*3 = 27, padded to 32

TB = 8                         # images per grid step (depthwise lane dim = TB*C_EXP = 256)

# Offsets into the single concatenated (pre-tiled) bias operand.
_B0 = 0
_B1 = _B0 + TB * C_STEM        # stem bias
_B2 = _B1 + TB * C_EXP         # expand bias
_B3 = _B2 + TB * C_EXP         # depthwise bias
_B4 = _B3 + TB * C_STEM        # project bias
_B5 = _B4 + TB * C_OUT         # head bias


def _hardswish(x):
    return x * jnp.clip(x + 3.0, 0.0, 6.0) * (1.0 / 6.0)


def _relu(x):
    return jnp.maximum(x, 0.0)


# ----------------------------------------------------------------------------
# Fused forward kernel: one grid step == TB batch images, fully VMEM-resident.
# Layout inside the step: rows = 256 spatial positions, columns = (image, channel).
# ----------------------------------------------------------------------------
def _encoder_kernel(patch_ref, stem_w_ref, exp_w_ref, dw_w_ref, proj_w_ref,
                    head_w_ref, bias_ref, o_ref):
    lc = TB * C_EXP                                        # 256 lanes (full vregs)
    patch = patch_ref[0]                                   # (256, TB*KP) bf16

    # --- Stem: Conv2d(3,16,k=3,s=2,p=1)+BN+Hardswish as ONE im2col GEMM
    #     (block-diagonal weight => all TB images in a single MXU push).
    stem = jnp.dot(patch, stem_w_ref[...],
                   preferred_element_type=jnp.float32)
    stem = _hardswish(stem + bias_ref[:, _B0:_B1])         # (256, TB*16) f32

    # --- Inverted residual: expand 1x1 + ReLU
    exp = jnp.dot(stem.astype(jnp.bfloat16), exp_w_ref[...],
                  preferred_element_type=jnp.float32)
    exp = _relu(exp + bias_ref[:, _B1:_B2])                # (256, TB*32) f32

    # --- Depthwise 3x3 (stride 1, pad 1): zero-padded VALUE (no scratch round-trip),
    #     9 static-sliced taps, full 256-lane width, f32 VPU math.
    z = exp.reshape(OH, OW, lc)                            # (16, 16, 256)
    zrow = jnp.zeros((1, OW, lc), jnp.float32)
    zh = jnp.concatenate([zrow, z, zrow], axis=0)          # (18, 16, 256)
    zcol = jnp.zeros((OH + 2, 1, lc), jnp.float32)
    cols = (jnp.concatenate([zcol, zh[:, :OW - 1, :]], axis=1),   # left-neighbor taps
            zh,                                                   # center taps
            jnp.concatenate([zh[:, 1:, :], zcol], axis=1))        # right-neighbor taps
    acc = jnp.zeros((OH, OW, lc), jnp.float32)
    for dh in range(3):
        for dw in range(3):
            t = dh * 3 + dw
            acc = acc + cols[dw][dh:dh + OH] * dw_w_ref[t:t + 1, :]
    dwo = _relu(acc.reshape(M, lc) + bias_ref[:, _B2:_B3])        # (256, TB*32) f32

    # --- Project 1x1 + residual (stride 1, in==out channels)
    proj = jnp.dot(dwo.astype(jnp.bfloat16), proj_w_ref[...],
                   preferred_element_type=jnp.float32)
    proj = proj + bias_ref[:, _B3:_B4] + stem              # (256, TB*16) f32

    # --- Head: Conv2d(16,128,k=1)+BN+Hardswish (lane-dense N = TB*128)
    feat = jnp.dot(proj.astype(jnp.bfloat16), head_w_ref[...],
                   preferred_element_type=jnp.float32)
    feat = _hardswish(feat + bias_ref[:, _B4:_B5])         # (256, TB*128) f32

    # --- AdaptiveAvgPool2d(1) + Squeeze, fused; single lane-dense store per step.
    o_ref[...] = jnp.mean(feat, axis=0, keepdims=True).reshape(1, 1, TB * C_OUT)


# ----------------------------------------------------------------------------
# Wrapper: lean im2col preprocessing + one pallas_call over batch tiles.
# ----------------------------------------------------------------------------
def _make_patches(x_nchw):
    """NCHW image -> (B, 256, KP) im2col patch tensor (f32, cast to bf16 later)."""
    x = jnp.transpose(x_nchw, (0, 2, 3, 1)).astype(jnp.float32)     # (B,32,32,3)
    xp = jnp.pad(x, ((0, 0), (1, 1), (1, 1), (0, 0)))               # (B,34,34,3)
    taps = []
    for kh in range(3):
        for kw in range(3):
            taps.append(xp[:, kh:kh + 2 * OH:2, kw:kw + 2 * OW:2, :])   # (B,16,16,3)
    p = jnp.concatenate(taps, axis=-1)                               # (B,16,16,27)
    p = jnp.pad(p, ((0, 0), (0, 0), (0, 0), (0, KP - 9 * C_IN)))     # (B,16,16,32)
    return p.reshape(x.shape[0], M, KP)                              # (B,256,32)


@jax.jit
def image_encoder_forward(params, x_nchw):
    b = x_nchw.shape[0]
    patches = _make_patches(x_nchw)                                  # (B, 256, KP)

    b_pad = ((b + TB - 1) // TB) * TB
    if b_pad != b:
        patches = jnp.pad(patches, ((0, b_pad - b), (0, 0), (0, 0)))
    nsteps = b_pad // TB
    # rows = spatial, columns = (image-in-tile, K) -> matches block-diagonal weights
    patches = patches.reshape(nsteps, TB, M, KP).transpose(0, 2, 1, 3)
    patches = patches.reshape(nsteps, M, TB * KP).astype(jnp.bfloat16)

    out = pl.pallas_call(
        _encoder_kernel,
        out_shape=jax.ShapeDtypeStruct((nsteps, 1, TB * C_OUT), jnp.float32),
        grid=(nsteps,),
        in_specs=[
            pl.BlockSpec((1, M, TB * KP), lambda i: (i, 0, 0)),
            pl.BlockSpec((TB * KP, TB * C_STEM), lambda i: (0, 0)),
            pl.BlockSpec((TB * C_STEM, TB * C_EXP), lambda i: (0, 0)),
            pl.BlockSpec((9, TB * C_EXP), lambda i: (0, 0)),
            pl.BlockSpec((TB * C_EXP, TB * C_STEM), lambda i: (0, 0)),
            pl.BlockSpec((TB * C_STEM, TB * C_OUT), lambda i: (0, 0)),
            pl.BlockSpec((1, _B5), lambda i: (0, 0)),
        ],
        out_specs=pl.BlockSpec((1, 1, TB * C_OUT), lambda i: (i, 0, 0)),
        compiler_params=pltpu.CompilerParams(
            dimension_semantics=("parallel",)),
    )(patches,
      params["stem_w_bd"], params["exp_w_bd"], params["dw_w_t"],
      params["proj_w_bd"], params["head_w_bd"], params["bias_cat"])

    out = out.reshape(b_pad, C_OUT)
    return out[:b]


# ----------------------------------------------------------------------------
# Parameters (synthetic, deterministic; BN folded into biases).
# ----------------------------------------------------------------------------
def _block_diag(w, tb):
    """W (K,N) -> kron(I_tb, W) (tb*K, tb*N): all tb images in one GEMM."""
    return jnp.kron(jnp.eye(tb, dtype=w.dtype), w)


def init_params(key):
    ks = jax.random.split(key, 10)
    s = 0.1
    stem_w3 = jax.random.normal(ks[0], (3, 3, C_IN, C_STEM), jnp.float32) * s
    stem_b = jax.random.normal(ks[1], (1, C_STEM), jnp.float32) * s
    exp_w = jax.random.normal(ks[2], (C_STEM, C_EXP), jnp.float32) * s
    exp_b = jax.random.normal(ks[3], (1, C_EXP), jnp.float32) * s
    dw_w = jax.random.normal(ks[4], (9, C_EXP), jnp.float32) * s
    dw_b = jax.random.normal(ks[5], (1, C_EXP), jnp.float32) * s
    proj_w = jax.random.normal(ks[6], (C_EXP, C_STEM), jnp.float32) * s
    proj_b = jax.random.normal(ks[7], (1, C_STEM), jnp.float32) * s
    head_w = jax.random.normal(ks[8], (C_STEM, C_OUT), jnp.float32) * s
    head_b = jax.random.normal(ks[9], (1, C_OUT), jnp.float32) * s

    # im2col stem weight: (kh, kw, cin) flatten -> 27 rows, zero-padded to KP.
    stem_w_im2col = jnp.concatenate(
        [stem_w3.reshape(9 * C_IN, C_STEM),
         jnp.zeros((KP - 9 * C_IN, C_STEM), jnp.float32)], axis=0)   # (KP, C_STEM)

    bias_cat = jnp.concatenate(
        [jnp.tile(stem_b, (1, TB)), jnp.tile(exp_b, (1, TB)),
         jnp.tile(dw_b, (1, TB)), jnp.tile(proj_b, (1, TB)),
         jnp.tile(head_b, (1, TB))], axis=1)                         # (1, TB*224)

    return {
        # f32 masters (used by the pure-JAX reference)
        "stem_w3": stem_w3, "stem_b": stem_b,
        "exp_w": exp_w, "exp_b": exp_b,
        "dw_w": dw_w, "dw_b": dw_b,
        "proj_w": proj_w, "proj_b": proj_b,
        "head_w": head_w, "head_b": head_b,
        # kernel-side copies: block-diagonal bf16 GEMM weights, tiled dw weight/biases
        "stem_w_bd": _block_diag(stem_w_im2col, TB).astype(jnp.bfloat16),
        "exp_w_bd": _block_diag(exp_w, TB).astype(jnp.bfloat16),
        "proj_w_bd": _block_diag(proj_w, TB).astype(jnp.bfloat16),
        "head_w_bd": _block_diag(head_w, TB).astype(jnp.bfloat16),
        "dw_w_t": jnp.tile(dw_w, (1, TB)),                           # (9, TB*C_EXP) f32
        "bias_cat": bias_cat,                                        # (1, TB*224) f32
    }


# ----------------------------------------------------------------------------
# Pure-JAX reference of the same forward (f32) for a numerical sanity check.
# ----------------------------------------------------------------------------
def ref_forward(params, x_nchw):
    x = jnp.transpose(x_nchw, (0, 2, 3, 1)).astype(jnp.float32)
    y = lax.conv_general_dilated(
        x, params["stem_w3"], window_strides=(2, 2), padding=((1, 1), (1, 1)),
        dimension_numbers=("NHWC", "HWIO", "NHWC"))
    y = _hardswish(y + params["stem_b"].reshape(1, 1, 1, C_STEM))
    z = _relu(jnp.einsum("bhwc,cd->bhwd", y, params["exp_w"])
              + params["exp_b"].reshape(1, 1, 1, C_EXP))
    dw_w = params["dw_w"].reshape(3, 3, 1, C_EXP)
    d = lax.conv_general_dilated(
        z, dw_w, window_strides=(1, 1), padding=((1, 1), (1, 1)),
        dimension_numbers=("NHWC", "HWIO", "NHWC"), feature_group_count=C_EXP)
    d = _relu(d + params["dw_b"].reshape(1, 1, 1, C_EXP))
    p = (jnp.einsum("bhwc,cd->bhwd", d, params["proj_w"])
         + params["proj_b"].reshape(1, 1, 1, C_STEM) + y)
    f = _hardswish(jnp.einsum("bhwc,cd->bhwd", p, params["head_w"])
                   + params["head_b"].reshape(1, 1, 1, C_OUT))
    return jnp.mean(f, axis=(1, 2))                      # (B, C_OUT)


if __name__ == "__main__":
    B = 16                                               # 2 grid steps at TB=8
    key = jax.random.PRNGKey(0)
    x = jax.random.normal(key, (B, C_IN, H_IN, W_IN), dtype=jnp.float32)  # NCHW
    params = init_params(jax.random.PRNGKey(1))

    out = image_encoder_forward(params, x)
    out = jax.block_until_ready(out)

    assert out.shape == (B, C_OUT), out.shape
    assert out.dtype == jnp.float32
    assert bool(jnp.all(jnp.isfinite(out)))

    ref = ref_forward(params, x)
    assert bool(jnp.allclose(out, ref, rtol=2e-2, atol=2e-2)), (
        "max |diff| = %f" % float(jnp.max(jnp.abs(out - ref))))

    print("KERNEL_OK")
</pallas_src>

<mosaic_0001>
module attributes {stable_mosaic.version = 11 : i64} {
  func.func @_encoder_kernel(%arg0: i32, %arg1: memref<1x256x256xbf16, #tpu.memory_space<vmem>>, %arg2: memref<256x128xbf16, #tpu.memory_space<vmem>>, %arg3: memref<128x256xbf16, #tpu.memory_space<vmem>>, %arg4: memref<9x256xf32, #tpu.memory_space<vmem>>, %arg5: memref<256x128xbf16, #tpu.memory_space<vmem>>, %arg6: memref<128x1024xbf16, #tpu.memory_space<vmem>>, %arg7: memref<1x1792xf32, #tpu.memory_space<vmem>>, %arg8: memref<1x1x1024xf32, #tpu.memory_space<vmem>>) attributes {dimension_semantics = [#tpu.dimension_semantics<parallel>], iteration_bounds = array<i64: 2>, scalar_prefetch = 0 : i64, scratch_operands = 0 : i64, tpu.core_type = #tpu.core_type<tc>, window_params = [{transform_indices = @transform_0, window_bounds = array<i64: 1, 256, 256>}, {pipeline_mode = #tpu.pipeline_mode<synchronous>, transform_indices = @transform_1, window_bounds = array<i64: 256, 128>}, {pipeline_mode = #tpu.pipeline_mode<synchronous>, transform_indices = @transform_2, window_bounds = array<i64: 128, 256>}, {pipeline_mode = #tpu.pipeline_mode<synchronous>, transform_indices = @transform_3, window_bounds = array<i64: 9, 256>}, {pipeline_mode = #tpu.pipeline_mode<synchronous>, transform_indices = @transform_4, window_bounds = array<i64: 256, 128>}, {pipeline_mode = #tpu.pipeline_mode<synchronous>, transform_indices = @transform_5, window_bounds = array<i64: 128, 1024>}, {pipeline_mode = #tpu.pipeline_mode<synchronous>, transform_indices = @transform_6, window_bounds = array<i64: 1, 1792>}, {transform_indices = @transform_7, window_bounds = array<i64: 1, 1, 1024>}]} {
    %c0 = arith.constant 0 : index
    %c0_0 = arith.constant 0 : index
    %c0_1 = arith.constant 0 : index
    %0 = vector.load %arg1[%c0, %c0_0, %c0_1] : memref<1x256x256xbf16, #tpu.memory_space<vmem>>, vector<1x256x256xbf16>
    %1 = vector.shape_cast %0 : vector<1x256x256xbf16> to vector<256x256xbf16>
    %c0_2 = arith.constant 0 : index
    %c0_3 = arith.constant 0 : index
    %2 = vector.load %arg2[%c0_2, %c0_3] : memref<256x128xbf16, #tpu.memory_space<vmem>>, vector<256x128xbf16>
    %cst = arith.constant dense<0.000000e+00> : vector<256x128xf32>
    %3 = tpu.matmul %1, %2, %cst {dimension_numbers = #tpu.dot_dimension_numbers<[1], [0], [0], [1], [0, 0, 1, 1], [], []>} : vector<256x256xbf16>, vector<256x128xbf16>, vector<256x128xf32> -> vector<256x128xf32>
    %c0_4 = arith.constant 0 : index
    %c0_5 = arith.constant 0 : index
    %4 = vector.load %arg7[%c0_4, %c0_5] : memref<1x1792xf32, #tpu.memory_space<vmem>>, vector<1x128xf32>
    %5 = vector.broadcast %4 : vector<1x128xf32> to vector<256x128xf32>
    %6 = arith.addf %3, %5 : vector<256x128xf32>
    %cst_6 = arith.constant 3.000000e+00 : f32
    %7 = vector.broadcast %cst_6 : f32 to vector<256x128xf32>
    %8 = arith.addf %6, %7 : vector<256x128xf32>
    %cst_7 = arith.constant 0.000000e+00 : f32
    %cst_8 = arith.constant 6.000000e+00 : f32
    %9 = vector.broadcast %cst_7 : f32 to vector<256x128xf32>
    %10 = arith.maximumf %9, %8 : vector<256x128xf32>
    %11 = vector.broadcast %cst_8 : f32 to vector<256x128xf32>
    %12 = arith.minimumf %11, %10 : vector<256x128xf32>
    %13 = arith.mulf %6, %12 : vector<256x128xf32>
    %cst_9 = arith.constant 0.166666672 : f32
    %14 = vector.broadcast %cst_9 : f32 to vector<256x128xf32>
    %15 = arith.mulf %13, %14 : vector<256x128xf32>
    %16 = arith.truncf %15 : vector<256x128xf32> to vector<256x128xbf16>
    %c0_10 = arith.constant 0 : index
    %c0_11 = arith.constant 0 : index
    %17 = vector.load %arg3[%c0_10, %c0_11] : memref<128x256xbf16, #tpu.memory_space<vmem>>, vector<128x256xbf16>
    %cst_12 = arith.constant dense<0.000000e+00> : vector<256x256xf32>
    %18 = tpu.matmul %16, %17, %cst_12 {dimension_numbers = #tpu.dot_dimension_numbers<[1], [0], [0], [1], [0, 0, 1, 1], [], []>} : vector<256x128xbf16>, vector<128x256xbf16>, vector<256x256xf32> -> vector<256x256xf32>
    %c0_13 = arith.constant 0 : index
    %c128 = arith.constant 128 : index
    %19 = vector.load %arg7[%c0_13, %c128] : memref<1x1792xf32, #tpu.memory_space<vmem>>, vector<1x256xf32>
    %20 = vector.broadcast %19 : vector<1x256xf32> to vector<256x256xf32>
    %21 = arith.addf %18, %20 : vector<256x256xf32>
    %cst_14 = arith.constant 0.000000e+00 : f32
    %22 = vector.broadcast %cst_14 : f32 to vector<256x256xf32>
    %23 = arith.maximumf %21, %22 : vector<256x256xf32>
    %24 = vector.shape_cast %23 : vector<256x256xf32> to vector<16x16x256xf32>
    %cst_15 = arith.constant 0.000000e+00 : f32
    %25 = vector.broadcast %cst_15 : f32 to vector<1x16x256xf32>
    %26 = tpu.concatenate %25, %24, %25 in 0 : vector<1x16x256xf32>, vector<16x16x256xf32>, vector<1x16x256xf32> -> vector<18x16x256xf32>
    %cst_16 = arith.constant 0.000000e+00 : f32
    %27 = vector.broadcast %cst_16 : f32 to vector<18x1x256xf32>
    %28 = vector.extract_strided_slice %26 {offsets = [0, 0, 0], sizes = [18, 15, 256], strides = [1, 1, 1]} : vector<18x16x256xf32> to vector<18x15x256xf32>
    %29 = tpu.concatenate %27, %28 in 1 : vector<18x1x256xf32>, vector<18x15x256xf32> -> vector<18x16x256xf32>
    %30 = vector.extract_strided_slice %26 {offsets = [0, 1, 0], sizes = [18, 15, 256], strides = [1, 1, 1]} : vector<18x16x256xf32> to vector<18x15x256xf32>
    %31 = tpu.concatenate %30, %27 in 1 : vector<18x15x256xf32>, vector<18x1x256xf32> -> vector<18x16x256xf32>
    %cst_17 = arith.constant 0.000000e+00 : f32
    %32 = vector.broadcast %cst_17 : f32 to vector<16x16x256xf32>
    %33 = vector.extract_strided_slice %29 {offsets = [0, 0, 0], sizes = [16, 16, 256], strides = [1, 1, 1]} : vector<18x16x256xf32> to vector<16x16x256xf32>
    %c0_18 = arith.constant 0 : index
    %c0_19 = arith.constant 0 : index
    %34 = vector.load %arg4[%c0_18, %c0_19] : memref<9x256xf32, #tpu.memory_space<vmem>>, vector<1x256xf32>
    %35 = vector.shape_cast %34 : vector<1x256xf32> to vector<1x1x256xf32>
    %36 = vector.broadcast %35 : vector<1x1x256xf32> to vector<16x16x256xf32>
    %37 = arith.mulf %33, %36 : vector<16x16x256xf32>
    %38 = arith.addf %32, %37 : vector<16x16x256xf32>
    %39 = vector.extract_strided_slice %26 {offsets = [0, 0, 0], sizes = [16, 16, 256], strides = [1, 1, 1]} : vector<18x16x256xf32> to vector<16x16x256xf32>
    %c1 = arith.constant 1 : index
    %c0_20 = arith.constant 0 : index
    %40 = vector.load %arg4[%c1, %c0_20] : memref<9x256xf32, #tpu.memory_space<vmem>>, vector<1x256xf32>
    %41 = vector.shape_cast %40 : vector<1x256xf32> to vector<1x1x256xf32>
    %42 = vector.broadcast %41 : vector<1x1x256xf32> to vector<16x16x256xf32>
    %43 = arith.mulf %39, %42 : vector<16x16x256xf32>
    %44 = arith.addf %38, %43 : vector<16x16x256xf32>
    %45 = vector.extract_strided_slice %31 {offsets = [0, 0, 0], sizes = [16, 16, 256], strides = [1, 1, 1]} : vector<18x16x256xf32> to vector<16x16x256xf32>
    %c2 = arith.constant 2 : index
    %c0_21 = arith.constant 0 : index
    %46 = vector.load %arg4[%c2, %c0_21] : memref<9x256xf32, #tpu.memory_space<vmem>>, vector<1x256xf32>
    %47 = vector.shape_cast %46 : vector<1x256xf32> to vector<1x1x256xf32>
    %48 = vector.broadcast %47 : vector<1x1x256xf32> to vector<16x16x256xf32>
    %49 = arith.mulf %45, %48 : vector<16x16x256xf32>
    %50 = arith.addf %44, %49 : vector<16x16x256xf32>
    %51 = vector.extract_strided_slice %29 {offsets = [1, 0, 0], sizes = [16, 16, 256], strides = [1, 1, 1]} : vector<18x16x256xf32> to vector<16x16x256xf32>
    %c3 = arith.constant 3 : index
    %c0_22 = arith.constant 0 : index
    %52 = vector.load %arg4[%c3, %c0_22] : memref<9x256xf32, #tpu.memory_space<vmem>>, vector<1x256xf32>
    %53 = vector.shape_cast %52 : vector<1x256xf32> to vector<1x1x256xf32>
    %54 = vector.broadcast %53 : vector<1x1x256xf32> to vector<16x16x256xf32>
    %55 = arith.mulf %51, %54 : vector<16x16x256xf32>
    %56 = arith.addf %50, %55 : vector<16x16x256xf32>
    %57 = vector.extract_strided_slice %26 {offsets = [1, 0, 0], sizes = [16, 16, 256], strides = [1, 1, 1]} : vector<18x16x256xf32> to vector<16x16x256xf32>
    %c4 = arith.constant 4 : index
    %c0_23 = arith.constant 0 : index
    %58 = vector.load %arg4[%c4, %c0_23] : memref<9x256xf32, #tpu.memory_space<vmem>>, vector<1x256xf32>
    %59 = vector.shape_cast %58 : vector<1x256xf32> to vector<1x1x256xf32>
    %60 = vector.broadcast %59 : vector<1x1x256xf32> to vector<16x16x256xf32>
    %61 = arith.mulf %57, %60 : vector<16x16x256xf32>
    %62 = arith.addf %56, %61 : vector<16x16x256xf32>
    %63 = vector.extract_strided_slice %31 {offsets = [1, 0, 0], sizes = [16, 16, 256], strides = [1, 1, 1]} : vector<18x16x256xf32> to vector<16x16x256xf32>
    %c5 = arith.constant 5 : index
    %c0_24 = arith.constant 0 : index
    %64 = vector.load %arg4[%c5, %c0_24] : memref<9x256xf32, #tpu.memory_space<vmem>>, vector<1x256xf32>
    %65 = vector.shape_cast %64 : vector<1x256xf32> to vector<1x1x256xf32>
    %66 = vector.broadcast %65 : vector<1x1x256xf32> to vector<16x16x256xf32>
    %67 = arith.mulf %63, %66 : vector<16x16x256xf32>
    %68 = arith.addf %62, %67 : vector<16x16x256xf32>
    %69 = vector.extract_strided_slice %29 {offsets = [2, 0, 0], sizes = [16, 16, 256], strides = [1, 1, 1]} : vector<18x16x256xf32> to vector<16x16x256xf32>
    %c6 = arith.constant 6 : index
    %c0_25 = arith.constant 0 : index
    %70 = vector.load %arg4[%c6, %c0_25] : memref<9x256xf32, #tpu.memory_space<vmem>>, vector<1x256xf32>
    %71 = vector.shape_cast %70 : vector<1x256xf32> to vector<1x1x256xf32>
    %72 = vector.broadcast %71 : vector<1x1x256xf32> to vector<16x16x256xf32>
    %73 = arith.mulf %69, %72 : vector<16x16x256xf32>
    %74 = arith.addf %68, %73 : vector<16x16x256xf32>
    %75 = vector.extract_strided_slice %26 {offsets = [2, 0, 0], sizes = [16, 16, 256], strides = [1, 1, 1]} : vector<18x16x256xf32> to vector<16x16x256xf32>
    %c7 = arith.constant 7 : index
    %c0_26 = arith.constant 0 : index
    %76 = vector.load %arg4[%c7, %c0_26] : memref<9x256xf32, #tpu.memory_space<vmem>>, vector<1x256xf32>
    %77 = vector.shape_cast %76 : vector<1x256xf32> to vector<1x1x256xf32>
    %78 = vector.broadcast %77 : vector<1x1x256xf32> to vector<16x16x256xf32>
    %79 = arith.mulf %75, %78 : vector<16x16x256xf32>
    %80 = arith.addf %74, %79 : vector<16x16x256xf32>
    %81 = vector.extract_strided_slice %31 {offsets = [2, 0, 0], sizes = [16, 16, 256], strides = [1, 1, 1]} : vector<18x16x256xf32> to vector<16x16x256xf32>
    %c8 = arith.constant 8 : index
    %c0_27 = arith.constant 0 : index
    %82 = vector.load %arg4[%c8, %c0_27] : memref<9x256xf32, #tpu.memory_space<vmem>>, vector<1x256xf32>
    %83 = vector.shape_cast %82 : vector<1x256xf32> to vector<1x1x256xf32>
    %84 = vector.broadcast %83 : vector<1x1x256xf32> to vector<16x16x256xf32>
    %85 = arith.mulf %81, %84 : vector<16x16x256xf32>
    %86 = arith.addf %80, %85 : vector<16x16x256xf32>
    %87 = vector.shape_cast %86 : vector<16x16x256xf32> to vector<256x256xf32>
    %c0_28 = arith.constant 0 : index
    %c384 = arith.constant 384 : index
    %88 = vector.load %arg7[%c0_28, %c384] : memref<1x1792xf32, #tpu.memory_space<vmem>>, vector<1x256xf32>
    %89 = vector.broadcast %88 : vector<1x256xf32> to vector<256x256xf32>
    %90 = arith.addf %87, %89 : vector<256x256xf32>
    %cst_29 = arith.constant 0.000000e+00 : f32
    %91 = vector.broadcast %cst_29 : f32 to vector<256x256xf32>
    %92 = arith.maximumf %90, %91 : vector<256x256xf32>
    %93 = arith.truncf %92 : vector<256x256xf32> to vector<256x256xbf16>
    %c0_30 = arith.constant 0 : index
    %c0_31 = arith.constant 0 : index
    %94 = vector.load %arg5[%c0_30, %c0_31] : memref<256x128xbf16, #tpu.memory_space<vmem>>, vector<256x128xbf16>
    %cst_32 = arith.constant dense<0.000000e+00> : vector<256x128xf32>
    %95 = tpu.matmul %93, %94, %cst_32 {dimension_numbers = #tpu.dot_dimension_numbers<[1], [0], [0], [1], [0, 0, 1, 1], [], []>} : vector<256x256xbf16>, vector<256x128xbf16>, vector<256x128xf32> -> vector<256x128xf32>
    %c0_33 = arith.constant 0 : index
    %c640 = arith.constant 640 : index
    %96 = vector.load %arg7[%c0_33, %c640] : memref<1x1792xf32, #tpu.memory_space<vmem>>, vector<1x128xf32>
    %97 = vector.broadcast %96 : vector<1x128xf32> to vector<256x128xf32>
    %98 = arith.addf %95, %97 : vector<256x128xf32>
    %99 = arith.addf %98, %15 : vector<256x128xf32>
    %100 = arith.truncf %99 : vector<256x128xf32> to vector<256x128xbf16>
    %c0_34 = arith.constant 0 : index
    %c0_35 = arith.constant 0 : index
    %101 = vector.load %arg6[%c0_34, %c0_35] : memref<128x1024xbf16, #tpu.memory_space<vmem>>, vector<128x1024xbf16>
    %cst_36 = arith.constant dense<0.000000e+00> : vector<256x1024xf32>
    %102 = tpu.matmul %100, %101, %cst_36 {dimension_numbers = #tpu.dot_dimension_numbers<[1], [0], [0], [1], [0, 0, 1, 1], [], []>} : vector<256x128xbf16>, vector<128x1024xbf16>, vector<256x1024xf32> -> vector<256x1024xf32>
    %c0_37 = arith.constant 0 : index
    %c768 = arith.constant 768 : index
    %103 = vector.load %arg7[%c0_37, %c768] : memref<1x1792xf32, #tpu.memory_space<vmem>>, vector<1x1024xf32>
    %104 = vector.broadcast %103 : vector<1x1024xf32> to vector<256x1024xf32>
    %105 = arith.addf %102, %104 : vector<256x1024xf32>
    %cst_38 = arith.constant 3.000000e+00 : f32
    %106 = vector.broadcast %cst_38 : f32 to vector<256x1024xf32>
    %107 = arith.addf %105, %106 : vector<256x1024xf32>
    %cst_39 = arith.constant 0.000000e+00 : f32
    %cst_40 = arith.constant 6.000000e+00 : f32
    %108 = vector.broadcast %cst_39 : f32 to vector<256x1024xf32>
    %109 = arith.maximumf %108, %107 : vector<256x1024xf32>
    %110 = vector.broadcast %cst_40 : f32 to vector<256x1024xf32>
    %111 = arith.minimumf %110, %109 : vector<256x1024xf32>
    %112 = arith.mulf %105, %111 : vector<256x1024xf32>
    %cst_41 = arith.constant 0.166666672 : f32
    %113 = vector.broadcast %cst_41 : f32 to vector<256x1024xf32>
    %114 = arith.mulf %112, %113 : vector<256x1024xf32>
    %cst_42 = arith.constant dense<0.000000e+00> : vector<1024xf32>
    %115 = vector.multi_reduction <add>, %114, %cst_42 [0] : vector<256x1024xf32> to vector<1024xf32>
    %116 = vector.shape_cast %115 : vector<1024xf32> to vector<1x1024xf32>
    %cst_43 = arith.constant 2.560000e+02 : f32
    %117 = vector.broadcast %cst_43 : f32 to vector<1x1024xf32>
    %118 = arith.divf %116, %117 : vector<1x1024xf32>
    %119 = vector.shape_cast %118 : vector<1x1024xf32> to vector<1x1x1024xf32>
    %c0_44 = arith.constant 0 : index
    %c0_45 = arith.constant 0 : index
    %c0_46 = arith.constant 0 : index
    %120 = vector.load %arg8[%c0_44, %c0_45, %c0_46] : memref<1x1x1024xf32, #tpu.memory_space<vmem>>, vector<1x1x1024xf32>
    tpu.vector_store %arg8[%c0_44, %c0_45, %c0_46], %119 {strides = array<i32>} : memref<1x1x1024xf32, #tpu.memory_space<vmem>>, vector<1x1x1024xf32>,
    return
  }
  func.func @transform_0(%arg0: i32) -> (i32, i32, i32) {
    %c0_i32 = arith.constant 0 : i32
    %c0_i32_0 = arith.constant 0 : i32
    %c0_i32_1 = arith.constant 0 : i32
    return %arg0, %c0_i32, %c0_i32_0 : i32, i32, i32
  }
  func.func @transform_1(%arg0: i32) -> (i32, i32) {
    %c0_i32 = arith.constant 0 : i32
    %c0_i32_0 = arith.constant 0 : i32
    %c0_i32_1 = arith.constant 0 : i32
    return %c0_i32, %c0_i32_0 : i32, i32
  }
  func.func @transform_2(%arg0: i32) -> (i32, i32) {
    %c0_i32 = arith.constant 0 : i32
    %c0_i32_0 = arith.constant 0 : i32
    %c0_i32_1 = arith.constant 0 : i32
    return %c0_i32, %c0_i32_0 : i32, i32
  }
  func.func @transform_3(%arg0: i32) -> (i32, i32) {
    %c0_i32 = arith.constant 0 : i32
    %c0_i32_0 = arith.constant 0 : i32
    %c0_i32_1 = arith.constant 0 : i32
    return %c0_i32, %c0_i32_0 : i32, i32
  }
  func.func @transform_4(%arg0: i32) -> (i32, i32) {
    %c0_i32 = arith.constant 0 : i32
    %c0_i32_0 = arith.constant 0 : i32
    %c0_i32_1 = arith.constant 0 : i32
    return %c0_i32, %c0_i32_0 : i32, i32
  }
  func.func @transform_5(%arg0: i32) -> (i32, i32) {
    %c0_i32 = arith.constant 0 : i32
    %c0_i32_0 = arith.constant 0 : i32
    %c0_i32_1 = arith.constant 0 : i32
    return %c0_i32, %c0_i32_0 : i32, i32
  }
  func.func @transform_6(%arg0: i32) -> (i32, i32) {
    %c0_i32 = arith.constant 0 : i32
    %c0_i32_0 = arith.constant 0 : i32
    %c0_i32_1 = arith.constant 0 : i32
    return %c0_i32, %c0_i32_0 : i32, i32
  }
  func.func @transform_7(%arg0: i32) -> (i32, i32, i32) {
    %c0_i32 = arith.constant 0 : i32
    %c0_i32_0 = arith.constant 0 : i32
    %c0_i32_1 = arith.constant 0 : i32
    return %arg0, %c0_i32, %c0_i32_0 : i32, i32, i32
  }
}

</mosaic_0001>

<llo_original>
// kernel: image_encoder_forward.1
$region0: #{image_encoder_forward.1}
  #allocation0 [shape = 'u32[]', space=smem, size = 0x4, offset = 0x4, fixed_abs, tag = 'smem constant byte address 0x4 - core index']
  #allocation1 [shape = 'u32[144,128]{1,0:T(1,128)}', space=vmem, size = 0x12000, scoped, tag = 'internal scratch']
  %s0 = inlined_call_operand.vmem [shape: bf16[2,256,256], index: 0, kind: input, shape index: {}]
  %s1 = inlined_call_operand.vmem [shape: bf16[256,128], index: 1, kind: input, shape index: {}]
  %s2 = inlined_call_operand.vmem [shape: bf16[128,256], index: 2, kind: input, shape index: {}]
  %s3 = inlined_call_operand.vmem [shape: f32[9,256], index: 3, kind: input, shape index: {}]
  %s4 = inlined_call_operand.vmem [shape: bf16[256,128], index: 4, kind: input, shape index: {}]
  %s5 = inlined_call_operand.vmem [shape: bf16[128,1024], index: 5, kind: input, shape index: {}]
  %s6 = inlined_call_operand.vmem [shape: f32[1,1792], index: 6, kind: input, shape index: {}]
  %s7 = inlined_call_operand.hbm [shape: f32[2,1,1024], index: 7, kind: output, shape index: {}]
  %s8 = sld [smem:[#allocation0]]
  $region61: #{image_encoder_forward.1} parent=0
    _
  %s10 = ssub.s32 1, %s8
  %s11 = scalar_select 0, %s10, %s8
  $region1: #{image_encoder_forward.1} parent=0
    #allocation2 [shape = 'u8[8192]{0}', space=vmem, size = 0x2000, scoped, tag = 'output window, operand 0']
    #allocation3 [shape = 's32[2]{0}', space=sflag, size = 0x8, scoped, tag = 'scoped memory for image_encoder_forward.1']
    %12 = vsyncpa [#allocation3], 0
    %s13 = scalar_lea.sflag [#allocation3], 1
    %14 = vsyncpa %s13, 0
    loop: start=0, step=1, limit=4
    $region2: #{image_encoder_forward.1} parent=1 // loop_pre_header
      _
    $region3: #{image_encoder_forward.1} parent=1 // loop_header
      %s16 = sphi 0, %s20
      %p17 = scmp.ge.s32.totalorder %s16, 4
      %s26 = sphi 0, %s28
      %s29 = sphi 0, %s26
      %s30 = sphi 0, %s29
      %s46 = sphi 0, %s30
      %s50 = sphi 0, %s50
      %s52 = sphi 0, %s50
      %s53 = sphi 0, %s52
      %s67 = sphi 0, %s53
      %s71 = sphi 0, %s71
      %s73 = sphi 0, %s71
      %s74 = sphi 0, %s73
      %s88 = sphi 0, %s74
      %s92 = sphi 0, %s92
      %s94 = sphi 0, %s92
      %s95 = sphi 0, %s94
      %s109 = sphi 0, %s95
      %s113 = sphi 0, %s113
      %s115 = sphi 0, %s113
      %s116 = sphi 0, %s115
      %s130 = sphi 0, %s116
      %s134 = sphi 0, %s134
      %s136 = sphi 0, %s134
      %s137 = sphi 0, %s136
      %s151 = sphi 0, %s137
      %s155 = sphi 0, %s155
      %s157 = sphi 0, %s155
      %s158 = sphi 0, %s157
      %s172 = sphi 0, %s158
      %s178 = sphi 0, %s180
      %s181 = sphi 0, %s178
      %s182 = sphi 0, %s181
      %s198 = sphi 0, %s182
    $region4: #{image_encoder_forward.1} parent=1 // loop_header_branch
      %19 = sbr.rel (%p17) target = $region8
    $region5: #{image_encoder_forward.1} parent=1 // loop_body
      %s21 = ssub.s32 %s16, 1
      %s22 = ssub.s32 %s16, 2
      %s23 = sadd.s32 %s16, 1
      %s24 = ssub.s32 %s16, %s23
      %p25 = scmp.eq.s32.totalorder %s24, 0
      %s27 = sadd.s32 %s26, 1
      %s28 = scalar_select %p25, %s26, %s27
      %p31 = pneg %p25
      %p32 = scmp.eq.s32.totalorder %s16, 1
      %p33 = por %p31, %p32
      %p34 = scmp.ne.s32.totalorder %s26, %s29
      %p35 = scmp.eq.s32.totalorder %s16, 0
      %p36 = por %p34, %p35
      %p37 = scmp.ne.s32.totalorder %s26, %s29
      %p38 = scmp.eq.s32.totalorder %s21, 1
      %p39 = por %p37, %p38
      %p40 = scmp.ne.s32.totalorder %s29, %s30
      %p41 = scmp.eq.s32.totalorder %s21, 0
      %p42 = por %p40, %p41
      %p43 = scmp.ne.s32.totalorder %s29, %s30
      %p44 = scmp.eq.s32.totalorder %s22, 1
      %p45 = por %p43, %p44
      %p47 = scmp.ne.s32.totalorder %s30, %s46
      %p48 = scmp.eq.s32.totalorder %s22, 0
      %p49 = por %p47, %p48
      %s51 = sadd.s32 %s50, 1
      %p54 = scmp.eq.s32.totalorder %s16, 1
      %p55 = scmp.ne.s32.totalorder %s50, %s52
      %p56 = scmp.eq.s32.totalorder %s16, 0
      %p57 = por %p55, %p56
      %p58 = scmp.ne.s32.totalorder %s50, %s52
      %p59 = scmp.eq.s32.totalorder %s21, 1
      %p60 = por %p58, %p59
      %p61 = scmp.ne.s32.totalorder %s52, %s53
      %p62 = scmp.eq.s32.totalorder %s21, 0
      %p63 = por %p61, %p62
      %p64 = scmp.ne.s32.totalorder %s52, %s53
      %p65 = scmp.eq.s32.totalorder %s22, 1
      %p66 = por %p64, %p65
      %p68 = scmp.ne.s32.totalorder %s53, %s67
      %p69 = scmp.eq.s32.totalorder %s22, 0
      %p70 = por %p68, %p69
      %s72 = sadd.s32 %s71, 1
      %p75 = scmp.eq.s32.totalorder %s16, 1
      %p76 = scmp.ne.s32.totalorder %s71, %s73
      %p77 = scmp.eq.s32.totalorder %s16, 0
      %p78 = por %p76, %p77
      %p79 = scmp.ne.s32.totalorder %s71, %s73
      %p80 = scmp.eq.s32.totalorder %s21, 1
      %p81 = por %p79, %p80
      %p82 = scmp.ne.s32.totalorder %s73, %s74
      %p83 = scmp.eq.s32.totalorder %s21, 0
      %p84 = por %p82, %p83
      %p85 = scmp.ne.s32.totalorder %s73, %s74
      %p86 = scmp.eq.s32.totalorder %s22, 1
      %p87 = por %p85, %p86
      %p89 = scmp.ne.s32.totalorder %s74, %s88
      %p90 = scmp.eq.s32.totalorder %s22, 0
      %p91 = por %p89, %p90
      %s93 = sadd.s32 %s92, 1
      %p96 = scmp.eq.s32.totalorder %s16, 1
      %p97 = scmp.ne.s32.totalorder %s92, %s94
      %p98 = scmp.eq.s32.totalorder %s16, 0
      %p99 = por %p97, %p98
      %p100 = scmp.ne.s32.totalorder %s92, %s94
      %p101 = scmp.eq.s32.totalorder %s21, 1
      %p102 = por %p100, %p101
      %p103 = scmp.ne.s32.totalorder %s94, %s95
      %p104 = scmp.eq.s32.totalorder %s21, 0
      %p105 = por %p103, %p104
      %p106 = scmp.ne.s32.totalorder %s94, %s95
      %p107 = scmp.eq.s32.totalorder %s22, 1
      %p108 = por %p106, %p107
      %p110 = scmp.ne.s32.totalorder %s95, %s109
      %p111 = scmp.eq.s32.totalorder %s22, 0
      %p112 = por %p110, %p111
      %s114 = sadd.s32 %s113, 1
      %p117 = scmp.eq.s32.totalorder %s16, 1
      %p118 = scmp.ne.s32.totalorder %s113, %s115
      %p119 = scmp.eq.s32.totalorder %s16, 0
      %p120 = por %p118, %p119
      %p121 = scmp.ne.s32.totalorder %s113, %s115
      %p122 = scmp.eq.s32.totalorder %s21, 1
      %p123 = por %p121, %p122
      %p124 = scmp.ne.s32.totalorder %s115, %s116
      %p125 = scmp.eq.s32.totalorder %s21, 0
      %p126 = por %p124, %p125
      %p127 = scmp.ne.s32.totalorder %s115, %s116
      %p128 = scmp.eq.s32.totalorder %s22, 1
      %p129 = por %p127, %p128
      %p131 = scmp.ne.s32.totalorder %s116, %s130
      %p132 = scmp.eq.s32.totalorder %s22, 0
      %p133 = por %p131, %p132
      %s135 = sadd.s32 %s134, 1
      %p138 = scmp.eq.s32.totalorder %s16, 1
      %p139 = scmp.ne.s32.totalorder %s134, %s136
      %p140 = scmp.eq.s32.totalorder %s16, 0
      %p141 = por %p139, %p140
      %p142 = scmp.ne.s32.totalorder %s134, %s136
      %p143 = scmp.eq.s32.totalorder %s21, 1
      %p144 = por %p142, %p143
      %p145 = scmp.ne.s32.totalorder %s136, %s137
      %p146 = scmp.eq.s32.totalorder %s21, 0
      %p147 = por %p145, %p146
      %p148 = scmp.ne.s32.totalorder %s136, %s137
      %p149 = scmp.eq.s32.totalorder %s22, 1
      %p150 = por %p148, %p149
      %p152 = scmp.ne.s32.totalorder %s137, %s151
      %p153 = scmp.eq.s32.totalorder %s22, 0
      %p154 = por %p152, %p153
      %s156 = sadd.s32 %s155, 1
      %p159 = scmp.eq.s32.totalorder %s16, 1
      %p160 = scmp.ne.s32.totalorder %s155, %s157
      %p161 = scmp.eq.s32.totalorder %s16, 0
      %p162 = por %p160, %p161
      %p163 = scmp.ne.s32.totalorder %s155, %s157
      %p164 = scmp.eq.s32.totalorder %s21, 1
      %p165 = por %p163, %p164
      %p166 = scmp.ne.s32.totalorder %s157, %s158
      %p167 = scmp.eq.s32.totalorder %s21, 0
      %p168 = por %p166, %p167
      %p169 = scmp.ne.s32.totalorder %s157, %s158
      %p170 = scmp.eq.s32.totalorder %s22, 1
      %p171 = por %p169, %p170
      %p173 = scmp.ne.s32.totalorder %s158, %s172
      %p174 = scmp.eq.s32.totalorder %s22, 0
      %p175 = por %p173, %p174
      %s176 = ssub.s32 %s16, %s23
      %p177 = scmp.eq.s32.totalorder %s176, 0
      %s179 = sadd.s32 %s178, 1
      %s180 = scalar_select %p177, %s178, %s179
      %p183 = pneg %p177
      %p184 = scmp.eq.s32.totalorder %s16, 1
      %p185 = por %p183, %p184
      %p186 = scmp.ne.s32.totalorder %s178, %s181
      %p187 = scmp.eq.s32.totalorder %s16, 0
      %p188 = por %p186, %p187
      %p189 = scmp.ne.s32.totalorder %s178, %s181
      %p190 = scmp.eq.s32.totalorder %s21, 1
      %p191 = por %p189, %p190
      %p192 = scmp.ne.s32.totalorder %s181, %s182
      %p193 = scmp.eq.s32.totalorder %s21, 0
      %p194 = por %p192, %p193
      %p195 = scmp.ne.s32.totalorder %s181, %s182
      %p196 = scmp.eq.s32.totalorder %s22, 1
      %p197 = por %p195, %p196
      %p199 = scmp.ne.s32.totalorder %s182, %s198
      %p200 = scmp.eq.s32.totalorder %s22, 0
      %p201 = por %p199, %p200
      %p202 = scmp.le.s32.totalorder 1, %s16
      %p203 = scmp.lt.s32.totalorder %s16, 3
      %p204 = pnand %p202, %p203
      %p205 = pneg %p204
      // Predicated region
      $region9: #{image_encoder_forward.1} parent=5 // pred_check
        _
      $region10: #{image_encoder_forward.1} parent=5 // pred_check_branch
        %207 = sbr.rel (%p204) target = $region12
      $region11: #{image_encoder_forward.1} parent=5 // pred_region
        %s208 = ssub.s32 %s16, 1
        // Predicated region
        $region13: #{image_encoder_forward.1} parent=11 // pred_check
          %p209 = pneg %p63
        $region14: #{image_encoder_forward.1} parent=11 // pred_check_branch
          %211 = sbr.rel (%p209) target = $region16
        $region15: #{image_encoder_forward.1} parent=11 // pred_region
          _
        $region16: #{image_encoder_forward.1} parent=11 // pred_fallthru
          _
        // Predicated region
        $region17: #{image_encoder_forward.1} parent=11 // pred_check
          %p212 = pneg %p84
        $region18: #{image_encoder_forward.1} parent=11 // pred_check_branch
          %214 = sbr.rel (%p212) target = $region20
        $region19: #{image_encoder_forward.1} parent=11 // pred_region
          _
        $region20: #{image_encoder_forward.1} parent=11 // pred_fallthru
          _
        // Predicated region
        $region21: #{image_encoder_forward.1} parent=11 // pred_check
          %p215 = pneg %p105
        $region22: #{image_encoder_forward.1} parent=11 // pred_check_branch
          %217 = sbr.rel (%p215) target = $region24
        $region23: #{image_encoder_forward.1} parent=11 // pred_region
          _
        $region24: #{image_encoder_forward.1} parent=11 // pred_fallthru
          _
        // Predicated region
        $region25: #{image_encoder_forward.1} parent=11 // pred_check
          %p218 = pneg %p126
        $region26: #{image_encoder_forward.1} parent=11 // pred_check_branch
          %220 = sbr.rel (%p218) target = $region28
        $region27: #{image_encoder_forward.1} parent=11 // pred_region
          _
        $region28: #{image_encoder_forward.1} parent=11 // pred_fallthru
          _
        // Predicated region
        $region29: #{image_encoder_forward.1} parent=11 // pred_check
          %p221 = pneg %p147
        $region30: #{image_encoder_forward.1} parent=11 // pred_check_branch
          %223 = sbr.rel (%p221) target = $region32
        $region31: #{image_encoder_forward.1} parent=11 // pred_region
          _
        $region32: #{image_encoder_forward.1} parent=11 // pred_fallthru
          _
        // Predicated region
        $region33: #{image_encoder_forward.1} parent=11 // pred_check
          %p224 = pneg %p168
        $region34: #{image_encoder_forward.1} parent=11 // pred_check_branch
          %226 = sbr.rel (%p224) target = $region36
        $region35: #{image_encoder_forward.1} parent=11 // pred_region
          _
        $region36: #{image_encoder_forward.1} parent=11 // pred_fallthru
          _
      $region12: #{image_encoder_forward.1} parent=5 // pred_fallthru
        _
      %p227 = scmp.lt.s32.totalorder %s16, 2
      // Predicated region
      $region37: #{image_encoder_forward.1} parent=5 // pred_check
        %p228 = pneg %p227
      $region38: #{image_encoder_forward.1} parent=5 // pred_check_branch
        %230 = sbr.rel (%p228) target = $region40
      $region39: #{image_encoder_forward.1} parent=5 // pred_region
        // Predicated region
        $region41: #{image_encoder_forward.1} parent=39 // pred_check
          %p231 = pneg %p36
        $region42: #{image_encoder_forward.1} parent=39 // pred_check_branch
          %233 = sbr.rel (%p231) target = $region44
        $region43: #{image_encoder_forward.1} parent=39 // pred_region
          %p234 = scmp.lt.s32.totalorder %s16, 1
          %s235 = scalar_select %p234, %s16, 1
          %s236 = smul.addr %s235, 64
          %s237 = smul.addr %s236, 4
          %s238 = scalar_lea.vmem %s0, %s237
        $region44: #{image_encoder_forward.1} parent=39 // pred_fallthru
          _
      $region40: #{image_encoder_forward.1} parent=5 // pred_fallthru
        _
      %p239 = scmp.le.s32.totalorder 1, %s16
      %p240 = scmp.lt.s32.totalorder %s16, 3
      %p241 = pnand %p239, %p240
      %p242 = pneg %p241
      // Predicated region
      $region45: #{image_encoder_forward.1} parent=5 // pred_check
        _
      $region46: #{image_encoder_forward.1} parent=5 // pred_check_branch
        %244 = sbr.rel (%p241) target = $region48
      $region47: #{image_encoder_forward.1} parent=5 // pred_region
        %s245 = ssub.s32 %s16, 1
        %p246 = scmp.lt.s32.totalorder %s21, 1
        %s247 = scalar_select %p246, %s21, 1
        %s248 = smul.addr %s247, 64
        %s249 = smul.addr %s248, 4
        %s250 = scalar_lea.vmem %s0, %s249
        %p251 = pneg %p42
        %p252 = pneg %p39
        %p253 = pneg %p63
        %p254 = pneg %p60
        %p255 = pneg %p84
        %p256 = pneg %p81
        %p257 = pneg %p105
        %p258 = pneg %p102
        %p259 = pneg %p126
        %p260 = pneg %p123
        %p261 = pneg %p147
        %p262 = pneg %p144
        %p263 = pneg %p168
        %p264 = pneg %p165
        %p265 = pneg %p194
        %p266 = pneg %p191
        %s267 = sand.u32 %s181, 1
        %s268 = scalar_lea.sflag [#allocation3], %s267
        %s269 = sand.u32 %s181, 1
        %s270 = smul.addr %s269, 8
        %s271 = scalar_lea.vmem [#allocation2], %s270
        %p272 = scmp.lt.s32.totalorder %s21, 1
        %s273 = scalar_select %p272, %s21, 1
        %s274 = smul.addr %s273, 64
        %s275 = smul.addr %s274, 4
        %s276 = scalar_lea.vmem %s0, %s275
        %v278 = vld [vmem:[%s276] sm:$0xff]
        %v279 = vld [vmem:[%s276 + $0x8] sm:$0xff]
        %v280 = vld [vmem:[%s276 + $0x10] sm:$0xff]
        %v281 = vld [vmem:[%s276 + $0x18] sm:$0xff]
        %v282 = vld [vmem:[%s276 + $0x20] sm:$0xff]
        %v283 = vld [vmem:[%s276 + $0x28] sm:$0xff]
        %v284 = vld [vmem:[%s276 + $0x30] sm:$0xff]
        %v285 = vld [vmem:[%s276 + $0x38] sm:$0xff]
        %v286 = vld [vmem:[%s276 + $0x40] sm:$0xff]
        %v287 = vld [vmem:[%s276 + $0x48] sm:$0xff]
        %v288 = vld [vmem:[%s276 + $0x50] sm:$0xff]
        %v289 = vld [vmem:[%s276 + $0x58] sm:$0xff]
        %v290 = vld [vmem:[%s276 + $0x60] sm:$0xff]
        %v291 = vld [vmem:[%s276 + $0x68] sm:$0xff]
        %v292 = vld [vmem:[%s276 + $0x70] sm:$0xff]
        %v293 = vld [vmem:[%s276 + $0x78] sm:$0xff]
        %v294 = vld [vmem:[%s276 + $0x80] sm:$0xff]
        %v295 = vld [vmem:[%s276 + $0x88] sm:$0xff]
        %v296 = vld [vmem:[%s276 + $0x90] sm:$0xff]
        %v297 = vld [vmem:[%s276 + $0x98] sm:$0xff]
        %v298 = vld [vmem:[%s276 + $0xa0] sm:$0xff]
        %v299 = vld [vmem:[%s276 + $0xa8] sm:$0xff]
        %v300 = vld [vmem:[%s276 + $0xb0] sm:$0xff]
        %v301 = vld [vmem:[%s276 + $0xb8] sm:$0xff]
        %v302 = vld [vmem:[%s276 + $0xc0] sm:$0xff]
        %v303 = vld [vmem:[%s276 + $0xc8] sm:$0xff]
        %v304 = vld [vmem:[%s276 + $0xd0] sm:$0xff]
        %v305 = vld [vmem:[%s276 + $0xd8] sm:$0xff]
        %v306 = vld [vmem:[%s276 + $0xe0] sm:$0xff]
        %v307 = vld [vmem:[%s276 + $0xe8] sm:$0xff]
        %v308 = vld [vmem:[%s276 + $0xf0] sm:$0xff]
        %v309 = vld [vmem:[%s276 + $0xf8] sm:$0xff]
        %v310 = vld [vmem:[%s1] sm:$0xf]
        %v311 = vld [vmem:[%s1 + $0x4] sm:$0xf]
        %v312 = vld [vmem:[%s1 + $0x8] sm:$0xf]
        %v313 = vld [vmem:[%s1 + $0xc] sm:$0xf]
        %v314 = vld [vmem:[%s1 + $0x10] sm:$0xf]
        %v315 = vld [vmem:[%s1 + $0x14] sm:$0xf]
        %v316 = vld [vmem:[%s1 + $0x18] sm:$0xf]
        %v317 = vld [vmem:[%s1 + $0x1c] sm:$0xf]
        %v318 = vld [vmem:[%s1 + $0x20] sm:$0xf]
        %v319 = vld [vmem:[%s1 + $0x24] sm:$0xf]
        %v320 = vld [vmem:[%s1 + $0x28] sm:$0xf]
        %v321 = vld [vmem:[%s1 + $0x2c] sm:$0xf]
        %v322 = vld [vmem:[%s1 + $0x30] sm:$0xf]
        %v323 = vld [vmem:[%s1 + $0x34] sm:$0xf]
        %v324 = vld [vmem:[%s1 + $0x38] sm:$0xf]
        %v325 = vld [vmem:[%s1 + $0x3c] sm:$0xf]
        %v326 = vld [vmem:[%s1 + $0x40] sm:$0xf]
        %v327 = vld [vmem:[%s1 + $0x44] sm:$0xf]
        %v328 = vld [vmem:[%s1 + $0x48] sm:$0xf]
        %v329 = vld [vmem:[%s1 + $0x4c] sm:$0xf]
        %v330 = vld [vmem:[%s1 + $0x50] sm:$0xf]
        %v331 = vld [vmem:[%s1 + $0x54] sm:$0xf]
        %v332 = vld [vmem:[%s1 + $0x58] sm:$0xf]
        %v333 = vld [vmem:[%s1 + $0x5c] sm:$0xf]
        %v334 = vld [vmem:[%s1 + $0x60] sm:$0xf]
        %v335 = vld [vmem:[%s1 + $0x64] sm:$0xf]
        %v336 = vld [vmem:[%s1 + $0x68] sm:$0xf]
        %v337 = vld [vmem:[%s1 + $0x6c] sm:$0xf]
        %v338 = vld [vmem:[%s1 + $0x70] sm:$0xf]
        %v339 = vld [vmem:[%s1 + $0x74] sm:$0xf]
        %v340 = vld [vmem:[%s1 + $0x78] sm:$0xf]
        %v341 = vld [vmem:[%s1 + $0x7c] sm:$0xf]
        %v342 = vld [vmem:[%s6] sm:$0x1]
        %v344 = vlaneseq
        %v345 = vshrl.u32 %v344, 7
        %v346 = vsub.s32 0, %v345
        %v347 = vrot.slane %v342, %v346
        %v381 = vunpack.c.l.b16 %v278
        %v382 = vunpack.c.h.b16 %v278
        %v383 = vunpack.c.l.b16 %v279
        %v384 = vunpack.c.h.b16 %v279
        %v385 = vunpack.c.l.b16 %v280
        %v386 = vunpack.c.h.b16 %v280
        %v387 = vunpack.c.l.b16 %v281
        %v388 = vunpack.c.h.b16 %v281
        %v389 = vunpack.c.l.b16 %v282
        %v390 = vunpack.c.h.b16 %v282
        %v391 = vunpack.c.l.b16 %v283
        %v392 = vunpack.c.h.b16 %v283
        %v393 = vunpack.c.l.b16 %v284
        %v394 = vunpack.c.h.b16 %v284
        %v395 = vunpack.c.l.b16 %v285
        %v396 = vunpack.c.h.b16 %v285
        %v397 = vunpack.c.l.b16 %v286
        %v398 = vunpack.c.h.b16 %v286
        %v399 = vunpack.c.l.b16 %v287
        %v400 = vunpack.c.h.b16 %v287
        %v401 = vunpack.c.l.b16 %v288
        %v402 = vunpack.c.h.b16 %v288
        %v403 = vunpack.c.l.b16 %v289
        %v404 = vunpack.c.h.b16 %v289
        %v405 = vunpack.c.l.b16 %v290
        %v406 = vunpack.c.h.b16 %v290
        %v407 = vunpack.c.l.b16 %v291
        %v408 = vunpack.c.h.b16 %v291
        %v409 = vunpack.c.l.b16 %v292
        %v410 = vunpack.c.h.b16 %v292
        %v411 = vunpack.c.l.b16 %v293
        %v412 = vunpack.c.h.b16 %v293
        %v413 = vunpack.c.l.b16 %v294
        %v414 = vunpack.c.h.b16 %v294
        %v415 = vunpack.c.l.b16 %v295
        %v416 = vunpack.c.h.b16 %v295
        %v417 = vunpack.c.l.b16 %v296
        %v418 = vunpack.c.h.b16 %v296
        %v419 = vunpack.c.l.b16 %v297
        %v420 = vunpack.c.h.b16 %v297
        %v421 = vunpack.c.l.b16 %v298
        %v422 = vunpack.c.h.b16 %v298
        %v423 = vunpack.c.l.b16 %v299
        %v424 = vunpack.c.h.b16 %v299
        %v425 = vunpack.c.l.b16 %v300
        %v426 = vunpack.c.h.b16 %v300
        %v427 = vunpack.c.l.b16 %v301
        %v428 = vunpack.c.h.b16 %v301
        %v429 = vunpack.c.l.b16 %v302
        %v430 = vunpack.c.h.b16 %v302
        %v431 = vunpack.c.l.b16 %v303
        %v432 = vunpack.c.h.b16 %v303
        %v433 = vunpack.c.l.b16 %v304
        %v434 = vunpack.c.h.b16 %v304
        %v435 = vunpack.c.l.b16 %v305
        %v436 = vunpack.c.h.b16 %v305
        %v437 = vunpack.c.l.b16 %v306
        %v438 = vunpack.c.h.b16 %v306
        %v439 = vunpack.c.l.b16 %v307
        %v440 = vunpack.c.h.b16 %v307
        %v441 = vunpack.c.l.b16 %v308
        %v442 = vunpack.c.h.b16 %v308
        %v443 = vunpack.c.l.b16 %v309
        %v444 = vunpack.c.h.b16 %v309
        %v445 = vpack.c.b16 %v383, %v381
        %v446 = vpack.c.b16 %v384, %v382
        %v447 = vpack.c.b16 %v387, %v385
        %v448 = vpack.c.b16 %v388, %v386
        %v449 = vpack.c.b16 %v391, %v389
        %v450 = vpack.c.b16 %v392, %v390
        %v451 = vpack.c.b16 %v395, %v393
        %v452 = vpack.c.b16 %v396, %v394
        %v453 = vpack.c.b16 %v399, %v397
        %v454 = vpack.c.b16 %v400, %v398
        %v455 = vpack.c.b16 %v403, %v401
        %v456 = vpack.c.b16 %v404, %v402
        %v457 = vpack.c.b16 %v407, %v405
        %v458 = vpack.c.b16 %v408, %v406
        %v459 = vpack.c.b16 %v411, %v409
        %v460 = vpack.c.b16 %v412, %v410
        %v461 = vpack.c.b16 %v415, %v413
        %v462 = vpack.c.b16 %v416, %v414
        %v463 = vpack.c.b16 %v419, %v417
        %v464 = vpack.c.b16 %v420, %v418
        %v465 = vpack.c.b16 %v423, %v421
        %v466 = vpack.c.b16 %v424, %v422
        %v467 = vpack.c.b16 %v427, %v425
        %v468 = vpack.c.b16 %v428, %v426
        %v469 = vpack.c.b16 %v431, %v429
        %v470 = vpack.c.b16 %v432, %v430
        %v471 = vpack.c.b16 %v435, %v433
        %v472 = vpack.c.b16 %v436, %v434
        %v473 = vpack.c.b16 %v439, %v437
        %v474 = vpack.c.b16 %v440, %v438
        %v475 = vpack.c.b16 %v443, %v441
        %v476 = vpack.c.b16 %v444, %v442
        %v541 = vunpack.c.l.b16 %v310
        %v542 = vunpack.c.l.b16 %v311
        %v543 = vunpack.c.l.b16 %v312
        %v544 = vunpack.c.l.b16 %v313
        %v545 = vunpack.c.l.b16 %v314
        %v546 = vunpack.c.l.b16 %v315
        %v547 = vunpack.c.l.b16 %v316
        %v548 = vunpack.c.l.b16 %v317
        %v549 = vunpack.c.l.b16 %v318
        %v550 = vunpack.c.l.b16 %v319
        %v551 = vunpack.c.l.b16 %v320
        %v552 = vunpack.c.l.b16 %v321
        %v553 = vunpack.c.l.b16 %v322
        %v554 = vunpack.c.l.b16 %v323
        %v555 = vunpack.c.l.b16 %v324
        %v556 = vunpack.c.l.b16 %v325
        %v557 = vunpack.c.l.b16 %v326
        %v558 = vunpack.c.l.b16 %v327
        %v559 = vunpack.c.l.b16 %v328
        %v560 = vunpack.c.l.b16 %v329
        %v561 = vunpack.c.l.b16 %v330
        %v562 = vunpack.c.l.b16 %v331
        %v563 = vunpack.c.l.b16 %v332
        %v564 = vunpack.c.l.b16 %v333
        %v565 = vunpack.c.l.b16 %v334
        %v566 = vunpack.c.l.b16 %v335
        %v567 = vunpack.c.l.b16 %v336
        %v568 = vunpack.c.l.b16 %v337
        %v569 = vunpack.c.l.b16 %v338
        %v570 = vunpack.c.l.b16 %v339
        %v571 = vunpack.c.l.b16 %v340
        %v572 = vunpack.c.l.b16 %v341
        %v573 = vpack.c.b16 %v542, %v541
        %v574 = vpack.c.b16 %v544, %v543
        %v575 = vpack.c.b16 %v546, %v545
        %v576 = vpack.c.b16 %v548, %v547
        %v577 = vpack.c.b16 %v550, %v549
        %v578 = vpack.c.b16 %v552, %v551
        %v579 = vpack.c.b16 %v554, %v553
        %v580 = vpack.c.b16 %v556, %v555
        %v581 = vpack.c.b16 %v558, %v557
        %v582 = vpack.c.b16 %v560, %v559
        %v583 = vpack.c.b16 %v562, %v561
        %v584 = vpack.c.b16 %v564, %v563
        %v585 = vpack.c.b16 %v566, %v565
        %v586 = vpack.c.b16 %v568, %v567
        %v587 = vpack.c.b16 %v570, %v569
        %v588 = vpack.c.b16 %v572, %v571
        %605 = vmatprep.subr.bf16.mxu0 0
        %606 = vmatpush1.bf16.msra.mxu0 %v573
        %607 = vmatprep.subr.bf16.mxu0 0
        %608 = vmatpush1.bf16.msra.mxu0 %v574
        %609 = vmatprep.subr.bf16.mxu0 0
        %610 = vmatpush1.bf16.msra.mxu0 %v575
        %611 = vmatprep.subr.bf16.mxu0 0
        %612 = vmatpush1.bf16.msra.mxu0 %v576
        %613 = vmatprep.subr.bf16.mxu0 0
        %614 = vmatpush1.bf16.msra.mxu0 %v577
        %615 = vmatprep.subr.bf16.mxu0 0
        %616 = vmatpush1.bf16.msra.mxu0 %v578
        %617 = vmatprep.subr.bf16.mxu0 0
        %618 = vmatpush1.bf16.msra.mxu0 %v579
        %619 = vmatprep.subr.bf16.mxu0 0
        %620 = vmatpush1.bf16.msra.mxu0 %v580
        %621 = vmatprep.subr.bf16.mxu0 0
        %622 = vmatpush1.bf16.msra.mxu0 %v581
        %623 = vmatprep.subr.bf16.mxu0 0
        %624 = vmatpush1.bf16.msra.mxu0 %v582
        %625 = vmatprep.subr.bf16.mxu0 0
        %626 = vmatpush1.bf16.msra.mxu0 %v583
        %627 = vmatprep.subr.bf16.mxu0 0
        %628 = vmatpush1.bf16.msra.mxu0 %v584
        %629 = vmatprep.subr.bf16.mxu0 0
        %630 = vmatpush1.bf16.msra.mxu0 %v585
        %631 = vmatprep.subr.bf16.mxu0 0
        %632 = vmatpush1.bf16.msra.mxu0 %v586
        %633 = vmatprep.subr.bf16.mxu0 0
        %634 = vmatpush1.bf16.msra.mxu0 %v587
        %635 = vmatprep.subr.bf16.mxu0 0
        %636 = vmatpush1.bf16.msra.mxu0 %v588
        %637 = vmatprep.mubr.bf16.mxu0 %v446
        %638 = vmatmul.mubr.bf16.gmra.mrb[0].mxu0 %v445
        %v639 = vpop.f32.mrb[0].mxu0
        %v640 = vadd.f32 %v347, %v639
        %v641 = vpop.f32.mrb[0].mxu0
        %v642 = vpop.f32.mrb[0].mxu0
        %v643 = vadd.f32 %v347, %v642
        %v644 = vpop.f32.mrb[0].mxu0
        %645 = vmatprep.mubr.bf16.mxu0 %v448
        %646 = vmatmul.mubr.bf16.gmra.mrb[0].mxu0 %v447
        %v647 = vpop.f32.mrb[0].mxu0
        %v648 = vadd.f32 %v347, %v647
        %v649 = vpop.f32.mrb[0].mxu0
        %v650 = vpop.f32.mrb[0].mxu0
        %v651 = vadd.f32 %v347, %v650
        %v652 = vpop.f32.mrb[0].mxu0
        %653 = vmatprep.mubr.bf16.mxu0 %v450
        %654 = vmatmul.mubr.bf16.gmra.mrb[0].mxu0 %v449
        %v655 = vpop.f32.mrb[0].mxu0
        %v656 = vadd.f32 %v347, %v655
        %v657 = vpop.f32.mrb[0].mxu0
        %v658 = vpop.f32.mrb[0].mxu0
        %v659 = vadd.f32 %v347, %v658
        %v660 = vpop.f32.mrb[0].mxu0
        %661 = vmatprep.mubr.bf16.mxu0 %v452
        %662 = vmatmul.mubr.bf16.gmra.mrb[0].mxu0 %v451
        %v663 = vpop.f32.mrb[0].mxu0
        %v664 = vadd.f32 %v347, %v663
        %v665 = vpop.f32.mrb[0].mxu0
        %v666 = vpop.f32.mrb[0].mxu0
        %v667 = vadd.f32 %v347, %v666
        %v668 = vpop.f32.mrb[0].mxu0
        %669 = vmatprep.mubr.bf16.mxu0 %v454
        %670 = vmatmul.mubr.bf16.gmra.mrb[0].mxu0 %v453
        %v671 = vpop.f32.mrb[0].mxu0
        %v672 = vadd.f32 %v347, %v671
        %v673 = vpop.f32.mrb[0].mxu0
        %v674 = vpop.f32.mrb[0].mxu0
        %v675 = vadd.f32 %v347, %v674
        %v676 = vpop.f32.mrb[0].mxu0
        %677 = vmatprep.mubr.bf16.mxu0 %v456
        %678 = vmatmul.mubr.bf16.gmra.mrb[0].mxu0 %v455
        %v679 = vpop.f32.mrb[0].mxu0
        %v680 = vadd.f32 %v347, %v679
        %v681 = vpop.f32.mrb[0].mxu0
        %v682 = vpop.f32.mrb[0].mxu0
        %v683 = vadd.f32 %v347, %v682
        %v684 = vpop.f32.mrb[0].mxu0
        %685 = vmatprep.mubr.bf16.mxu0 %v458
        %686 = vmatmul.mubr.bf16.gmra.mrb[0].mxu0 %v457
        %v687 = vpop.f32.mrb[0].mxu0
        %v688 = vadd.f32 %v347, %v687
        %v689 = vpop.f32.mrb[0].mxu0
        %v690 = vpop.f32.mrb[0].mxu0
        %v691 = vadd.f32 %v347, %v690
        %v692 = vpop.f32.mrb[0].mxu0
        %693 = vmatprep.mubr.bf16.mxu0 %v460
        %694 = vmatmul.mubr.bf16.gmra.mrb[0].mxu0 %v459
        %v695 = vpop.f32.mrb[0].mxu0
        %v696 = vadd.f32 %v347, %v695
        %v697 = vpop.f32.mrb[0].mxu0
        %v698 = vpop.f32.mrb[0].mxu0
        %v699 = vadd.f32 %v347, %v698
        %v700 = vpop.f32.mrb[0].mxu0
        %701 = vmatprep.mubr.bf16.mxu0 %v462
        %702 = vmatmul.mubr.bf16.gmra.mrb[0].mxu0 %v461
        %v703 = vpop.f32.mrb[0].mxu0
        %v704 = vadd.f32 %v347, %v703
        %v705 = vpop.f32.mrb[0].mxu0
        %v706 = vpop.f32.mrb[0].mxu0
        %v707 = vadd.f32 %v347, %v706
        %v708 = vpop.f32.mrb[0].mxu0
        %709 = vmatprep.mubr.bf16.mxu0 %v464
        %710 = vmatmul.mubr.bf16.gmra.mrb[0].mxu0 %v463
        %v711 = vpop.f32.mrb[0].mxu0
        %v712 = vadd.f32 %v347, %v711
        %v713 = vpop.f32.mrb[0].mxu0
        %v714 = vpop.f32.mrb[0].mxu0
        %v715 = vadd.f32 %v347, %v714
        %v716 = vpop.f32.mrb[0].mxu0
        %717 = vmatprep.mubr.bf16.mxu0 %v466
        %718 = vmatmul.mubr.bf16.gmra.mrb[0].mxu0 %v465
        %v719 = vpop.f32.mrb[0].mxu0
        %v720 = vadd.f32 %v347, %v719
        %v721 = vpop.f32.mrb[0].mxu0
        %v722 = vpop.f32.mrb[0].mxu0
        %v723 = vadd.f32 %v347, %v722
        %v724 = vpop.f32.mrb[0].mxu0
        %725 = vmatprep.mubr.bf16.mxu0 %v468
        %726 = vmatmul.mubr.bf16.gmra.mrb[0].mxu0 %v467
        %v727 = vpop.f32.mrb[0].mxu0
        %v728 = vadd.f32 %v347, %v727
        %v729 = vpop.f32.mrb[0].mxu0
        %v730 = vpop.f32.mrb[0].mxu0
        %v731 = vadd.f32 %v347, %v730
        %v732 = vpop.f32.mrb[0].mxu0
        %733 = vmatprep.mubr.bf16.mxu0 %v470
        %734 = vmatmul.mubr.bf16.gmra.mrb[0].mxu0 %v469
        %v735 = vpop.f32.mrb[0].mxu0
        %v736 = vadd.f32 %v347, %v735
        %v737 = vpop.f32.mrb[0].mxu0
        %v738 = vpop.f32.mrb[0].mxu0
        %v739 = vadd.f32 %v347, %v738
        %v740 = vpop.f32.mrb[0].mxu0
        %741 = vmatprep.mubr.bf16.mxu0 %v472
        %742 = vmatmul.mubr.bf16.gmra.mrb[0].mxu0 %v471
        %v743 = vpop.f32.mrb[0].mxu0
        %v744 = vadd.f32 %v347, %v743
        %v745 = vpop.f32.mrb[0].mxu0
        %v746 = vpop.f32.mrb[0].mxu0
        %v747 = vadd.f32 %v347, %v746
        %v748 = vpop.f32.mrb[0].mxu0
        %749 = vmatprep.mubr.bf16.mxu0 %v474
        %750 = vmatmul.mubr.bf16.gmra.mrb[0].mxu0 %v473
        %v751 = vpop.f32.mrb[0].mxu0
        %v752 = vadd.f32 %v347, %v751
        %v753 = vpop.f32.mrb[0].mxu0
        %v754 = vpop.f32.mrb[0].mxu0
        %v755 = vadd.f32 %v347, %v754
        %v756 = vpop.f32.mrb[0].mxu0
        %757 = vmatprep.mubr.bf16.mxu0 %v476
        %758 = vmatmul.mubr.bf16.gmra.mrb[0].mxu0 %v475
        %v759 = vpop.f32.mrb[0].mxu0
        %v760 = vadd.f32 %v347, %v759
        %v761 = vpop.f32.mrb[0].mxu0
        %v762 = vpop.f32.mrb[0].mxu0
        %v763 = vadd.f32 %v347, %v762
        %v764 = vpop.f32.mrb[0].mxu0
        %765 = vdwg.mxu0
        %v766 = vadd.f32 %v640, 3.0
        %v767 = vadd.f32 %v643, 3.0
        %v768 = vadd.f32 %v648, 3.0
        %v769 = vadd.f32 %v651, 3.0
        %v770 = vadd.f32 %v656, 3.0
        %v771 = vadd.f32 %v659, 3.0
        %v772 = vadd.f32 %v664, 3.0
        %v773 = vadd.f32 %v667, 3.0
        %v774 = vadd.f32 %v672, 3.0
        %v775 = vadd.f32 %v675, 3.0
        %v776 = vadd.f32 %v680, 3.0
        %v777 = vadd.f32 %v683, 3.0
        %v778 = vadd.f32 %v688, 3.0
        %v779 = vadd.f32 %v691, 3.0
        %v780 = vadd.f32 %v696, 3.0
        %v781 = vadd.f32 %v699, 3.0
        %v782 = vadd.f32 %v704, 3.0
        %v783 = vadd.f32 %v707, 3.0
        %v784 = vadd.f32 %v712, 3.0
        %v785 = vadd.f32 %v715, 3.0
        %v786 = vadd.f32 %v720, 3.0
        %v787 = vadd.f32 %v723, 3.0
        %v788 = vadd.f32 %v728, 3.0
        %v789 = vadd.f32 %v731, 3.0
        %v790 = vadd.f32 %v736, 3.0
        %v791 = vadd.f32 %v739, 3.0
        %v792 = vadd.f32 %v744, 3.0
        %v793 = vadd.f32 %v747, 3.0
        %v794 = vadd.f32 %v752, 3.0
        %v795 = vadd.f32 %v755, 3.0
        %v796 = vadd.f32 %v760, 3.0
        %v797 = vadd.f32 %v763, 3.0
        %v798 = vmax.f32 %v766, 0.0
        %v799 = vmax.f32 %v767, 0.0
        %v800 = vmax.f32 %v768, 0.0
        %v801 = vmax.f32 %v769, 0.0
        %v802 = vmax.f32 %v770, 0.0
        %v803 = vmax.f32 %v771, 0.0
        %v804 = vmax.f32 %v772, 0.0
        %v805 = vmax.f32 %v773, 0.0
        %v806 = vmax.f32 %v774, 0.0
        %v807 = vmax.f32 %v775, 0.0
        %v808 = vmax.f32 %v776, 0.0
        %v809 = vmax.f32 %v777, 0.0
        %v810 = vmax.f32 %v778, 0.0
        %v811 = vmax.f32 %v779, 0.0
        %v812 = vmax.f32 %v780, 0.0
        %v813 = vmax.f32 %v781, 0.0
        %v814 = vmax.f32 %v782, 0.0
        %v815 = vmax.f32 %v783, 0.0
        %v816 = vmax.f32 %v784, 0.0
        %v817 = vmax.f32 %v785, 0.0
        %v818 = vmax.f32 %v786, 0.0
        %v819 = vmax.f32 %v787, 0.0
        %v820 = vmax.f32 %v788, 0.0
        %v821 = vmax.f32 %v789, 0.0
        %v822 = vmax.f32 %v790, 0.0
        %v823 = vmax.f32 %v791, 0.0
        %v824 = vmax.f32 %v792, 0.0
        %v825 = vmax.f32 %v793, 0.0
        %v826 = vmax.f32 %v794, 0.0
        %v827 = vmax.f32 %v795, 0.0
        %v828 = vmax.f32 %v796, 0.0
        %v829 = vmax.f32 %v797, 0.0
        %v830 = vmin.f32 %v798, 6.0
        %v831 = vmin.f32 %v799, 6.0
        %v832 = vmin.f32 %v800, 6.0
        %v833 = vmin.f32 %v801, 6.0
        %v834 = vmin.f32 %v802, 6.0
        %v835 = vmin.f32 %v803, 6.0
        %v836 = vmin.f32 %v804, 6.0
        %v837 = vmin.f32 %v805, 6.0
        %v838 = vmin.f32 %v806, 6.0
        %v839 = vmin.f32 %v807, 6.0
        %v840 = vmin.f32 %v808, 6.0
        %v841 = vmin.f32 %v809, 6.0
        %v842 = vmin.f32 %v810, 6.0
        %v843 = vmin.f32 %v811, 6.0
        %v844 = vmin.f32 %v812, 6.0
        %v845 = vmin.f32 %v813, 6.0
        %v846 = vmin.f32 %v814, 6.0
        %v847 = vmin.f32 %v815, 6.0
        %v848 = vmin.f32 %v816, 6.0
        %v849 = vmin.f32 %v817, 6.0
        %v850 = vmin.f32 %v818, 6.0
        %v851 = vmin.f32 %v819, 6.0
        %v852 = vmin.f32 %v820, 6.0
        %v853 = vmin.f32 %v821, 6.0
        %v854 = vmin.f32 %v822, 6.0
        %v855 = vmin.f32 %v823, 6.0
        %v856 = vmin.f32 %v824, 6.0
        %v857 = vmin.f32 %v825, 6.0
        %v858 = vmin.f32 %v826, 6.0
        %v859 = vmin.f32 %v827, 6.0
        %v860 = vmin.f32 %v828, 6.0
        %v861 = vmin.f32 %v829, 6.0
        %v862 = vmul.f32 %v640, %v830
        %v863 = vmul.f32 %v643, %v831
        %v864 = vmul.f32 %v648, %v832
        %v865 = vmul.f32 %v651, %v833
        %v866 = vmul.f32 %v656, %v834
        %v867 = vmul.f32 %v659, %v835
        %v868 = vmul.f32 %v664, %v836
        %v869 = vmul.f32 %v667, %v837
        %v870 = vmul.f32 %v672, %v838
        %v871 = vmul.f32 %v675, %v839
        %v872 = vmul.f32 %v680, %v840
        %v873 = vmul.f32 %v683, %v841
        %v874 = vmul.f32 %v688, %v842
        %v875 = vmul.f32 %v691, %v843
        %v876 = vmul.f32 %v696, %v844
        %v877 = vmul.f32 %v699, %v845
        %v878 = vmul.f32 %v704, %v846
        %v879 = vmul.f32 %v707, %v847
        %v880 = vmul.f32 %v712, %v848
        %v881 = vmul.f32 %v715, %v849
        %v882 = vmul.f32 %v720, %v850
        %v883 = vmul.f32 %v723, %v851
        %v884 = vmul.f32 %v728, %v852
        %v885 = vmul.f32 %v731, %v853
        %v886 = vmul.f32 %v736, %v854
        %v887 = vmul.f32 %v739, %v855
        %v888 = vmul.f32 %v744, %v856
        %v889 = vmul.f32 %v747, %v857
        %v890 = vmul.f32 %v752, %v858
        %v891 = vmul.f32 %v755, %v859
        %v892 = vmul.f32 %v760, %v860
        %v893 = vmul.f32 %v763, %v861
        %v894 = vmul.f32 %v862, 0.16666667
        %v895 = vmul.f32 %v863, 0.16666667
        %v896 = vmul.f32 %v864, 0.16666667
        %v897 = vmul.f32 %v865, 0.16666667
        %v898 = vmul.f32 %v866, 0.16666667
        %v899 = vmul.f32 %v867, 0.16666667
        %v900 = vmul.f32 %v868, 0.16666667
        %v901 = vmul.f32 %v869, 0.16666667
        %v902 = vmul.f32 %v870, 0.16666667
        %v903 = vmul.f32 %v871, 0.16666667
        %v904 = vmul.f32 %v872, 0.16666667
        %v905 = vmul.f32 %v873, 0.16666667
        %v906 = vmul.f32 %v874, 0.16666667
        %v907 = vmul.f32 %v875, 0.16666667
        %v908 = vmul.f32 %v876, 0.16666667
        %v909 = vmul.f32 %v877, 0.16666667
        %v910 = vmul.f32 %v878, 0.16666667
        %v911 = vmul.f32 %v879, 0.16666667
        %v912 = vmul.f32 %v880, 0.16666667
        %v913 = vmul.f32 %v881, 0.16666667
        %v914 = vmul.f32 %v882, 0.16666667
        %v915 = vmul.f32 %v883, 0.16666667
        %v916 = vmul.f32 %v884, 0.16666667
        %v917 = vmul.f32 %v885, 0.16666667
        %v918 = vmul.f32 %v886, 0.16666667
        %v919 = vmul.f32 %v887, 0.16666667
        %v920 = vmul.f32 %v888, 0.16666667
        %v921 = vmul.f32 %v889, 0.16666667
        %v922 = vmul.f32 %v890, 0.16666667
        %v923 = vmul.f32 %v891, 0.16666667
        %v924 = vmul.f32 %v892, 0.16666667
        %v925 = vmul.f32 %v893, 0.16666667
        %v926 = vpack.c.bf16 %v895, %v894
        %v927 = vpack.c.bf16 %v897, %v896
        %v928 = vpack.c.bf16 %v899, %v898
        %v929 = vpack.c.bf16 %v901, %v900
        %v930 = vpack.c.bf16 %v903, %v902
        %v931 = vpack.c.bf16 %v905, %v904
        %v932 = vpack.c.bf16 %v907, %v906
        %v933 = vpack.c.bf16 %v909, %v908
        %v934 = vpack.c.bf16 %v911, %v910
        %v935 = vpack.c.bf16 %v913, %v912
        %v936 = vpack.c.bf16 %v915, %v914
        %v937 = vpack.c.bf16 %v917, %v916
        %v938 = vpack.c.bf16 %v919, %v918
        %v939 = vpack.c.bf16 %v921, %v920
        %v940 = vpack.c.bf16 %v923, %v922
        %v941 = vpack.c.bf16 %v925, %v924
        %v942 = vld [vmem:[%s2] sm:$0xff]
        %v943 = vld [vmem:[%s2 + $0x8] sm:$0xff]
        %v944 = vld [vmem:[%s2 + $0x10] sm:$0xff]
        %v945 = vld [vmem:[%s2 + $0x18] sm:$0xff]
        %v946 = vld [vmem:[%s2 + $0x20] sm:$0xff]
        %v947 = vld [vmem:[%s2 + $0x28] sm:$0xff]
        %v948 = vld [vmem:[%s2 + $0x30] sm:$0xff]
        %v949 = vld [vmem:[%s2 + $0x38] sm:$0xff]
        %v950 = vld [vmem:[%s2 + $0x40] sm:$0xff]
        %v951 = vld [vmem:[%s2 + $0x48] sm:$0xff]
        %v952 = vld [vmem:[%s2 + $0x50] sm:$0xff]
        %v953 = vld [vmem:[%s2 + $0x58] sm:$0xff]
        %v954 = vld [vmem:[%s2 + $0x60] sm:$0xff]
        %v955 = vld [vmem:[%s2 + $0x68] sm:$0xff]
        %v956 = vld [vmem:[%s2 + $0x70] sm:$0xff]
        %v957 = vld [vmem:[%s2 + $0x78] sm:$0xff]
        %v958 = vld [vmem:[%s6 + $0x1] sm:$0x3]
        %v960 = vlaneseq
        %v961 = vshrl.u32 %v960, 7
        %v962 = vsub.s32 0, %v961
        %v963 = vrot.slane %v958, %v962
        %v964 = vlaneseq
        %v965 = vshrl.u32 %v964, 7
        %v966 = vsub.s32 1, %v965
        %v967 = vrot.slane %v958, %v966
        %v986 = vunpack.c.l.b16 %v942
        %v987 = vunpack.c.h.b16 %v942
        %v988 = vunpack.c.l.b16 %v943
        %v989 = vunpack.c.h.b16 %v943
        %v990 = vunpack.c.l.b16 %v944
        %v991 = vunpack.c.h.b16 %v944
        %v992 = vunpack.c.l.b16 %v945
        %v993 = vunpack.c.h.b16 %v945
        %v994 = vunpack.c.l.b16 %v946
        %v995 = vunpack.c.h.b16 %v946
        %v996 = vunpack.c.l.b16 %v947
        %v997 = vunpack.c.h.b16 %v947
        %v998 = vunpack.c.l.b16 %v948
        %v999 = vunpack.c.h.b16 %v948
        %v1000 = vunpack.c.l.b16 %v949
        %v1001 = vunpack.c.h.b16 %v949
        %v1002 = vunpack.c.l.b16 %v950
        %v1003 = vunpack.c.h.b16 %v950
        %v1004 = vunpack.c.l.b16 %v951
        %v1005 = vunpack.c.h.b16 %v951
        %v1006 = vunpack.c.l.b16 %v952
        %v1007 = vunpack.c.h.b16 %v952
        %v1008 = vunpack.c.l.b16 %v953
        %v1009 = vunpack.c.h.b16 %v953
        %v1010 = vunpack.c.l.b16 %v954
        %v1011 = vunpack.c.h.b16 %v954
        %v1012 = vunpack.c.l.b16 %v955
        %v1013 = vunpack.c.h.b16 %v955
        %v1014 = vunpack.c.l.b16 %v956
        %v1015 = vunpack.c.h.b16 %v956
        %v1016 = vunpack.c.l.b16 %v957
        %v1017 = vunpack.c.h.b16 %v957
        %v1018 = vpack.c.b16 %v988, %v986
        %v1019 = vpack.c.b16 %v989, %v987
        %v1020 = vpack.c.b16 %v992, %v990
        %v1021 = vpack.c.b16 %v993, %v991
        %v1022 = vpack.c.b16 %v996, %v994
        %v1023 = vpack.c.b16 %v997, %v995
        %v1024 = vpack.c.b16 %v1000, %v998
        %v1025 = vpack.c.b16 %v1001, %v999
        %v1026 = vpack.c.b16 %v1004, %v1002
        %v1027 = vpack.c.b16 %v1005, %v1003
        %v1028 = vpack.c.b16 %v1008, %v1006
        %v1029 = vpack.c.b16 %v1009, %v1007
        %v1030 = vpack.c.b16 %v1012, %v1010
        %v1031 = vpack.c.b16 %v1013, %v1011
        %v1032 = vpack.c.b16 %v1016, %v1014
        %v1033 = vpack.c.b16 %v1017, %v1015
        %1050 = vmatprep.subr.bf16.mxu0 %v1019
        %1051 = vmatpush1.bf16.msra.mxu0 %v1018
        %1052 = vmatprep.subr.bf16.mxu0 %v1021
        %1053 = vmatpush1.bf16.msra.mxu0 %v1020
        %1054 = vmatprep.subr.bf16.mxu0 %v1023
        %1055 = vmatpush1.bf16.msra.mxu0 %v1022
        %1056 = vmatprep.subr.bf16.mxu0 %v1025
        %1057 = vmatpush1.bf16.msra.mxu0 %v1024
        %1058 = vmatprep.subr.bf16.mxu0 %v1027
        %1059 = vmatpush1.bf16.msra.mxu0 %v1026
        %1060 = vmatprep.subr.bf16.mxu0 %v1029
        %1061 = vmatpush1.bf16.msra.mxu0 %v1028
        %1062 = vmatprep.subr.bf16.mxu0 %v1031
        %1063 = vmatpush1.bf16.msra.mxu0 %v1030
        %1064 = vmatprep.subr.bf16.mxu0 %v1033
        %1065 = vmatpush1.bf16.msra.mxu0 %v1032
        %1066 = vmatprep.subr.bf16.mxu0 0
        %1067 = vmatpush1.bf16.msra.mxu0 0
        %1068 = vmatprep.subr.bf16.mxu0 0
        %1069 = vmatpush1.bf16.msra.mxu0 0
        %1070 = vmatprep.subr.bf16.mxu0 0
        %1071 = vmatpush1.bf16.msra.mxu0 0
        %1072 = vmatprep.subr.bf16.mxu0 0
        %1073 = vmatpush1.bf16.msra.mxu0 0
        %1074 = vmatprep.subr.bf16.mxu0 0
        %1075 = vmatpush1.bf16.msra.mxu0 0
        %1076 = vmatprep.subr.bf16.mxu0 0
        %1077 = vmatpush1.bf16.msra.mxu0 0
        %1078 = vmatprep.subr.bf16.mxu0 0
        %1079 = vmatpush1.bf16.msra.mxu0 0
        %1080 = vmatprep.subr.bf16.mxu0 0
        %1081 = vmatpush1.bf16.msra.mxu0 0
        %1082 = vmatprep.mubr.bf16.mxu0 0
        %1083 = vmatmul.mubr.bf16.gmra.mrb[0].mxu0 %v926
        %v1084 = vpop.f32.mrb[0].mxu0
        %v1085 = vadd.f32 %v963, %v1084
        %v1086 = vpop.f32.mrb[0].mxu0
        %v1087 = vadd.f32 %v967, %v1086
        %v1088 = vpop.f32.mrb[0].mxu0
        %v1089 = vadd.f32 %v963, %v1088
        %v1090 = vpop.f32.mrb[0].mxu0
        %v1091 = vadd.f32 %v967, %v1090
        %1092 = vmatprep.mubr.bf16.mxu0 0
        %1093 = vmatmul.mubr.bf16.gmra.mrb[0].mxu0 %v927
        %v1094 = vpop.f32.mrb[0].mxu0
        %v1095 = vadd.f32 %v963, %v1094
        %v1096 = vpop.f32.mrb[0].mxu0
        %v1097 = vadd.f32 %v967, %v1096
        %v1098 = vpop.f32.mrb[0].mxu0
        %v1099 = vadd.f32 %v963, %v1098
        %v1100 = vpop.f32.mrb[0].mxu0
        %v1101 = vadd.f32 %v967, %v1100
        %1102 = vmatprep.mubr.bf16.mxu0 0
        %1103 = vmatmul.mubr.bf16.gmra.mrb[0].mxu0 %v928
        %v1104 = vpop.f32.mrb[0].mxu0
        %v1105 = vadd.f32 %v963, %v1104
        %v1106 = vpop.f32.mrb[0].mxu0
        %v1107 = vadd.f32 %v967, %v1106
        %v1108 = vpop.f32.mrb[0].mxu0
        %v1109 = vadd.f32 %v963, %v1108
        %v1110 = vpop.f32.mrb[0].mxu0
        %v1111 = vadd.f32 %v967, %v1110
        %1112 = vmatprep.mubr.bf16.mxu0 0
        %1113 = vmatmul.mubr.bf16.gmra.mrb[0].mxu0 %v929
        %v1114 = vpop.f32.mrb[0].mxu0
        %v1115 = vadd.f32 %v963, %v1114
        %v1116 = vpop.f32.mrb[0].mxu0
        %v1117 = vadd.f32 %v967, %v1116
        %v1118 = vpop.f32.mrb[0].mxu0
        %v1119 = vadd.f32 %v963, %v1118
        %v1120 = vpop.f32.mrb[0].mxu0
        %v1121 = vadd.f32 %v967, %v1120
        %1122 = vmatprep.mubr.bf16.mxu0 0
        %1123 = vmatmul.mubr.bf16.gmra.mrb[0].mxu0 %v930
        %v1124 = vpop.f32.mrb[0].mxu0
        %v1125 = vadd.f32 %v963, %v1124
        %v1126 = vpop.f32.mrb[0].mxu0
        %v1127 = vadd.f32 %v967, %v1126
        %v1128 = vpop.f32.mrb[0].mxu0
        %v1129 = vadd.f32 %v963, %v1128
        %v1130 = vpop.f32.mrb[0].mxu0
        %v1131 = vadd.f32 %v967, %v1130
        %1132 = vmatprep.mubr.bf16.mxu0 0
        %1133 = vmatmul.mubr.bf16.gmra.mrb[0].mxu0 %v931
        %v1134 = vpop.f32.mrb[0].mxu0
        %v1135 = vadd.f32 %v963, %v1134
        %v1136 = vpop.f32.mrb[0].mxu0
        %v1137 = vadd.f32 %v967, %v1136
        %v1138 = vpop.f32.mrb[0].mxu0
        %v1139 = vadd.f32 %v963, %v1138
        %v1140 = vpop.f32.mrb[0].mxu0
        %v1141 = vadd.f32 %v967, %v1140
        %1142 = vmatprep.mubr.bf16.mxu0 0
        %1143 = vmatmul.mubr.bf16.gmra.mrb[0].mxu0 %v932
        %v1144 = vpop.f32.mrb[0].mxu0
        %v1145 = vadd.f32 %v963, %v1144
        %v1146 = vpop.f32.mrb[0].mxu0
        %v1147 = vadd.f32 %v967, %v1146
        %v1148 = vpop.f32.mrb[0].mxu0
        %v1149 = vadd.f32 %v963, %v1148
        %v1150 = vpop.f32.mrb[0].mxu0
        %v1151 = vadd.f32 %v967, %v1150
        %1152 = vmatprep.mubr.bf16.mxu0 0
        %1153 = vmatmul.mubr.bf16.gmra.mrb[0].mxu0 %v933
        %v1154 = vpop.f32.mrb[0].mxu0
        %v1155 = vadd.f32 %v963, %v1154
        %v1156 = vpop.f32.mrb[0].mxu0
        %v1157 = vadd.f32 %v967, %v1156
        %v1158 = vpop.f32.mrb[0].mxu0
        %v1159 = vadd.f32 %v963, %v1158
        %v1160 = vpop.f32.mrb[0].mxu0
        %v1161 = vadd.f32 %v967, %v1160
        %1162 = vmatprep.mubr.bf16.mxu0 0
        %1163 = vmatmul.mubr.bf16.gmra.mrb[0].mxu0 %v934
        %v1164 = vpop.f32.mrb[0].mxu0
        %v1165 = vadd.f32 %v963, %v1164
        %v1166 = vpop.f32.mrb[0].mxu0
        %v1167 = vadd.f32 %v967, %v1166
        %v1168 = vpop.f32.mrb[0].mxu0
        %v1169 = vadd.f32 %v963, %v1168
        %v1170 = vpop.f32.mrb[0].mxu0
        %v1171 = vadd.f32 %v967, %v1170
        %1172 = vmatprep.mubr.bf16.mxu0 0
        %1173 = vmatmul.mubr.bf16.gmra.mrb[0].mxu0 %v935
        %v1174 = vpop.f32.mrb[0].mxu0
        %v1175 = vadd.f32 %v963, %v1174
        %v1176 = vpop.f32.mrb[0].mxu0
        %v1177 = vadd.f32 %v967, %v1176
        %v1178 = vpop.f32.mrb[0].mxu0
        %v1179 = vadd.f32 %v963, %v1178
        %v1180 = vpop.f32.mrb[0].mxu0
        %v1181 = vadd.f32 %v967, %v1180
        %1182 = vmatprep.mubr.bf16.mxu0 0
        %1183 = vmatmul.mubr.bf16.gmra.mrb[0].mxu0 %v936
        %v1184 = vpop.f32.mrb[0].mxu0
        %v1185 = vadd.f32 %v963, %v1184
        %v1186 = vpop.f32.mrb[0].mxu0
        %v1187 = vadd.f32 %v967, %v1186
        %v1188 = vpop.f32.mrb[0].mxu0
        %v1189 = vadd.f32 %v963, %v1188
        %v1190 = vpop.f32.mrb[0].mxu0
        %v1191 = vadd.f32 %v967, %v1190
        %1192 = vmatprep.mubr.bf16.mxu0 0
        %1193 = vmatmul.mubr.bf16.gmra.mrb[0].mxu0 %v937
        %v1194 = vpop.f32.mrb[0].mxu0
        %v1195 = vadd.f32 %v963, %v1194
        %v1196 = vpop.f32.mrb[0].mxu0
        %v1197 = vadd.f32 %v967, %v1196
        %v1198 = vpop.f32.mrb[0].mxu0
        %v1199 = vadd.f32 %v963, %v1198
        %v1200 = vpop.f32.mrb[0].mxu0
        %v1201 = vadd.f32 %v967, %v1200
        %1202 = vmatprep.mubr.bf16.mxu0 0
        %1203 = vmatmul.mubr.bf16.gmra.mrb[0].mxu0 %v938
        %v1204 = vpop.f32.mrb[0].mxu0
        %v1205 = vadd.f32 %v963, %v1204
        %v1206 = vpop.f32.mrb[0].mxu0
        %v1207 = vadd.f32 %v967, %v1206
        %v1208 = vpop.f32.mrb[0].mxu0
        %v1209 = vadd.f32 %v963, %v1208
        %v1210 = vpop.f32.mrb[0].mxu0
        %v1211 = vadd.f32 %v967, %v1210
        %1212 = vmatprep.mubr.bf16.mxu0 0
        %1213 = vmatmul.mubr.bf16.gmra.mrb[0].mxu0 %v939
        %v1214 = vpop.f32.mrb[0].mxu0
        %v1215 = vadd.f32 %v963, %v1214
        %v1216 = vpop.f32.mrb[0].mxu0
        %v1217 = vadd.f32 %v967, %v1216
        %v1218 = vpop.f32.mrb[0].mxu0
        %v1219 = vadd.f32 %v963, %v1218
        %v1220 = vpop.f32.mrb[0].mxu0
        %v1221 = vadd.f32 %v967, %v1220
        %1222 = vmatprep.mubr.bf16.mxu0 0
        %1223 = vmatmul.mubr.bf16.gmra.mrb[0].mxu0 %v940
        %v1224 = vpop.f32.mrb[0].mxu0
        %v1225 = vadd.f32 %v963, %v1224
        %v1226 = vpop.f32.mrb[0].mxu0
        %v1227 = vadd.f32 %v967, %v1226
        %v1228 = vpop.f32.mrb[0].mxu0
        %v1229 = vadd.f32 %v963, %v1228
        %v1230 = vpop.f32.mrb[0].mxu0
        %v1231 = vadd.f32 %v967, %v1230
        %1232 = vmatprep.mubr.bf16.mxu0 0
        %1233 = vmatmul.mubr.bf16.gmra.mrb[0].mxu0 %v941
        %v1234 = vpop.f32.mrb[0].mxu0
        %v1235 = vadd.f32 %v963, %v1234
        %v1236 = vpop.f32.mrb[0].mxu0
        %v1237 = vadd.f32 %v967, %v1236
        %v1238 = vpop.f32.mrb[0].mxu0
        %v1239 = vadd.f32 %v963, %v1238
        %v1240 = vpop.f32.mrb[0].mxu0
        %v1241 = vadd.f32 %v967, %v1240
        %1242 = vdwg.mxu0
        %v1243 = vmax.f32 %v1085, 0.0
        %v1244 = vmax.f32 %v1087, 0.0
        %v1245 = vmax.f32 %v1089, 0.0
        %v1246 = vmax.f32 %v1091, 0.0
        %v1247 = vmax.f32 %v1095, 0.0
        %v1248 = vmax.f32 %v1097, 0.0
        %v1249 = vmax.f32 %v1099, 0.0
        %v1250 = vmax.f32 %v1101, 0.0
        %v1251 = vmax.f32 %v1105, 0.0
        %v1252 = vmax.f32 %v1107, 0.0
        %v1253 = vmax.f32 %v1109, 0.0
        %v1254 = vmax.f32 %v1111, 0.0
        %v1255 = vmax.f32 %v1115, 0.0
        %v1256 = vmax.f32 %v1117, 0.0
        %v1257 = vmax.f32 %v1119, 0.0
        %v1258 = vmax.f32 %v1121, 0.0
        %v1259 = vmax.f32 %v1125, 0.0
        %v1260 = vmax.f32 %v1127, 0.0
        %v1261 = vmax.f32 %v1129, 0.0
        %v1262 = vmax.f32 %v1131, 0.0
        %v1263 = vmax.f32 %v1135, 0.0
        %v1264 = vmax.f32 %v1137, 0.0
        %v1265 = vmax.f32 %v1139, 0.0
        %v1266 = vmax.f32 %v1141, 0.0
        %v1267 = vmax.f32 %v1145, 0.0
        %v1268 = vmax.f32 %v1147, 0.0
        %v1269 = vmax.f32 %v1149, 0.0
        %v1270 = vmax.f32 %v1151, 0.0
        %v1271 = vmax.f32 %v1155, 0.0
        %v1272 = vmax.f32 %v1157, 0.0
        %v1273 = vmax.f32 %v1159, 0.0
        %v1274 = vmax.f32 %v1161, 0.0
        %v1275 = vmax.f32 %v1165, 0.0
        %v1276 = vmax.f32 %v1167, 0.0
        %v1277 = vmax.f32 %v1169, 0.0
        %v1278 = vmax.f32 %v1171, 0.0
        %v1279 = vmax.f32 %v1175, 0.0
        %v1280 = vmax.f32 %v1177, 0.0
        %v1281 = vmax.f32 %v1179, 0.0
        %v1282 = vmax.f32 %v1181, 0.0
        %v1283 = vmax.f32 %v1185, 0.0
        %v1284 = vmax.f32 %v1187, 0.0
        %v1285 = vmax.f32 %v1189, 0.0
        %v1286 = vmax.f32 %v1191, 0.0
        %v1287 = vmax.f32 %v1195, 0.0
        %v1288 = vmax.f32 %v1197, 0.0
        %v1289 = vmax.f32 %v1199, 0.0
        %v1290 = vmax.f32 %v1201, 0.0
        %v1291 = vmax.f32 %v1205, 0.0
        %v1292 = vmax.f32 %v1207, 0.0
        %v1293 = vmax.f32 %v1209, 0.0
        %v1294 = vmax.f32 %v1211, 0.0
        %v1295 = vmax.f32 %v1215, 0.0
        %v1296 = vmax.f32 %v1217, 0.0
        %v1297 = vmax.f32 %v1219, 0.0
        %v1298 = vmax.f32 %v1221, 0.0
        %v1299 = vmax.f32 %v1225, 0.0
        %v1300 = vmax.f32 %v1227, 0.0
        %v1301 = vmax.f32 %v1229, 0.0
        %v1302 = vmax.f32 %v1231, 0.0
        %v1303 = vmax.f32 %v1235, 0.0
        %v1304 = vmax.f32 %v1237, 0.0
        %v1305 = vmax.f32 %v1239, 0.0
        %v1306 = vmax.f32 %v1241, 0.0
        %vm1372 = vcmask 1040384
        %v1373 = vrot.slane 0.0, 7
        %v1374 = vsel %vm1372, %v1373, %v1373
        %v1375 = vrot.slane %v1243, 7
        %v1376 = vrot.slane %v1244, 7
        %v1377 = vrot.slane %v1245, 7
        %v1378 = vsel %vm1372, %v1375, %v1377
        %v1379 = vrot.slane %v1246, 7
        %v1380 = vsel %vm1372, %v1376, %v1379
        %v1381 = vrot.slane %v1247, 7
        %v1382 = vrot.slane %v1248, 7
        %v1383 = vrot.slane %v1249, 7
        %v1384 = vsel %vm1372, %v1381, %v1383
        %v1385 = vrot.slane %v1250, 7
        %v1386 = vsel %vm1372, %v1382, %v1385
        %v1387 = vrot.slane %v1251, 7
        %v1388 = vrot.slane %v1252, 7
        %v1389 = vrot.slane %v1253, 7
        %v1390 = vsel %vm1372, %v1387, %v1389
        %v1391 = vrot.slane %v1254, 7
        %v1392 = vsel %vm1372, %v1388, %v1391
        %v1393 = vrot.slane %v1255, 7
        %v1394 = vrot.slane %v1256, 7
        %v1395 = vrot.slane %v1257, 7
        %v1396 = vsel %vm1372, %v1393, %v1395
        %v1397 = vrot.slane %v1258, 7
        %v1398 = vsel %vm1372, %v1394, %v1397
        %v1399 = vrot.slane %v1259, 7
        %v1400 = vrot.slane %v1260, 7
        %v1401 = vrot.slane %v1261, 7
        %v1402 = vsel %vm1372, %v1399, %v1401
        %v1403 = vrot.slane %v1262, 7
        %v1404 = vsel %vm1372, %v1400, %v1403
        %v1405 = vrot.slane %v1263, 7
        %v1406 = vrot.slane %v1264, 7
        %v1407 = vrot.slane %v1265, 7
        %v1408 = vsel %vm1372, %v1405, %v1407
        %v1409 = vrot.slane %v1266, 7
        %v1410 = vsel %vm1372, %v1406, %v1409
        %v1411 = vrot.slane %v1267, 7
        %v1412 = vrot.slane %v1268, 7
        %v1413 = vrot.slane %v1269, 7
        %v1414 = vsel %vm1372, %v1411, %v1413
        %v1415 = vrot.slane %v1270, 7
        %v1416 = vsel %vm1372, %v1412, %v1415
        %v1417 = vrot.slane %v1271, 7
        %v1418 = vrot.slane %v1272, 7
        %v1419 = vrot.slane %v1273, 7
        %v1420 = vsel %vm1372, %v1417, %v1419
        %v1421 = vrot.slane %v1274, 7
        %v1422 = vsel %vm1372, %v1418, %v1421
        %v1423 = vrot.slane %v1275, 7
        %v1424 = vrot.slane %v1276, 7
        %v1425 = vrot.slane %v1277, 7
        %v1426 = vsel %vm1372, %v1423, %v1425
        %v1427 = vrot.slane %v1278, 7
        %v1428 = vsel %vm1372, %v1424, %v1427
        %v1429 = vrot.slane %v1279, 7
        %v1430 = vrot.slane %v1280, 7
        %v1431 = vrot.slane %v1281, 7
        %v1432 = vsel %vm1372, %v1429, %v1431
        %v1433 = vrot.slane %v1282, 7
        %v1434 = vsel %vm1372, %v1430, %v1433
        %v1435 = vrot.slane %v1283, 7
        %v1436 = vrot.slane %v1284, 7
        %v1437 = vrot.slane %v1285, 7
        %v1438 = vsel %vm1372, %v1435, %v1437
        %v1439 = vrot.slane %v1286, 7
        %v1440 = vsel %vm1372, %v1436, %v1439
        %v1441 = vrot.slane %v1287, 7
        %v1442 = vrot.slane %v1288, 7
        %v1443 = vrot.slane %v1289, 7
        %v1444 = vsel %vm1372, %v1441, %v1443
        %v1445 = vrot.slane %v1290, 7
        %v1446 = vsel %vm1372, %v1442, %v1445
        %v1447 = vrot.slane %v1291, 7
        %v1448 = vrot.slane %v1292, 7
        %v1449 = vrot.slane %v1293, 7
        %v1450 = vsel %vm1372, %v1447, %v1449
        %v1451 = vrot.slane %v1294, 7
        %v1452 = vsel %vm1372, %v1448, %v1451
        %v1453 = vrot.slane %v1295, 7
        %v1454 = vrot.slane %v1296, 7
        %v1455 = vrot.slane %v1297, 7
        %v1456 = vsel %vm1372, %v1453, %v1455
        %v1457 = vrot.slane %v1298, 7
        %v1458 = vsel %vm1372, %v1454, %v1457
        %v1459 = vrot.slane %v1299, 7
        %v1460 = vrot.slane %v1300, 7
        %v1461 = vrot.slane %v1301, 7
        %v1462 = vsel %vm1372, %v1459, %v1461
        %v1463 = vrot.slane %v1302, 7
        %v1464 = vsel %vm1372, %v1460, %v1463
        %v1465 = vrot.slane %v1303, 7
        %v1466 = vrot.slane %v1304, 7
        %v1467 = vrot.slane %v1305, 7
        %v1468 = vsel %vm1372, %v1465, %v1467
        %v1469 = vrot.slane %v1306, 7
        %v1470 = vsel %vm1372, %v1466, %v1469
        %v1537 = vsel %vm1372, 0.0, %v1373
        %v1538 = vsel %vm1372, 0.0, %v1375
        %v1539 = vsel %vm1372, 0.0, %v1376
        %v1540 = vsel %vm1372, 0.0, %v1381
        %v1541 = vsel %vm1372, 0.0, %v1382
        %v1542 = vsel %vm1372, 0.0, %v1387
        %v1543 = vsel %vm1372, 0.0, %v1388
        %v1544 = vsel %vm1372, 0.0, %v1393
        %v1545 = vsel %vm1372, 0.0, %v1394
        %v1546 = vsel %vm1372, 0.0, %v1399
        %v1547 = vsel %vm1372, 0.0, %v1400
        %v1548 = vsel %vm1372, 0.0, %v1405
        %v1549 = vsel %vm1372, 0.0, %v1406
        %v1550 = vsel %vm1372, 0.0, %v1411
        %v1551 = vsel %vm1372, 0.0, %v1412
        %v1552 = vsel %vm1372, 0.0, %v1417
        %v1553 = vsel %vm1372, 0.0, %v1418
        %v1554 = vsel %vm1372, 0.0, %v1423
        %v1555 = vsel %vm1372, 0.0, %v1424
        %v1556 = vsel %vm1372, 0.0, %v1429
        %v1557 = vsel %vm1372, 0.0, %v1430
        %v1558 = vsel %vm1372, 0.0, %v1435
        %v1559 = vsel %vm1372, 0.0, %v1436
        %v1560 = vsel %vm1372, 0.0, %v1441
        %v1561 = vsel %vm1372, 0.0, %v1442
        %v1562 = vsel %vm1372, 0.0, %v1447
        %v1563 = vsel %vm1372, 0.0, %v1448
        %v1564 = vsel %vm1372, 0.0, %v1453
        %v1565 = vsel %vm1372, 0.0, %v1454
        %v1566 = vsel %vm1372, 0.0, %v1459
        %v1567 = vsel %vm1372, 0.0, %v1460
        %v1568 = vsel %vm1372, 0.0, %v1465
        %v1569 = vsel %vm1372, 0.0, %v1466
        %vm1570 = vcmask 1046528
        %v1571 = vrot.slane 0.0, 1
        %v1572 = vsel %vm1570, %v1571, %v1571
        %v1573 = vrot.slane %v1243, 1
        %v1574 = vrot.slane %v1245, 1
        %v1575 = vsel %vm1570, %v1573, %v1574
        %v1576 = vrot.slane %v1244, 1
        %v1577 = vrot.slane %v1246, 1
        %v1578 = vsel %vm1570, %v1576, %v1577
        %v1579 = vrot.slane %v1247, 1
        %v1580 = vrot.slane %v1249, 1
        %v1581 = vsel %vm1570, %v1579, %v1580
        %v1582 = vrot.slane %v1248, 1
        %v1583 = vrot.slane %v1250, 1
        %v1584 = vsel %vm1570, %v1582, %v1583
        %v1585 = vrot.slane %v1251, 1
        %v1586 = vrot.slane %v1253, 1
        %v1587 = vsel %vm1570, %v1585, %v1586
        %v1588 = vrot.slane %v1252, 1
        %v1589 = vrot.slane %v1254, 1
        %v1590 = vsel %vm1570, %v1588, %v1589
        %v1591 = vrot.slane %v1255, 1
        %v1592 = vrot.slane %v1257, 1
        %v1593 = vsel %vm1570, %v1591, %v1592
        %v1594 = vrot.slane %v1256, 1
        %v1595 = vrot.slane %v1258, 1
        %v1596 = vsel %vm1570, %v1594, %v1595
        %v1597 = vrot.slane %v1259, 1
        %v1598 = vrot.slane %v1261, 1
        %v1599 = vsel %vm1570, %v1597, %v1598
        %v1600 = vrot.slane %v1260, 1
        %v1601 = vrot.slane %v1262, 1
        %v1602 = vsel %vm1570, %v1600, %v1601
        %v1603 = vrot.slane %v1263, 1
        %v1604 = vrot.slane %v1265, 1
        %v1605 = vsel %vm1570, %v1603, %v1604
        %v1606 = vrot.slane %v1264, 1
        %v1607 = vrot.slane %v1266, 1
        %v1608 = vsel %vm1570, %v1606, %v1607
        %v1609 = vrot.slane %v1267, 1
        %v1610 = vrot.slane %v1269, 1
        %v1611 = vsel %vm1570, %v1609, %v1610
        %v1612 = vrot.slane %v1268, 1
        %v1613 = vrot.slane %v1270, 1
        %v1614 = vsel %vm1570, %v1612, %v1613
        %v1615 = vrot.slane %v1271, 1
        %v1616 = vrot.slane %v1273, 1
        %v1617 = vsel %vm1570, %v1615, %v1616
        %v1618 = vrot.slane %v1272, 1
        %v1619 = vrot.slane %v1274, 1
        %v1620 = vsel %vm1570, %v1618, %v1619
        %v1621 = vrot.slane %v1275, 1
        %v1622 = vrot.slane %v1277, 1
        %v1623 = vsel %vm1570, %v1621, %v1622
        %v1624 = vrot.slane %v1276, 1
        %v1625 = vrot.slane %v1278, 1
        %v1626 = vsel %vm1570, %v1624, %v1625
        %v1627 = vrot.slane %v1279, 1
        %v1628 = vrot.slane %v1281, 1
        %v1629 = vsel %vm1570, %v1627, %v1628
        %v1630 = vrot.slane %v1280, 1
        %v1631 = vrot.slane %v1282, 1
        %v1632 = vsel %vm1570, %v1630, %v1631
        %v1633 = vrot.slane %v1283, 1
        %v1634 = vrot.slane %v1285, 1
        %v1635 = vsel %vm1570, %v1633, %v1634
        %v1636 = vrot.slane %v1284, 1
        %v1637 = vrot.slane %v1286, 1
        %v1638 = vsel %vm1570, %v1636, %v1637
        %v1639 = vrot.slane %v1287, 1
        %v1640 = vrot.slane %v1289, 1
        %v1641 = vsel %vm1570, %v1639, %v1640
        %v1642 = vrot.slane %v1288, 1
        %v1643 = vrot.slane %v1290, 1
        %v1644 = vsel %vm1570, %v1642, %v1643
        %v1645 = vrot.slane %v1291, 1
        %v1646 = vrot.slane %v1293, 1
        %v1647 = vsel %vm1570, %v1645, %v1646
        %v1648 = vrot.slane %v1292, 1
        %v1649 = vrot.slane %v1294, 1
        %v1650 = vsel %vm1570, %v1648, %v1649
        %v1651 = vrot.slane %v1295, 1
        %v1652 = vrot.slane %v1297, 1
        %v1653 = vsel %vm1570, %v1651, %v1652
        %v1654 = vrot.slane %v1296, 1
        %v1655 = vrot.slane %v1298, 1
        %v1656 = vsel %vm1570, %v1654, %v1655
        %v1657 = vrot.slane %v1299, 1
        %v1658 = vrot.slane %v1301, 1
        %v1659 = vsel %vm1570, %v1657, %v1658
        %v1660 = vrot.slane %v1300, 1
        %v1661 = vrot.slane %v1302, 1
        %v1662 = vsel %vm1570, %v1660, %v1661
        %v1663 = vrot.slane %v1303, 1
        %v1664 = vrot.slane %v1305, 1
        %v1665 = vsel %vm1570, %v1663, %v1664
        %v1666 = vrot.slane %v1304, 1
        %v1667 = vrot.slane %v1306, 1
        %v1668 = vsel %vm1570, %v1666, %v1667
        %v1735 = vsel %vm1570, %v1571, 0.0
        %v1736 = vsel %vm1570, %v1574, 0.0
        %v1737 = vsel %vm1570, %v1577, 0.0
        %v1738 = vsel %vm1570, %v1580, 0.0
        %v1739 = vsel %vm1570, %v1583, 0.0
        %v1740 = vsel %vm1570, %v1586, 0.0
        %v1741 = vsel %vm1570, %v1589, 0.0
        %v1742 = vsel %vm1570, %v1592, 0.0
        %v1743 = vsel %vm1570, %v1595, 0.0
        %v1744 = vsel %vm1570, %v1598, 0.0
        %v1745 = vsel %vm1570, %v1601, 0.0
        %v1746 = vsel %vm1570, %v1604, 0.0
        %v1747 = vsel %vm1570, %v1607, 0.0
        %v1748 = vsel %vm1570, %v1610, 0.0
        %v1749 = vsel %vm1570, %v1613, 0.0
        %v1750 = vsel %vm1570, %v1616, 0.0
        %v1751 = vsel %vm1570, %v1619, 0.0
        %v1752 = vsel %vm1570, %v1622, 0.0
        %v1753 = vsel %vm1570, %v1625, 0.0
        %v1754 = vsel %vm1570, %v1628, 0.0
        %v1755 = vsel %vm1570, %v1631, 0.0
        %v1756 = vsel %vm1570, %v1634, 0.0
        %v1757 = vsel %vm1570, %v1637, 0.0
        %v1758 = vsel %vm1570, %v1640, 0.0
        %v1759 = vsel %vm1570, %v1643, 0.0
        %v1760 = vsel %vm1570, %v1646, 0.0
        %v1761 = vsel %vm1570, %v1649, 0.0
        %v1762 = vsel %vm1570, %v1652, 0.0
        %v1763 = vsel %vm1570, %v1655, 0.0
        %v1764 = vsel %vm1570, %v1658, 0.0
        %v1765 = vsel %vm1570, %v1661, 0.0
        %v1766 = vsel %vm1570, %v1664, 0.0
        %v1767 = vsel %vm1570, %v1667, 0.0
        %v1768 = vld [vmem:[%s3] ss:$8 sm:$0x3]
        %v1770 = vlaneseq
        %v1771 = vshrl.u32 %v1770, 7
        %v1772 = vsub.s32 0, %v1771
        %v1773 = vrot.slane %v1768, %v1772
        %v1774 = vlaneseq
        %v1775 = vshrl.u32 %v1774, 7
        %v1776 = vsub.s32 1, %v1775
        %v1777 = vrot.slane %v1768, %v1776
        %v1780 = vmul.f32 %v1537, %v1773
        %v1781 = vmul.f32 %v1537, %v1777
        %v1782 = vmul.f32 %v1374, %v1773
        %v1783 = vmul.f32 %v1374, %v1777
        %v1784 = vmul.f32 %v1538, %v1773
        %v1785 = vmul.f32 %v1539, %v1777
        %v1786 = vmul.f32 %v1378, %v1773
        %v1787 = vmul.f32 %v1380, %v1777
        %v1788 = vmul.f32 %v1540, %v1773
        %v1789 = vmul.f32 %v1541, %v1777
        %v1790 = vmul.f32 %v1384, %v1773
        %v1791 = vmul.f32 %v1386, %v1777
        %v1792 = vmul.f32 %v1542, %v1773
        %v1793 = vmul.f32 %v1543, %v1777
        %v1794 = vmul.f32 %v1390, %v1773
        %v1795 = vmul.f32 %v1392, %v1777
        %v1796 = vmul.f32 %v1544, %v1773
        %v1797 = vmul.f32 %v1545, %v1777
        %v1798 = vmul.f32 %v1396, %v1773
        %v1799 = vmul.f32 %v1398, %v1777
        %v1800 = vmul.f32 %v1546, %v1773
        %v1801 = vmul.f32 %v1547, %v1777
        %v1802 = vmul.f32 %v1402, %v1773
        %v1803 = vmul.f32 %v1404, %v1777
        %v1804 = vmul.f32 %v1548, %v1773
        %v1805 = vmul.f32 %v1549, %v1777
        %v1806 = vmul.f32 %v1408, %v1773
        %v1807 = vmul.f32 %v1410, %v1777
        %v1808 = vmul.f32 %v1550, %v1773
        %v1809 = vmul.f32 %v1551, %v1777
        %v1810 = vmul.f32 %v1414, %v1773
        %v1811 = vmul.f32 %v1416, %v1777
        %v1812 = vmul.f32 %v1552, %v1773
        %v1813 = vmul.f32 %v1553, %v1777
        %v1814 = vmul.f32 %v1420, %v1773
        %v1815 = vmul.f32 %v1422, %v1777
        %v1816 = vmul.f32 %v1554, %v1773
        %v1817 = vmul.f32 %v1555, %v1777
        %v1818 = vmul.f32 %v1426, %v1773
        %v1819 = vmul.f32 %v1428, %v1777
        %v1820 = vmul.f32 %v1556, %v1773
        %v1821 = vmul.f32 %v1557, %v1777
        %v1822 = vmul.f32 %v1432, %v1773
        %v1823 = vmul.f32 %v1434, %v1777
        %v1824 = vmul.f32 %v1558, %v1773
        %v1825 = vmul.f32 %v1559, %v1777
        %v1826 = vmul.f32 %v1438, %v1773
        %v1827 = vmul.f32 %v1440, %v1777
        %v1828 = vmul.f32 %v1560, %v1773
        %v1829 = vmul.f32 %v1561, %v1777
        %v1830 = vmul.f32 %v1444, %v1773
        %v1831 = vmul.f32 %v1446, %v1777
        %v1832 = vmul.f32 %v1562, %v1773
        %v1833 = vmul.f32 %v1563, %v1777
        %v1834 = vmul.f32 %v1450, %v1773
        %v1835 = vmul.f32 %v1452, %v1777
        %v1836 = vmul.f32 %v1564, %v1773
        %v1837 = vmul.f32 %v1565, %v1777
        %v1838 = vmul.f32 %v1456, %v1773
        %v1839 = vmul.f32 %v1458, %v1777
        %v1840 = vmul.f32 %v1566, %v1773
        %v1841 = vmul.f32 %v1567, %v1777
        %v1842 = vmul.f32 %v1462, %v1773
        %v1843 = vmul.f32 %v1464, %v1777
        %v1844 = vadd.f32 %v1780, 0.0
        %v1845 = vadd.f32 %v1781, 0.0
        %v1846 = vadd.f32 %v1782, 0.0
        %v1847 = vadd.f32 %v1783, 0.0
        %v1848 = vadd.f32 %v1784, 0.0
        %v1849 = vadd.f32 %v1785, 0.0
        %v1850 = vadd.f32 %v1786, 0.0
        %v1851 = vadd.f32 %v1787, 0.0
        %v1852 = vadd.f32 %v1788, 0.0
        %v1853 = vadd.f32 %v1789, 0.0
        %v1854 = vadd.f32 %v1790, 0.0
        %v1855 = vadd.f32 %v1791, 0.0
        %v1856 = vadd.f32 %v1792, 0.0
        %v1857 = vadd.f32 %v1793, 0.0
        %v1858 = vadd.f32 %v1794, 0.0
        %v1859 = vadd.f32 %v1795, 0.0
        %v1860 = vadd.f32 %v1796, 0.0
        %v1861 = vadd.f32 %v1797, 0.0
        %v1862 = vadd.f32 %v1798, 0.0
        %v1863 = vadd.f32 %v1799, 0.0
        %v1864 = vadd.f32 %v1800, 0.0
        %v1865 = vadd.f32 %v1801, 0.0
        %v1866 = vadd.f32 %v1802, 0.0
        %v1867 = vadd.f32 %v1803, 0.0
        %v1868 = vadd.f32 %v1804, 0.0
        %v1869 = vadd.f32 %v1805, 0.0
        %v1870 = vadd.f32 %v1806, 0.0
        %v1871 = vadd.f32 %v1807, 0.0
        %v1872 = vadd.f32 %v1808, 0.0
        %v1873 = vadd.f32 %v1809, 0.0
        %v1874 = vadd.f32 %v1810, 0.0
        %v1875 = vadd.f32 %v1811, 0.0
        %v1876 = vadd.f32 %v1812, 0.0
        %v1877 = vadd.f32 %v1813, 0.0
        %v1878 = vadd.f32 %v1814, 0.0
        %v1879 = vadd.f32 %v1815, 0.0
        %v1880 = vadd.f32 %v1816, 0.0
        %v1881 = vadd.f32 %v1817, 0.0
        %v1882 = vadd.f32 %v1818, 0.0
        %v1883 = vadd.f32 %v1819, 0.0
        %v1884 = vadd.f32 %v1820, 0.0
        %v1885 = vadd.f32 %v1821, 0.0
        %v1886 = vadd.f32 %v1822, 0.0
        %v1887 = vadd.f32 %v1823, 0.0
        %v1888 = vadd.f32 %v1824, 0.0
        %v1889 = vadd.f32 %v1825, 0.0
        %v1890 = vadd.f32 %v1826, 0.0
        %v1891 = vadd.f32 %v1827, 0.0
        %v1892 = vadd.f32 %v1828, 0.0
        %v1893 = vadd.f32 %v1829, 0.0
        %v1894 = vadd.f32 %v1830, 0.0
        %v1895 = vadd.f32 %v1831, 0.0
        %v1896 = vadd.f32 %v1832, 0.0
        %v1897 = vadd.f32 %v1833, 0.0
        %v1898 = vadd.f32 %v1834, 0.0
        %v1899 = vadd.f32 %v1835, 0.0
        %v1900 = vadd.f32 %v1836, 0.0
        %v1901 = vadd.f32 %v1837, 0.0
        %v1902 = vadd.f32 %v1838, 0.0
        %v1903 = vadd.f32 %v1839, 0.0
        %v1904 = vadd.f32 %v1840, 0.0
        %v1905 = vadd.f32 %v1841, 0.0
        %v1906 = vadd.f32 %v1842, 0.0
        %v1907 = vadd.f32 %v1843, 0.0
        %s1908 = scalar_lea.vmem %s3, 1
        %v1909 = vld [vmem:[%s1908] ss:$8 sm:$0x3]
        %v1911 = vlaneseq
        %v1912 = vshrl.u32 %v1911, 7
        %v1913 = vsub.s32 0, %v1912
        %v1914 = vrot.slane %v1909, %v1913
        %v1915 = vlaneseq
        %v1916 = vshrl.u32 %v1915, 7
        %v1917 = vsub.s32 1, %v1916
        %v1918 = vrot.slane %v1909, %v1917
        %v1921 = vmul.f32 %v1914, 0.0
        %v1922 = vmul.f32 %v1918, 0.0
        %v1923 = vmul.f32 %v1243, %v1914
        %v1924 = vmul.f32 %v1244, %v1918
        %v1925 = vmul.f32 %v1245, %v1914
        %v1926 = vmul.f32 %v1246, %v1918
        %v1927 = vmul.f32 %v1247, %v1914
        %v1928 = vmul.f32 %v1248, %v1918
        %v1929 = vmul.f32 %v1249, %v1914
        %v1930 = vmul.f32 %v1250, %v1918
        %v1931 = vmul.f32 %v1251, %v1914
        %v1932 = vmul.f32 %v1252, %v1918
        %v1933 = vmul.f32 %v1253, %v1914
        %v1934 = vmul.f32 %v1254, %v1918
        %v1935 = vmul.f32 %v1255, %v1914
        %v1936 = vmul.f32 %v1256, %v1918
        %v1937 = vmul.f32 %v1257, %v1914
        %v1938 = vmul.f32 %v1258, %v1918
        %v1939 = vmul.f32 %v1259, %v1914
        %v1940 = vmul.f32 %v1260, %v1918
        %v1941 = vmul.f32 %v1261, %v1914
        %v1942 = vmul.f32 %v1262, %v1918
        %v1943 = vmul.f32 %v1263, %v1914
        %v1944 = vmul.f32 %v1264, %v1918
        %v1945 = vmul.f32 %v1265, %v1914
        %v1946 = vmul.f32 %v1266, %v1918
        %v1947 = vmul.f32 %v1267, %v1914
        %v1948 = vmul.f32 %v1268, %v1918
        %v1949 = vmul.f32 %v1269, %v1914
        %v1950 = vmul.f32 %v1270, %v1918
        %v1951 = vmul.f32 %v1271, %v1914
        %v1952 = vmul.f32 %v1272, %v1918
        %v1953 = vmul.f32 %v1273, %v1914
        %v1954 = vmul.f32 %v1274, %v1918
        %v1955 = vmul.f32 %v1275, %v1914
        %v1956 = vmul.f32 %v1276, %v1918
        %v1957 = vmul.f32 %v1277, %v1914
        %v1958 = vmul.f32 %v1278, %v1918
        %v1959 = vmul.f32 %v1279, %v1914
        %v1960 = vmul.f32 %v1280, %v1918
        %v1961 = vmul.f32 %v1281, %v1914
        %v1962 = vmul.f32 %v1282, %v1918
        %v1963 = vmul.f32 %v1283, %v1914
        %v1964 = vmul.f32 %v1284, %v1918
        %v1965 = vmul.f32 %v1285, %v1914
        %v1966 = vmul.f32 %v1286, %v1918
        %v1967 = vmul.f32 %v1287, %v1914
        %v1968 = vmul.f32 %v1288, %v1918
        %v1969 = vmul.f32 %v1289, %v1914
        %v1970 = vmul.f32 %v1290, %v1918
        %v1971 = vmul.f32 %v1291, %v1914
        %v1972 = vmul.f32 %v1292, %v1918
        %v1973 = vmul.f32 %v1293, %v1914
        %v1974 = vmul.f32 %v1294, %v1918
        %v1975 = vmul.f32 %v1295, %v1914
        %v1976 = vmul.f32 %v1296, %v1918
        %v1977 = vmul.f32 %v1297, %v1914
        %v1978 = vmul.f32 %v1298, %v1918
        %v1979 = vmul.f32 %v1299, %v1914
        %v1980 = vmul.f32 %v1300, %v1918
        %v1981 = vmul.f32 %v1301, %v1914
        %v1982 = vmul.f32 %v1302, %v1918
        %v1983 = vadd.f32 %v1844, %v1921
        %v1984 = vadd.f32 %v1845, %v1922
        %v1985 = vadd.f32 %v1846, %v1921
        %v1986 = vadd.f32 %v1847, %v1922
        %v1987 = vadd.f32 %v1848, %v1923
        %v1988 = vadd.f32 %v1849, %v1924
        %v1989 = vadd.f32 %v1850, %v1925
        %v1990 = vadd.f32 %v1851, %v1926
        %v1991 = vadd.f32 %v1852, %v1927
        %v1992 = vadd.f32 %v1853, %v1928
        %v1993 = vadd.f32 %v1854, %v1929
        %v1994 = vadd.f32 %v1855, %v1930
        %v1995 = vadd.f32 %v1856, %v1931
        %v1996 = vadd.f32 %v1857, %v1932
        %v1997 = vadd.f32 %v1858, %v1933
        %v1998 = vadd.f32 %v1859, %v1934
        %v1999 = vadd.f32 %v1860, %v1935
        %v2000 = vadd.f32 %v1861, %v1936
        %v2001 = vadd.f32 %v1862, %v1937
        %v2002 = vadd.f32 %v1863, %v1938
        %v2003 = vadd.f32 %v1864, %v1939
        %v2004 = vadd.f32 %v1865, %v1940
        %v2005 = vadd.f32 %v1866, %v1941
        %v2006 = vadd.f32 %v1867, %v1942
        %v2007 = vadd.f32 %v1868, %v1943
        %v2008 = vadd.f32 %v1869, %v1944
        %v2009 = vadd.f32 %v1870, %v1945
        %v2010 = vadd.f32 %v1871, %v1946
        %v2011 = vadd.f32 %v1872, %v1947
        %v2012 = vadd.f32 %v1873, %v1948
        %v2013 = vadd.f32 %v1874, %v1949
        %v2014 = vadd.f32 %v1875, %v1950
        %v2015 = vadd.f32 %v1876, %v1951
        %v2016 = vadd.f32 %v1877, %v1952
        %v2017 = vadd.f32 %v1878, %v1953
        %v2018 = vadd.f32 %v1879, %v1954
        %v2019 = vadd.f32 %v1880, %v1955
        %v2020 = vadd.f32 %v1881, %v1956
        %v2021 = vadd.f32 %v1882, %v1957
        %v2022 = vadd.f32 %v1883, %v1958
        %v2023 = vadd.f32 %v1884, %v1959
        %v2024 = vadd.f32 %v1885, %v1960
        %v2025 = vadd.f32 %v1886, %v1961
        %v2026 = vadd.f32 %v1887, %v1962
        %v2027 = vadd.f32 %v1888, %v1963
        %v2028 = vadd.f32 %v1889, %v1964
        %v2029 = vadd.f32 %v1890, %v1965
        %v2030 = vadd.f32 %v1891, %v1966
        %v2031 = vadd.f32 %v1892, %v1967
        %v2032 = vadd.f32 %v1893, %v1968
        %v2033 = vadd.f32 %v1894, %v1969
        %v2034 = vadd.f32 %v1895, %v1970
        %v2035 = vadd.f32 %v1896, %v1971
        %v2036 = vadd.f32 %v1897, %v1972
        %v2037 = vadd.f32 %v1898, %v1973
        %v2038 = vadd.f32 %v1899, %v1974
        %v2039 = vadd.f32 %v1900, %v1975
        %v2040 = vadd.f32 %v1901, %v1976
        %v2041 = vadd.f32 %v1902, %v1977
        %v2042 = vadd.f32 %v1903, %v1978
        %v2043 = vadd.f32 %v1904, %v1979
        %v2044 = vadd.f32 %v1905, %v1980
        %v2045 = vadd.f32 %v1906, %v1981
        %v2046 = vadd.f32 %v1907, %v1982
        %s2047 = scalar_lea.vmem %s3, 2
        %v2048 = vld [vmem:[%s2047] ss:$8 sm:$0x3]
        %v2050 = vlaneseq
        %v2051 = vshrl.u32 %v2050, 7
        %v2052 = vsub.s32 0, %v2051
        %v2053 = vrot.slane %v2048, %v2052
        %v2054 = vlaneseq
        %v2055 = vshrl.u32 %v2054, 7
        %v2056 = vsub.s32 1, %v2055
        %v2057 = vrot.slane %v2048, %v2056
        %v2060 = vmul.f32 %v1572, %v2053
        %v2061 = vmul.f32 %v1572, %v2057
        %v2062 = vmul.f32 %v1735, %v2053
        %v2063 = vmul.f32 %v1735, %v2057
        %v2064 = vmul.f32 %v1575, %v2053
        %v2065 = vmul.f32 %v1578, %v2057
        %v2066 = vmul.f32 %v1736, %v2053
        %v2067 = vmul.f32 %v1737, %v2057
        %v2068 = vmul.f32 %v1581, %v2053
        %v2069 = vmul.f32 %v1584, %v2057
        %v2070 = vmul.f32 %v1738, %v2053
        %v2071 = vmul.f32 %v1739, %v2057
        %v2072 = vmul.f32 %v1587, %v2053
        %v2073 = vmul.f32 %v1590, %v2057
        %v2074 = vmul.f32 %v1740, %v2053
        %v2075 = vmul.f32 %v1741, %v2057
        %v2076 = vmul.f32 %v1593, %v2053
        %v2077 = vmul.f32 %v1596, %v2057
        %v2078 = vmul.f32 %v1742, %v2053
        %v2079 = vmul.f32 %v1743, %v2057
        %v2080 = vmul.f32 %v1599, %v2053
        %v2081 = vmul.f32 %v1602, %v2057
        %v2082 = vmul.f32 %v1744, %v2053
        %v2083 = vmul.f32 %v1745, %v2057
        %v2084 = vmul.f32 %v1605, %v2053
        %v2085 = vmul.f32 %v1608, %v2057
        %v2086 = vmul.f32 %v1746, %v2053
        %v2087 = vmul.f32 %v1747, %v2057
        %v2088 = vmul.f32 %v1611, %v2053
        %v2089 = vmul.f32 %v1614, %v2057
        %v2090 = vmul.f32 %v1748, %v2053
        %v2091 = vmul.f32 %v1749, %v2057
        %v2092 = vmul.f32 %v1617, %v2053
        %v2093 = vmul.f32 %v1620, %v2057
        %v2094 = vmul.f32 %v1750, %v2053
        %v2095 = vmul.f32 %v1751, %v2057
        %v2096 = vmul.f32 %v1623, %v2053
        %v2097 = vmul.f32 %v1626, %v2057
        %v2098 = vmul.f32 %v1752, %v2053
        %v2099 = vmul.f32 %v1753, %v2057
        %v2100 = vmul.f32 %v1629, %v2053
        %v2101 = vmul.f32 %v1632, %v2057
        %v2102 = vmul.f32 %v1754, %v2053
        %v2103 = vmul.f32 %v1755, %v2057
        %v2104 = vmul.f32 %v1635, %v2053
        %v2105 = vmul.f32 %v1638, %v2057
        %v2106 = vmul.f32 %v1756, %v2053
        %v2107 = vmul.f32 %v1757, %v2057
        %v2108 = vmul.f32 %v1641, %v2053
        %v2109 = vmul.f32 %v1644, %v2057
        %v2110 = vmul.f32 %v1758, %v2053
        %v2111 = vmul.f32 %v1759, %v2057
        %v2112 = vmul.f32 %v1647, %v2053
        %v2113 = vmul.f32 %v1650, %v2057
        %v2114 = vmul.f32 %v1760, %v2053
        %v2115 = vmul.f32 %v1761, %v2057
        %v2116 = vmul.f32 %v1653, %v2053
        %v2117 = vmul.f32 %v1656, %v2057
        %v2118 = vmul.f32 %v1762, %v2053
        %v2119 = vmul.f32 %v1763, %v2057
        %v2120 = vmul.f32 %v1659, %v2053
        %v2121 = vmul.f32 %v1662, %v2057
        %v2122 = vmul.f32 %v1764, %v2053
        %v2123 = vmul.f32 %v1765, %v2057
        %v2124 = vadd.f32 %v1983, %v2060
        %v2125 = vadd.f32 %v1984, %v2061
        %v2126 = vadd.f32 %v1985, %v2062
        %v2127 = vadd.f32 %v1986, %v2063
        %v2128 = vadd.f32 %v1987, %v2064
        %v2129 = vadd.f32 %v1988, %v2065
        %v2130 = vadd.f32 %v1989, %v2066
        %v2131 = vadd.f32 %v1990, %v2067
        %v2132 = vadd.f32 %v1991, %v2068
        %v2133 = vadd.f32 %v1992, %v2069
        %v2134 = vadd.f32 %v1993, %v2070
        %v2135 = vadd.f32 %v1994, %v2071
        %v2136 = vadd.f32 %v1995, %v2072
        %v2137 = vadd.f32 %v1996, %v2073
        %v2138 = vadd.f32 %v1997, %v2074
        %v2139 = vadd.f32 %v1998, %v2075
        %v2140 = vadd.f32 %v1999, %v2076
        %v2141 = vadd.f32 %v2000, %v2077
        %v2142 = vadd.f32 %v2001, %v2078
        %v2143 = vadd.f32 %v2002, %v2079
        %v2144 = vadd.f32 %v2003, %v2080
        %v2145 = vadd.f32 %v2004, %v2081
        %v2146 = vadd.f32 %v2005, %v2082
        %v2147 = vadd.f32 %v2006, %v2083
        %v2148 = vadd.f32 %v2007, %v2084
        %v2149 = vadd.f32 %v2008, %v2085
        %v2150 = vadd.f32 %v2009, %v2086
        %v2151 = vadd.f32 %v2010, %v2087
        %v2152 = vadd.f32 %v2011, %v2088
        %v2153 = vadd.f32 %v2012, %v2089
        %v2154 = vadd.f32 %v2013, %v2090
        %v2155 = vadd.f32 %v2014, %v2091
        %v2156 = vadd.f32 %v2015, %v2092
        %v2157 = vadd.f32 %v2016, %v2093
        %v2158 = vadd.f32 %v2017, %v2094
        %v2159 = vadd.f32 %v2018, %v2095
        %v2160 = vadd.f32 %v2019, %v2096
        %v2161 = vadd.f32 %v2020, %v2097
        %v2162 = vadd.f32 %v2021, %v2098
        %v2163 = vadd.f32 %v2022, %v2099
        %v2164 = vadd.f32 %v2023, %v2100
        %v2165 = vadd.f32 %v2024, %v2101
        %v2166 = vadd.f32 %v2025, %v2102
        %v2167 = vadd.f32 %v2026, %v2103
        %v2168 = vadd.f32 %v2027, %v2104
        %v2169 = vadd.f32 %v2028, %v2105
        %v2170 = vadd.f32 %v2029, %v2106
        %v2171 = vadd.f32 %v2030, %v2107
        %v2172 = vadd.f32 %v2031, %v2108
        %v2173 = vadd.f32 %v2032, %v2109
        %v2174 = vadd.f32 %v2033, %v2110
        %v2175 = vadd.f32 %v2034, %v2111
        %v2176 = vadd.f32 %v2035, %v2112
        %v2177 = vadd.f32 %v2036, %v2113
        %v2178 = vadd.f32 %v2037, %v2114
        %v2179 = vadd.f32 %v2038, %v2115
        %v2180 = vadd.f32 %v2039, %v2116
        %v2181 = vadd.f32 %v2040, %v2117
        %v2182 = vadd.f32 %v2041, %v2118
        %v2183 = vadd.f32 %v2042, %v2119
        %v2184 = vadd.f32 %v2043, %v2120
        %v2185 = vadd.f32 %v2044, %v2121
        %v2186 = vadd.f32 %v2045, %v2122
        %v2187 = vadd.f32 %v2046, %v2123
        %s2188 = scalar_lea.vmem %s3, 3
        %v2189 = vld [vmem:[%s2188] ss:$8 sm:$0x3]
        %v2191 = vlaneseq
        %v2192 = vshrl.u32 %v2191, 7
        %v2193 = vsub.s32 0, %v2192
        %v2194 = vrot.slane %v2189, %v2193
        %v2195 = vlaneseq
        %v2196 = vshrl.u32 %v2195, 7
        %v2197 = vsub.s32 1, %v2196
        %v2198 = vrot.slane %v2189, %v2197
        %v2201 = vmul.f32 %v1538, %v2194
        %v2202 = vmul.f32 %v1539, %v2198
        %v2203 = vmul.f32 %v1378, %v2194
        %v2204 = vmul.f32 %v1380, %v2198
        %v2205 = vmul.f32 %v1540, %v2194
        %v2206 = vmul.f32 %v1541, %v2198
        %v2207 = vmul.f32 %v1384, %v2194
        %v2208 = vmul.f32 %v1386, %v2198
        %v2209 = vmul.f32 %v1542, %v2194
        %v2210 = vmul.f32 %v1543, %v2198
        %v2211 = vmul.f32 %v1390, %v2194
        %v2212 = vmul.f32 %v1392, %v2198
        %v2213 = vmul.f32 %v1544, %v2194
        %v2214 = vmul.f32 %v1545, %v2198
        %v2215 = vmul.f32 %v1396, %v2194
        %v2216 = vmul.f32 %v1398, %v2198
        %v2217 = vmul.f32 %v1546, %v2194
        %v2218 = vmul.f32 %v1547, %v2198
        %v2219 = vmul.f32 %v1402, %v2194
        %v2220 = vmul.f32 %v1404, %v2198
        %v2221 = vmul.f32 %v1548, %v2194
        %v2222 = vmul.f32 %v1549, %v2198
        %v2223 = vmul.f32 %v1408, %v2194
        %v2224 = vmul.f32 %v1410, %v2198
        %v2225 = vmul.f32 %v1550, %v2194
        %v2226 = vmul.f32 %v1551, %v2198
        %v2227 = vmul.f32 %v1414, %v2194
        %v2228 = vmul.f32 %v1416, %v2198
        %v2229 = vmul.f32 %v1552, %v2194
        %v2230 = vmul.f32 %v1553, %v2198
        %v2231 = vmul.f32 %v1420, %v2194
        %v2232 = vmul.f32 %v1422, %v2198
        %v2233 = vmul.f32 %v1554, %v2194
        %v2234 = vmul.f32 %v1555, %v2198
        %v2235 = vmul.f32 %v1426, %v2194
        %v2236 = vmul.f32 %v1428, %v2198
        %v2237 = vmul.f32 %v1556, %v2194
        %v2238 = vmul.f32 %v1557, %v2198
        %v2239 = vmul.f32 %v1432, %v2194
        %v2240 = vmul.f32 %v1434, %v2198
        %v2241 = vmul.f32 %v1558, %v2194
        %v2242 = vmul.f32 %v1559, %v2198
        %v2243 = vmul.f32 %v1438, %v2194
        %v2244 = vmul.f32 %v1440, %v2198
        %v2245 = vmul.f32 %v1560, %v2194
        %v2246 = vmul.f32 %v1561, %v2198
        %v2247 = vmul.f32 %v1444, %v2194
        %v2248 = vmul.f32 %v1446, %v2198
        %v2249 = vmul.f32 %v1562, %v2194
        %v2250 = vmul.f32 %v1563, %v2198
        %v2251 = vmul.f32 %v1450, %v2194
        %v2252 = vmul.f32 %v1452, %v2198
        %v2253 = vmul.f32 %v1564, %v2194
        %v2254 = vmul.f32 %v1565, %v2198
        %v2255 = vmul.f32 %v1456, %v2194
        %v2256 = vmul.f32 %v1458, %v2198
        %v2257 = vmul.f32 %v1566, %v2194
        %v2258 = vmul.f32 %v1567, %v2198
        %v2259 = vmul.f32 %v1462, %v2194
        %v2260 = vmul.f32 %v1464, %v2198
        %v2261 = vmul.f32 %v1568, %v2194
        %v2262 = vmul.f32 %v1569, %v2198
        %v2263 = vmul.f32 %v1468, %v2194
        %v2264 = vmul.f32 %v1470, %v2198
        %v2265 = vadd.f32 %v2124, %v2201
        %v2266 = vadd.f32 %v2125, %v2202
        %v2267 = vadd.f32 %v2126, %v2203
        %v2268 = vadd.f32 %v2127, %v2204
        %v2269 = vadd.f32 %v2128, %v2205
        %v2270 = vadd.f32 %v2129, %v2206
        %v2271 = vadd.f32 %v2130, %v2207
        %v2272 = vadd.f32 %v2131, %v2208
        %v2273 = vadd.f32 %v2132, %v2209
        %v2274 = vadd.f32 %v2133, %v2210
        %v2275 = vadd.f32 %v2134, %v2211
        %v2276 = vadd.f32 %v2135, %v2212
        %v2277 = vadd.f32 %v2136, %v2213
        %v2278 = vadd.f32 %v2137, %v2214
        %v2279 = vadd.f32 %v2138, %v2215
        %v2280 = vadd.f32 %v2139, %v2216
        %v2281 = vadd.f32 %v2140, %v2217
        %v2282 = vadd.f32 %v2141, %v2218
        %v2283 = vadd.f32 %v2142, %v2219
        %v2284 = vadd.f32 %v2143, %v2220
        %v2285 = vadd.f32 %v2144, %v2221
        %v2286 = vadd.f32 %v2145, %v2222
        %v2287 = vadd.f32 %v2146, %v2223
        %v2288 = vadd.f32 %v2147, %v2224
        %v2289 = vadd.f32 %v2148, %v2225
        %v2290 = vadd.f32 %v2149, %v2226
        %v2291 = vadd.f32 %v2150, %v2227
        %v2292 = vadd.f32 %v2151, %v2228
        %v2293 = vadd.f32 %v2152, %v2229
        %v2294 = vadd.f32 %v2153, %v2230
        %v2295 = vadd.f32 %v2154, %v2231
        %v2296 = vadd.f32 %v2155, %v2232
        %v2297 = vadd.f32 %v2156, %v2233
        %v2298 = vadd.f32 %v2157, %v2234
        %v2299 = vadd.f32 %v2158, %v2235
        %v2300 = vadd.f32 %v2159, %v2236
        %v2301 = vadd.f32 %v2160, %v2237
        %v2302 = vadd.f32 %v2161, %v2238
        %v2303 = vadd.f32 %v2162, %v2239
        %v2304 = vadd.f32 %v2163, %v2240
        %v2305 = vadd.f32 %v2164, %v2241
        %v2306 = vadd.f32 %v2165, %v2242
        %v2307 = vadd.f32 %v2166, %v2243
        %v2308 = vadd.f32 %v2167, %v2244
        %v2309 = vadd.f32 %v2168, %v2245
        %v2310 = vadd.f32 %v2169, %v2246
        %v2311 = vadd.f32 %v2170, %v2247
        %v2312 = vadd.f32 %v2171, %v2248
        %v2313 = vadd.f32 %v2172, %v2249
        %v2314 = vadd.f32 %v2173, %v2250
        %v2315 = vadd.f32 %v2174, %v2251
        %v2316 = vadd.f32 %v2175, %v2252
        %v2317 = vadd.f32 %v2176, %v2253
        %v2318 = vadd.f32 %v2177, %v2254
        %v2319 = vadd.f32 %v2178, %v2255
        %v2320 = vadd.f32 %v2179, %v2256
        %v2321 = vadd.f32 %v2180, %v2257
        %v2322 = vadd.f32 %v2181, %v2258
        %v2323 = vadd.f32 %v2182, %v2259
        %v2324 = vadd.f32 %v2183, %v2260
        %v2325 = vadd.f32 %v2184, %v2261
        %v2326 = vadd.f32 %v2185, %v2262
        %v2327 = vadd.f32 %v2186, %v2263
        %v2328 = vadd.f32 %v2187, %v2264
        %s2329 = scalar_lea.vmem %s3, 4
        %v2330 = vld [vmem:[%s2329] ss:$8 sm:$0x3]
        %v2332 = vlaneseq
        %v2333 = vshrl.u32 %v2332, 7
        %v2334 = vsub.s32 0, %v2333
        %v2335 = vrot.slane %v2330, %v2334
        %v2336 = vlaneseq
        %v2337 = vshrl.u32 %v2336, 7
        %v2338 = vsub.s32 1, %v2337
        %v2339 = vrot.slane %v2330, %v2338
        %v2342 = vmul.f32 %v1243, %v2335
        %v2343 = vmul.f32 %v1244, %v2339
        %v2344 = vmul.f32 %v1245, %v2335
        %v2345 = vmul.f32 %v1246, %v2339
        %v2346 = vmul.f32 %v1247, %v2335
        %v2347 = vmul.f32 %v1248, %v2339
        %v2348 = vmul.f32 %v1249, %v2335
        %v2349 = vmul.f32 %v1250, %v2339
        %v2350 = vmul.f32 %v1251, %v2335
        %v2351 = vmul.f32 %v1252, %v2339
        %v2352 = vmul.f32 %v1253, %v2335
        %v2353 = vmul.f32 %v1254, %v2339
        %v2354 = vmul.f32 %v1255, %v2335
        %v2355 = vmul.f32 %v1256, %v2339
        %v2356 = vmul.f32 %v1257, %v2335
        %v2357 = vmul.f32 %v1258, %v2339
        %v2358 = vmul.f32 %v1259, %v2335
        %v2359 = vmul.f32 %v1260, %v2339
        %v2360 = vmul.f32 %v1261, %v2335
        %v2361 = vmul.f32 %v1262, %v2339
        %v2362 = vmul.f32 %v1263, %v2335
        %v2363 = vmul.f32 %v1264, %v2339
        %v2364 = vmul.f32 %v1265, %v2335
        %v2365 = vmul.f32 %v1266, %v2339
        %v2366 = vmul.f32 %v1267, %v2335
        %v2367 = vmul.f32 %v1268, %v2339
        %v2368 = vmul.f32 %v1269, %v2335
        %v2369 = vmul.f32 %v1270, %v2339
        %v2370 = vmul.f32 %v1271, %v2335
        %v2371 = vmul.f32 %v1272, %v2339
        %v2372 = vmul.f32 %v1273, %v2335
        %v2373 = vmul.f32 %v1274, %v2339
        %v2374 = vmul.f32 %v1275, %v2335
        %v2375 = vmul.f32 %v1276, %v2339
        %v2376 = vmul.f32 %v1277, %v2335
        %v2377 = vmul.f32 %v1278, %v2339
        %v2378 = vmul.f32 %v1279, %v2335
        %v2379 = vmul.f32 %v1280, %v2339
        %v2380 = vmul.f32 %v1281, %v2335
        %v2381 = vmul.f32 %v1282, %v2339
        %v2382 = vmul.f32 %v1283, %v2335
        %v2383 = vmul.f32 %v1284, %v2339
        %v2384 = vmul.f32 %v1285, %v2335
        %v2385 = vmul.f32 %v1286, %v2339
        %v2386 = vmul.f32 %v1287, %v2335
        %v2387 = vmul.f32 %v1288, %v2339
        %v2388 = vmul.f32 %v1289, %v2335
        %v2389 = vmul.f32 %v1290, %v2339
        %v2390 = vmul.f32 %v1291, %v2335
        %v2391 = vmul.f32 %v1292, %v2339
        %v2392 = vmul.f32 %v1293, %v2335
        %v2393 = vmul.f32 %v1294, %v2339
        %v2394 = vmul.f32 %v1295, %v2335
        %v2395 = vmul.f32 %v1296, %v2339
        %v2396 = vmul.f32 %v1297, %v2335
        %v2397 = vmul.f32 %v1298, %v2339
        %v2398 = vmul.f32 %v1299, %v2335
        %v2399 = vmul.f32 %v1300, %v2339
        %v2400 = vmul.f32 %v1301, %v2335
        %v2401 = vmul.f32 %v1302, %v2339
        %v2402 = vmul.f32 %v1303, %v2335
        %v2403 = vmul.f32 %v1304, %v2339
        %v2404 = vmul.f32 %v1305, %v2335
        %v2405 = vmul.f32 %v1306, %v2339
        %v2406 = vadd.f32 %v2265, %v2342
        %v2407 = vadd.f32 %v2266, %v2343
        %v2408 = vadd.f32 %v2267, %v2344
        %v2409 = vadd.f32 %v2268, %v2345
        %v2410 = vadd.f32 %v2269, %v2346
        %v2411 = vadd.f32 %v2270, %v2347
        %v2412 = vadd.f32 %v2271, %v2348
        %v2413 = vadd.f32 %v2272, %v2349
        %v2414 = vadd.f32 %v2273, %v2350
        %v2415 = vadd.f32 %v2274, %v2351
        %v2416 = vadd.f32 %v2275, %v2352
        %v2417 = vadd.f32 %v2276, %v2353
        %v2418 = vadd.f32 %v2277, %v2354
        %v2419 = vadd.f32 %v2278, %v2355
        %v2420 = vadd.f32 %v2279, %v2356
        %v2421 = vadd.f32 %v2280, %v2357
        %v2422 = vadd.f32 %v2281, %v2358
        %v2423 = vadd.f32 %v2282, %v2359
        %v2424 = vadd.f32 %v2283, %v2360
        %v2425 = vadd.f32 %v2284, %v2361
        %v2426 = vadd.f32 %v2285, %v2362
        %v2427 = vadd.f32 %v2286, %v2363
        %v2428 = vadd.f32 %v2287, %v2364
        %v2429 = vadd.f32 %v2288, %v2365
        %v2430 = vadd.f32 %v2289, %v2366
        %v2431 = vadd.f32 %v2290, %v2367
        %v2432 = vadd.f32 %v2291, %v2368
        %v2433 = vadd.f32 %v2292, %v2369
        %v2434 = vadd.f32 %v2293, %v2370
        %v2435 = vadd.f32 %v2294, %v2371
        %v2436 = vadd.f32 %v2295, %v2372
        %v2437 = vadd.f32 %v2296, %v2373
        %v2438 = vadd.f32 %v2297, %v2374
        %v2439 = vadd.f32 %v2298, %v2375
        %v2440 = vadd.f32 %v2299, %v2376
        %v2441 = vadd.f32 %v2300, %v2377
        %v2442 = vadd.f32 %v2301, %v2378
        %v2443 = vadd.f32 %v2302, %v2379
        %v2444 = vadd.f32 %v2303, %v2380
        %v2445 = vadd.f32 %v2304, %v2381
        %v2446 = vadd.f32 %v2305, %v2382
        %v2447 = vadd.f32 %v2306, %v2383
        %v2448 = vadd.f32 %v2307, %v2384
        %v2449 = vadd.f32 %v2308, %v2385
        %v2450 = vadd.f32 %v2309, %v2386
        %v2451 = vadd.f32 %v2310, %v2387
        %v2452 = vadd.f32 %v2311, %v2388
        %v2453 = vadd.f32 %v2312, %v2389
        %v2454 = vadd.f32 %v2313, %v2390
        %v2455 = vadd.f32 %v2314, %v2391
        %v2456 = vadd.f32 %v2315, %v2392
        %v2457 = vadd.f32 %v2316, %v2393
        %v2458 = vadd.f32 %v2317, %v2394
        %v2459 = vadd.f32 %v2318, %v2395
        %v2460 = vadd.f32 %v2319, %v2396
        %v2461 = vadd.f32 %v2320, %v2397
        %v2462 = vadd.f32 %v2321, %v2398
        %v2463 = vadd.f32 %v2322, %v2399
        %v2464 = vadd.f32 %v2323, %v2400
        %v2465 = vadd.f32 %v2324, %v2401
        %v2466 = vadd.f32 %v2325, %v2402
        %v2467 = vadd.f32 %v2326, %v2403
        %v2468 = vadd.f32 %v2327, %v2404
        %v2469 = vadd.f32 %v2328, %v2405
        %s2470 = scalar_lea.vmem %s3, 5
        %v2471 = vld [vmem:[%s2470] ss:$8 sm:$0x3]
        %v2473 = vlaneseq
        %v2474 = vshrl.u32 %v2473, 7
        %v2475 = vsub.s32 0, %v2474
        %v2476 = vrot.slane %v2471, %v2475
        %v2477 = vlaneseq
        %v2478 = vshrl.u32 %v2477, 7
        %v2479 = vsub.s32 1, %v2478
        %v2480 = vrot.slane %v2471, %v2479
        %v2483 = vmul.f32 %v1575, %v2476
        %v2484 = vmul.f32 %v1578, %v2480
        %v2485 = vmul.f32 %v1736, %v2476
        %v2486 = vmul.f32 %v1737, %v2480
        %v2487 = vmul.f32 %v1581, %v2476
        %v2488 = vmul.f32 %v1584, %v2480
        %v2489 = vmul.f32 %v1738, %v2476
        %v2490 = vmul.f32 %v1739, %v2480
        %v2491 = vmul.f32 %v1587, %v2476
        %v2492 = vmul.f32 %v1590, %v2480
        %v2493 = vmul.f32 %v1740, %v2476
        %v2494 = vmul.f32 %v1741, %v2480
        %v2495 = vmul.f32 %v1593, %v2476
        %v2496 = vmul.f32 %v1596, %v2480
        %v2497 = vmul.f32 %v1742, %v2476
        %v2498 = vmul.f32 %v1743, %v2480
        %v2499 = vmul.f32 %v1599, %v2476
        %v2500 = vmul.f32 %v1602, %v2480
        %v2501 = vmul.f32 %v1744, %v2476
        %v2502 = vmul.f32 %v1745, %v2480
        %v2503 = vmul.f32 %v1605, %v2476
        %v2504 = vmul.f32 %v1608, %v2480
        %v2505 = vmul.f32 %v1746, %v2476
        %v2506 = vmul.f32 %v1747, %v2480
        %v2507 = vmul.f32 %v1611, %v2476
        %v2508 = vmul.f32 %v1614, %v2480
        %v2509 = vmul.f32 %v1748, %v2476
        %v2510 = vmul.f32 %v1749, %v2480
        %v2511 = vmul.f32 %v1617, %v2476
        %v2512 = vmul.f32 %v1620, %v2480
        %v2513 = vmul.f32 %v1750, %v2476
        %v2514 = vmul.f32 %v1751, %v2480
        %v2515 = vmul.f32 %v1623, %v2476
        %v2516 = vmul.f32 %v1626, %v2480
        %v2517 = vmul.f32 %v1752, %v2476
        %v2518 = vmul.f32 %v1753, %v2480
        %v2519 = vmul.f32 %v1629, %v2476
        %v2520 = vmul.f32 %v1632, %v2480
        %v2521 = vmul.f32 %v1754, %v2476
        %v2522 = vmul.f32 %v1755, %v2480
        %v2523 = vmul.f32 %v1635, %v2476
        %v2524 = vmul.f32 %v1638, %v2480
        %v2525 = vmul.f32 %v1756, %v2476
        %v2526 = vmul.f32 %v1757, %v2480
        %v2527 = vmul.f32 %v1641, %v2476
        %v2528 = vmul.f32 %v1644, %v2480
        %v2529 = vmul.f32 %v1758, %v2476
        %v2530 = vmul.f32 %v1759, %v2480
        %v2531 = vmul.f32 %v1647, %v2476
        %v2532 = vmul.f32 %v1650, %v2480
        %v2533 = vmul.f32 %v1760, %v2476
        %v2534 = vmul.f32 %v1761, %v2480
        %v2535 = vmul.f32 %v1653, %v2476
        %v2536 = vmul.f32 %v1656, %v2480
        %v2537 = vmul.f32 %v1762, %v2476
        %v2538 = vmul.f32 %v1763, %v2480
        %v2539 = vmul.f32 %v1659, %v2476
        %v2540 = vmul.f32 %v1662, %v2480
        %v2541 = vmul.f32 %v1764, %v2476
        %v2542 = vmul.f32 %v1765, %v2480
        %v2543 = vmul.f32 %v1665, %v2476
        %v2544 = vmul.f32 %v1668, %v2480
        %v2545 = vmul.f32 %v1766, %v2476
        %v2546 = vmul.f32 %v1767, %v2480
        %v2547 = vadd.f32 %v2406, %v2483
        %v2548 = vadd.f32 %v2407, %v2484
        %v2549 = vadd.f32 %v2408, %v2485
        %v2550 = vadd.f32 %v2409, %v2486
        %v2551 = vadd.f32 %v2410, %v2487
        %v2552 = vadd.f32 %v2411, %v2488
        %v2553 = vadd.f32 %v2412, %v2489
        %v2554 = vadd.f32 %v2413, %v2490
        %v2555 = vadd.f32 %v2414, %v2491
        %v2556 = vadd.f32 %v2415, %v2492
        %v2557 = vadd.f32 %v2416, %v2493
        %v2558 = vadd.f32 %v2417, %v2494
        %v2559 = vadd.f32 %v2418, %v2495
        %v2560 = vadd.f32 %v2419, %v2496
        %v2561 = vadd.f32 %v2420, %v2497
        %v2562 = vadd.f32 %v2421, %v2498
        %v2563 = vadd.f32 %v2422, %v2499
        %v2564 = vadd.f32 %v2423, %v2500
        %v2565 = vadd.f32 %v2424, %v2501
        %v2566 = vadd.f32 %v2425, %v2502
        %v2567 = vadd.f32 %v2426, %v2503
        %v2568 = vadd.f32 %v2427, %v2504
        %v2569 = vadd.f32 %v2428, %v2505
        %v2570 = vadd.f32 %v2429, %v2506
        %v2571 = vadd.f32 %v2430, %v2507
        %v2572 = vadd.f32 %v2431, %v2508
        %v2573 = vadd.f32 %v2432, %v2509
        %v2574 = vadd.f32 %v2433, %v2510
        %v2575 = vadd.f32 %v2434, %v2511
        %v2576 = vadd.f32 %v2435, %v2512
        %v2577 = vadd.f32 %v2436, %v2513
        %v2578 = vadd.f32 %v2437, %v2514
        %v2579 = vadd.f32 %v2438, %v2515
        %v2580 = vadd.f32 %v2439, %v2516
        %v2581 = vadd.f32 %v2440, %v2517
        %v2582 = vadd.f32 %v2441, %v2518
        %v2583 = vadd.f32 %v2442, %v2519
        %v2584 = vadd.f32 %v2443, %v2520
        %v2585 = vadd.f32 %v2444, %v2521
        %v2586 = vadd.f32 %v2445, %v2522
        %v2587 = vadd.f32 %v2446, %v2523
        %v2588 = vadd.f32 %v2447, %v2524
        %v2589 = vadd.f32 %v2448, %v2525
        %v2590 = vadd.f32 %v2449, %v2526
        %v2591 = vadd.f32 %v2450, %v2527
        %v2592 = vadd.f32 %v2451, %v2528
        %v2593 = vadd.f32 %v2452, %v2529
        %v2594 = vadd.f32 %v2453, %v2530
        %v2595 = vadd.f32 %v2454, %v2531
        %v2596 = vadd.f32 %v2455, %v2532
        %v2597 = vadd.f32 %v2456, %v2533
        %v2598 = vadd.f32 %v2457, %v2534
        %v2599 = vadd.f32 %v2458, %v2535
        %v2600 = vadd.f32 %v2459, %v2536
        %v2601 = vadd.f32 %v2460, %v2537
        %v2602 = vadd.f32 %v2461, %v2538
        %v2603 = vadd.f32 %v2462, %v2539
        %v2604 = vadd.f32 %v2463, %v2540
        %v2605 = vadd.f32 %v2464, %v2541
        %v2606 = vadd.f32 %v2465, %v2542
        %v2607 = vadd.f32 %v2466, %v2543
        %v2608 = vadd.f32 %v2467, %v2544
        %v2609 = vadd.f32 %v2468, %v2545
        %v2610 = vadd.f32 %v2469, %v2546
        %s2611 = scalar_lea.vmem %s3, 6
        %v2612 = vld [vmem:[%s2611] ss:$8 sm:$0x3]
        %v2614 = vlaneseq
        %v2615 = vshrl.u32 %v2614, 7
        %v2616 = vsub.s32 0, %v2615
        %v2617 = vrot.slane %v2612, %v2616
        %v2618 = vlaneseq
        %v2619 = vshrl.u32 %v2618, 7
        %v2620 = vsub.s32 1, %v2619
        %v2621 = vrot.slane %v2612, %v2620
        %v2624 = vmul.f32 %v1540, %v2617
        %v2625 = vmul.f32 %v1541, %v2621
        %v2626 = vmul.f32 %v1384, %v2617
        %v2627 = vmul.f32 %v1386, %v2621
        %v2628 = vmul.f32 %v1542, %v2617
        %v2629 = vmul.f32 %v1543, %v2621
        %v2630 = vmul.f32 %v1390, %v2617
        %v2631 = vmul.f32 %v1392, %v2621
        %v2632 = vmul.f32 %v1544, %v2617
        %v2633 = vmul.f32 %v1545, %v2621
        %v2634 = vmul.f32 %v1396, %v2617
        %v2635 = vmul.f32 %v1398, %v2621
        %v2636 = vmul.f32 %v1546, %v2617
        %v2637 = vmul.f32 %v1547, %v2621
        %v2638 = vmul.f32 %v1402, %v2617
        %v2639 = vmul.f32 %v1404, %v2621
        %v2640 = vmul.f32 %v1548, %v2617
        %v2641 = vmul.f32 %v1549, %v2621
        %v2642 = vmul.f32 %v1408, %v2617
        %v2643 = vmul.f32 %v1410, %v2621
        %v2644 = vmul.f32 %v1550, %v2617
        %v2645 = vmul.f32 %v1551, %v2621
        %v2646 = vmul.f32 %v1414, %v2617
        %v2647 = vmul.f32 %v1416, %v2621
        %v2648 = vmul.f32 %v1552, %v2617
        %v2649 = vmul.f32 %v1553, %v2621
        %v2650 = vmul.f32 %v1420, %v2617
        %v2651 = vmul.f32 %v1422, %v2621
        %v2652 = vmul.f32 %v1554, %v2617
        %v2653 = vmul.f32 %v1555, %v2621
        %v2654 = vmul.f32 %v1426, %v2617
        %v2655 = vmul.f32 %v1428, %v2621
        %v2656 = vmul.f32 %v1556, %v2617
        %v2657 = vmul.f32 %v1557, %v2621
        %v2658 = vmul.f32 %v1432, %v2617
        %v2659 = vmul.f32 %v1434, %v2621
        %v2660 = vmul.f32 %v1558, %v2617
        %v2661 = vmul.f32 %v1559, %v2621
        %v2662 = vmul.f32 %v1438, %v2617
        %v2663 = vmul.f32 %v1440, %v2621
        %v2664 = vmul.f32 %v1560, %v2617
        %v2665 = vmul.f32 %v1561, %v2621
        %v2666 = vmul.f32 %v1444, %v2617
        %v2667 = vmul.f32 %v1446, %v2621
        %v2668 = vmul.f32 %v1562, %v2617
        %v2669 = vmul.f32 %v1563, %v2621
        %v2670 = vmul.f32 %v1450, %v2617
        %v2671 = vmul.f32 %v1452, %v2621
        %v2672 = vmul.f32 %v1564, %v2617
        %v2673 = vmul.f32 %v1565, %v2621
        %v2674 = vmul.f32 %v1456, %v2617
        %v2675 = vmul.f32 %v1458, %v2621
        %v2676 = vmul.f32 %v1566, %v2617
        %v2677 = vmul.f32 %v1567, %v2621
        %v2678 = vmul.f32 %v1462, %v2617
        %v2679 = vmul.f32 %v1464, %v2621
        %v2680 = vmul.f32 %v1568, %v2617
        %v2681 = vmul.f32 %v1569, %v2621
        %v2682 = vmul.f32 %v1468, %v2617
        %v2683 = vmul.f32 %v1470, %v2621
        %v2684 = vmul.f32 %v1537, %v2617
        %v2685 = vmul.f32 %v1537, %v2621
        %v2686 = vmul.f32 %v1374, %v2617
        %v2687 = vmul.f32 %v1374, %v2621
        %v2688 = vadd.f32 %v2547, %v2624
        %v2689 = vadd.f32 %v2548, %v2625
        %v2690 = vadd.f32 %v2549, %v2626
        %v2691 = vadd.f32 %v2550, %v2627
        %v2692 = vadd.f32 %v2551, %v2628
        %v2693 = vadd.f32 %v2552, %v2629
        %v2694 = vadd.f32 %v2553, %v2630
        %v2695 = vadd.f32 %v2554, %v2631
        %v2696 = vadd.f32 %v2555, %v2632
        %v2697 = vadd.f32 %v2556, %v2633
        %v2698 = vadd.f32 %v2557, %v2634
        %v2699 = vadd.f32 %v2558, %v2635
        %v2700 = vadd.f32 %v2559, %v2636
        %v2701 = vadd.f32 %v2560, %v2637
        %v2702 = vadd.f32 %v2561, %v2638
        %v2703 = vadd.f32 %v2562, %v2639
        %v2704 = vadd.f32 %v2563, %v2640
        %v2705 = vadd.f32 %v2564, %v2641
        %v2706 = vadd.f32 %v2565, %v2642
        %v2707 = vadd.f32 %v2566, %v2643
        %v2708 = vadd.f32 %v2567, %v2644
        %v2709 = vadd.f32 %v2568, %v2645
        %v2710 = vadd.f32 %v2569, %v2646
        %v2711 = vadd.f32 %v2570, %v2647
        %v2712 = vadd.f32 %v2571, %v2648
        %v2713 = vadd.f32 %v2572, %v2649
        %v2714 = vadd.f32 %v2573, %v2650
        %v2715 = vadd.f32 %v2574, %v2651
        %v2716 = vadd.f32 %v2575, %v2652
        %v2717 = vadd.f32 %v2576, %v2653
        %v2718 = vadd.f32 %v2577, %v2654
        %v2719 = vadd.f32 %v2578, %v2655
        %v2720 = vadd.f32 %v2579, %v2656
        %v2721 = vadd.f32 %v2580, %v2657
        %v2722 = vadd.f32 %v2581, %v2658
        %v2723 = vadd.f32 %v2582, %v2659
        %v2724 = vadd.f32 %v2583, %v2660
        %v2725 = vadd.f32 %v2584, %v2661
        %v2726 = vadd.f32 %v2585, %v2662
        %v2727 = vadd.f32 %v2586, %v2663
        %v2728 = vadd.f32 %v2587, %v2664
        %v2729 = vadd.f32 %v2588, %v2665
        %v2730 = vadd.f32 %v2589, %v2666
        %v2731 = vadd.f32 %v2590, %v2667
        %v2732 = vadd.f32 %v2591, %v2668
        %v2733 = vadd.f32 %v2592, %v2669
        %v2734 = vadd.f32 %v2593, %v2670
        %v2735 = vadd.f32 %v2594, %v2671
        %v2736 = vadd.f32 %v2595, %v2672
        %v2737 = vadd.f32 %v2596, %v2673
        %v2738 = vadd.f32 %v2597, %v2674
        %v2739 = vadd.f32 %v2598, %v2675
        %v2740 = vadd.f32 %v2599, %v2676
        %v2741 = vadd.f32 %v2600, %v2677
        %v2742 = vadd.f32 %v2601, %v2678
        %v2743 = vadd.f32 %v2602, %v2679
        %v2744 = vadd.f32 %v2603, %v2680
        %v2745 = vadd.f32 %v2604, %v2681
        %v2746 = vadd.f32 %v2605, %v2682
        %v2747 = vadd.f32 %v2606, %v2683
        %v2748 = vadd.f32 %v2607, %v2684
        %v2749 = vadd.f32 %v2608, %v2685
        %v2750 = vadd.f32 %v2609, %v2686
        %v2751 = vadd.f32 %v2610, %v2687
        %s2752 = scalar_lea.vmem %s3, 7
        %v2753 = vld [vmem:[%s2752] ss:$8 sm:$0x3]
        %v2755 = vlaneseq
        %v2756 = vshrl.u32 %v2755, 7
        %v2757 = vsub.s32 0, %v2756
        %v2758 = vrot.slane %v2753, %v2757
        %v2759 = vlaneseq
        %v2760 = vshrl.u32 %v2759, 7
        %v2761 = vsub.s32 1, %v2760
        %v2762 = vrot.slane %v2753, %v2761
        %v2765 = vmul.f32 %v1247, %v2758
        %v2766 = vmul.f32 %v1248, %v2762
        %v2767 = vmul.f32 %v1249, %v2758
        %v2768 = vmul.f32 %v1250, %v2762
        %v2769 = vmul.f32 %v1251, %v2758
        %v2770 = vmul.f32 %v1252, %v2762
        %v2771 = vmul.f32 %v1253, %v2758
        %v2772 = vmul.f32 %v1254, %v2762
        %v2773 = vmul.f32 %v1255, %v2758
        %v2774 = vmul.f32 %v1256, %v2762
        %v2775 = vmul.f32 %v1257, %v2758
        %v2776 = vmul.f32 %v1258, %v2762
        %v2777 = vmul.f32 %v1259, %v2758
        %v2778 = vmul.f32 %v1260, %v2762
        %v2779 = vmul.f32 %v1261, %v2758
        %v2780 = vmul.f32 %v1262, %v2762
        %v2781 = vmul.f32 %v1263, %v2758
        %v2782 = vmul.f32 %v1264, %v2762
        %v2783 = vmul.f32 %v1265, %v2758
        %v2784 = vmul.f32 %v1266, %v2762
        %v2785 = vmul.f32 %v1267, %v2758
        %v2786 = vmul.f32 %v1268, %v2762
        %v2787 = vmul.f32 %v1269, %v2758
        %v2788 = vmul.f32 %v1270, %v2762
        %v2789 = vmul.f32 %v1271, %v2758
        %v2790 = vmul.f32 %v1272, %v2762
        %v2791 = vmul.f32 %v1273, %v2758
        %v2792 = vmul.f32 %v1274, %v2762
        %v2793 = vmul.f32 %v1275, %v2758
        %v2794 = vmul.f32 %v1276, %v2762
        %v2795 = vmul.f32 %v1277, %v2758
        %v2796 = vmul.f32 %v1278, %v2762
        %v2797 = vmul.f32 %v1279, %v2758
        %v2798 = vmul.f32 %v1280, %v2762
        %v2799 = vmul.f32 %v1281, %v2758
        %v2800 = vmul.f32 %v1282, %v2762
        %v2801 = vmul.f32 %v1283, %v2758
        %v2802 = vmul.f32 %v1284, %v2762
        %v2803 = vmul.f32 %v1285, %v2758
        %v2804 = vmul.f32 %v1286, %v2762
        %v2805 = vmul.f32 %v1287, %v2758
        %v2806 = vmul.f32 %v1288, %v2762
        %v2807 = vmul.f32 %v1289, %v2758
        %v2808 = vmul.f32 %v1290, %v2762
        %v2809 = vmul.f32 %v1291, %v2758
        %v2810 = vmul.f32 %v1292, %v2762
        %v2811 = vmul.f32 %v1293, %v2758
        %v2812 = vmul.f32 %v1294, %v2762
        %v2813 = vmul.f32 %v1295, %v2758
        %v2814 = vmul.f32 %v1296, %v2762
        %v2815 = vmul.f32 %v1297, %v2758
        %v2816 = vmul.f32 %v1298, %v2762
        %v2817 = vmul.f32 %v1299, %v2758
        %v2818 = vmul.f32 %v1300, %v2762
        %v2819 = vmul.f32 %v1301, %v2758
        %v2820 = vmul.f32 %v1302, %v2762
        %v2821 = vmul.f32 %v1303, %v2758
        %v2822 = vmul.f32 %v1304, %v2762
        %v2823 = vmul.f32 %v1305, %v2758
        %v2824 = vmul.f32 %v1306, %v2762
        %v2825 = vmul.f32 %v2758, 0.0
        %v2826 = vmul.f32 %v2762, 0.0
        %v2827 = vadd.f32 %v2688, %v2765
        %v2828 = vadd.f32 %v2689, %v2766
        %v2829 = vadd.f32 %v2690, %v2767
        %v2830 = vadd.f32 %v2691, %v2768
        %v2831 = vadd.f32 %v2692, %v2769
        %v2832 = vadd.f32 %v2693, %v2770
        %v2833 = vadd.f32 %v2694, %v2771
        %v2834 = vadd.f32 %v2695, %v2772
        %v2835 = vadd.f32 %v2696, %v2773
        %v2836 = vadd.f32 %v2697, %v2774
        %v2837 = vadd.f32 %v2698, %v2775
        %v2838 = vadd.f32 %v2699, %v2776
        %v2839 = vadd.f32 %v2700, %v2777
        %v2840 = vadd.f32 %v2701, %v2778
        %v2841 = vadd.f32 %v2702, %v2779
        %v2842 = vadd.f32 %v2703, %v2780
        %v2843 = vadd.f32 %v2704, %v2781
        %v2844 = vadd.f32 %v2705, %v2782
        %v2845 = vadd.f32 %v2706, %v2783
        %v2846 = vadd.f32 %v2707, %v2784
        %v2847 = vadd.f32 %v2708, %v2785
        %v2848 = vadd.f32 %v2709, %v2786
        %v2849 = vadd.f32 %v2710, %v2787
        %v2850 = vadd.f32 %v2711, %v2788
        %v2851 = vadd.f32 %v2712, %v2789
        %v2852 = vadd.f32 %v2713, %v2790
        %v2853 = vadd.f32 %v2714, %v2791
        %v2854 = vadd.f32 %v2715, %v2792
        %v2855 = vadd.f32 %v2716, %v2793
        %v2856 = vadd.f32 %v2717, %v2794
        %v2857 = vadd.f32 %v2718, %v2795
        %v2858 = vadd.f32 %v2719, %v2796
        %v2859 = vadd.f32 %v2720, %v2797
        %v2860 = vadd.f32 %v2721, %v2798
        %v2861 = vadd.f32 %v2722, %v2799
        %v2862 = vadd.f32 %v2723, %v2800
        %v2863 = vadd.f32 %v2724, %v2801
        %v2864 = vadd.f32 %v2725, %v2802
        %v2865 = vadd.f32 %v2726, %v2803
        %v2866 = vadd.f32 %v2727, %v2804
        %v2867 = vadd.f32 %v2728, %v2805
        %v2868 = vadd.f32 %v2729, %v2806
        %v2869 = vadd.f32 %v2730, %v2807
        %v2870 = vadd.f32 %v2731, %v2808
        %v2871 = vadd.f32 %v2732, %v2809
        %v2872 = vadd.f32 %v2733, %v2810
        %v2873 = vadd.f32 %v2734, %v2811
        %v2874 = vadd.f32 %v2735, %v2812
        %v2875 = vadd.f32 %v2736, %v2813
        %v2876 = vadd.f32 %v2737, %v2814
        %v2877 = vadd.f32 %v2738, %v2815
        %v2878 = vadd.f32 %v2739, %v2816
        %v2879 = vadd.f32 %v2740, %v2817
        %v2880 = vadd.f32 %v2741, %v2818
        %v2881 = vadd.f32 %v2742, %v2819
        %v2882 = vadd.f32 %v2743, %v2820
        %v2883 = vadd.f32 %v2744, %v2821
        %v2884 = vadd.f32 %v2745, %v2822
        %v2885 = vadd.f32 %v2746, %v2823
        %v2886 = vadd.f32 %v2747, %v2824
        %v2887 = vadd.f32 %v2748, %v2825
        %v2888 = vadd.f32 %v2749, %v2826
        %v2889 = vadd.f32 %v2750, %v2825
        %v2890 = vadd.f32 %v2751, %v2826
        %s2891 = scalar_lea.vmem %s3, 16
        %v2892 = vld [vmem:[%s2891] ss:$8 sm:$0x3]
        %v2894 = vlaneseq
        %v2895 = vshrl.u32 %v2894, 7
        %v2896 = vsub.s32 0, %v2895
        %v2897 = vrot.slane %v2892, %v2896
        %v2898 = vlaneseq
        %v2899 = vshrl.u32 %v2898, 7
        %v2900 = vsub.s32 1, %v2899
        %v2901 = vrot.slane %v2892, %v2900
        %v2904 = vmul.f32 %v1581, %v2897
        %v2905 = vmul.f32 %v1584, %v2901
        %v2906 = vmul.f32 %v1738, %v2897
        %v2907 = vmul.f32 %v1739, %v2901
        %v2908 = vmul.f32 %v1587, %v2897
        %v2909 = vmul.f32 %v1590, %v2901
        %v2910 = vmul.f32 %v1740, %v2897
        %v2911 = vmul.f32 %v1741, %v2901
        %v2912 = vmul.f32 %v1593, %v2897
        %v2913 = vmul.f32 %v1596, %v2901
        %v2914 = vmul.f32 %v1742, %v2897
        %v2915 = vmul.f32 %v1743, %v2901
        %v2916 = vmul.f32 %v1599, %v2897
        %v2917 = vmul.f32 %v1602, %v2901
        %v2918 = vmul.f32 %v1744, %v2897
        %v2919 = vmul.f32 %v1745, %v2901
        %v2920 = vmul.f32 %v1605, %v2897
        %v2921 = vmul.f32 %v1608, %v2901
        %v2922 = vmul.f32 %v1746, %v2897
        %v2923 = vmul.f32 %v1747, %v2901
        %v2924 = vmul.f32 %v1611, %v2897
        %v2925 = vmul.f32 %v1614, %v2901
        %v2926 = vmul.f32 %v1748, %v2897
        %v2927 = vmul.f32 %v1749, %v2901
        %v2928 = vmul.f32 %v1617, %v2897
        %v2929 = vmul.f32 %v1620, %v2901
        %v2930 = vmul.f32 %v1750, %v2897
        %v2931 = vmul.f32 %v1751, %v2901
        %v2932 = vmul.f32 %v1623, %v2897
        %v2933 = vmul.f32 %v1626, %v2901
        %v2934 = vmul.f32 %v1752, %v2897
        %v2935 = vmul.f32 %v1753, %v2901
        %v2936 = vmul.f32 %v1629, %v2897
        %v2937 = vmul.f32 %v1632, %v2901
        %v2938 = vmul.f32 %v1754, %v2897
        %v2939 = vmul.f32 %v1755, %v2901
        %v2940 = vmul.f32 %v1635, %v2897
        %v2941 = vmul.f32 %v1638, %v2901
        %v2942 = vmul.f32 %v1756, %v2897
        %v2943 = vmul.f32 %v1757, %v2901
        %v2944 = vmul.f32 %v1641, %v2897
        %v2945 = vmul.f32 %v1644, %v2901
        %v2946 = vmul.f32 %v1758, %v2897
        %v2947 = vmul.f32 %v1759, %v2901
        %v2948 = vmul.f32 %v1647, %v2897
        %v2949 = vmul.f32 %v1650, %v2901
        %v2950 = vmul.f32 %v1760, %v2897
        %v2951 = vmul.f32 %v1761, %v2901
        %v2952 = vmul.f32 %v1653, %v2897
        %v2953 = vmul.f32 %v1656, %v2901
        %v2954 = vmul.f32 %v1762, %v2897
        %v2955 = vmul.f32 %v1763, %v2901
        %v2956 = vmul.f32 %v1659, %v2897
        %v2957 = vmul.f32 %v1662, %v2901
        %v2958 = vmul.f32 %v1764, %v2897
        %v2959 = vmul.f32 %v1765, %v2901
        %v2960 = vmul.f32 %v1665, %v2897
        %v2961 = vmul.f32 %v1668, %v2901
        %v2962 = vmul.f32 %v1766, %v2897
        %v2963 = vmul.f32 %v1767, %v2901
        %v2964 = vmul.f32 %v1572, %v2897
        %v2965 = vmul.f32 %v1572, %v2901
        %v2966 = vmul.f32 %v1735, %v2897
        %v2967 = vmul.f32 %v1735, %v2901
        %v2968 = vadd.f32 %v2827, %v2904
        %v2969 = vadd.f32 %v2828, %v2905
        %v2970 = vadd.f32 %v2829, %v2906
        %v2971 = vadd.f32 %v2830, %v2907
        %v2972 = vadd.f32 %v2831, %v2908
        %v2973 = vadd.f32 %v2832, %v2909
        %v2974 = vadd.f32 %v2833, %v2910
        %v2975 = vadd.f32 %v2834, %v2911
        %v2976 = vadd.f32 %v2835, %v2912
        %v2977 = vadd.f32 %v2836, %v2913
        %v2978 = vadd.f32 %v2837, %v2914
        %v2979 = vadd.f32 %v2838, %v2915
        %v2980 = vadd.f32 %v2839, %v2916
        %v2981 = vadd.f32 %v2840, %v2917
        %v2982 = vadd.f32 %v2841, %v2918
        %v2983 = vadd.f32 %v2842, %v2919
        %v2984 = vadd.f32 %v2843, %v2920
        %v2985 = vadd.f32 %v2844, %v2921
        %v2986 = vadd.f32 %v2845, %v2922
        %v2987 = vadd.f32 %v2846, %v2923
        %v2988 = vadd.f32 %v2847, %v2924
        %v2989 = vadd.f32 %v2848, %v2925
        %v2990 = vadd.f32 %v2849, %v2926
        %v2991 = vadd.f32 %v2850, %v2927
        %v2992 = vadd.f32 %v2851, %v2928
        %v2993 = vadd.f32 %v2852, %v2929
        %v2994 = vadd.f32 %v2853, %v2930
        %v2995 = vadd.f32 %v2854, %v2931
        %v2996 = vadd.f32 %v2855, %v2932
        %v2997 = vadd.f32 %v2856, %v2933
        %v2998 = vadd.f32 %v2857, %v2934
        %v2999 = vadd.f32 %v2858, %v2935
        %v3000 = vadd.f32 %v2859, %v2936
        %v3001 = vadd.f32 %v2860, %v2937
        %v3002 = vadd.f32 %v2861, %v2938
        %v3003 = vadd.f32 %v2862, %v2939
        %v3004 = vadd.f32 %v2863, %v2940
        %v3005 = vadd.f32 %v2864, %v2941
        %v3006 = vadd.f32 %v2865, %v2942
        %v3007 = vadd.f32 %v2866, %v2943
        %v3008 = vadd.f32 %v2867, %v2944
        %v3009 = vadd.f32 %v2868, %v2945
        %v3010 = vadd.f32 %v2869, %v2946
        %v3011 = vadd.f32 %v2870, %v2947
        %v3012 = vadd.f32 %v2871, %v2948
        %v3013 = vadd.f32 %v2872, %v2949
        %v3014 = vadd.f32 %v2873, %v2950
        %v3015 = vadd.f32 %v2874, %v2951
        %v3016 = vadd.f32 %v2875, %v2952
        %v3017 = vadd.f32 %v2876, %v2953
        %v3018 = vadd.f32 %v2877, %v2954
        %v3019 = vadd.f32 %v2878, %v2955
        %v3020 = vadd.f32 %v2879, %v2956
        %v3021 = vadd.f32 %v2880, %v2957
        %v3022 = vadd.f32 %v2881, %v2958
        %v3023 = vadd.f32 %v2882, %v2959
        %v3024 = vadd.f32 %v2883, %v2960
        %v3025 = vadd.f32 %v2884, %v2961
        %v3026 = vadd.f32 %v2885, %v2962
        %v3027 = vadd.f32 %v2886, %v2963
        %v3028 = vadd.f32 %v2887, %v2964
        %v3029 = vadd.f32 %v2888, %v2965
        %v3030 = vadd.f32 %v2889, %v2966
        %v3031 = vadd.f32 %v2890, %v2967
        %v3032 = vld [vmem:[%s6 + $0x3] sm:$0x3]
        %v3034 = vlaneseq
        %v3035 = vshrl.u32 %v3034, 7
        %v3036 = vsub.s32 0, %v3035
        %v3037 = vrot.slane %v3032, %v3036
        %v3038 = vlaneseq
        %v3039 = vshrl.u32 %v3038, 7
        %v3040 = vsub.s32 1, %v3039
        %v3041 = vrot.slane %v3032, %v3040
        %v3044 = vadd.f32 %v2968, %v3037
        %v3045 = vadd.f32 %v2969, %v3041
        %v3046 = vadd.f32 %v2970, %v3037
        %v3047 = vadd.f32 %v2971, %v3041
        %v3048 = vadd.f32 %v2972, %v3037
        %v3049 = vadd.f32 %v2973, %v3041
        %v3050 = vadd.f32 %v2974, %v3037
        %v3051 = vadd.f32 %v2975, %v3041
        %v3052 = vadd.f32 %v2976, %v3037
        %v3053 = vadd.f32 %v2977, %v3041
        %v3054 = vadd.f32 %v2978, %v3037
        %v3055 = vadd.f32 %v2979, %v3041
        %v3056 = vadd.f32 %v2980, %v3037
        %v3057 = vadd.f32 %v2981, %v3041
        %v3058 = vadd.f32 %v2982, %v3037
        %v3059 = vadd.f32 %v2983, %v3041
        %v3060 = vadd.f32 %v2984, %v3037
        %v3061 = vadd.f32 %v2985, %v3041
        %v3062 = vadd.f32 %v2986, %v3037
        %v3063 = vadd.f32 %v2987, %v3041
        %v3064 = vadd.f32 %v2988, %v3037
        %v3065 = vadd.f32 %v2989, %v3041
        %v3066 = vadd.f32 %v2990, %v3037
        %v3067 = vadd.f32 %v2991, %v3041
        %v3068 = vadd.f32 %v2992, %v3037
        %v3069 = vadd.f32 %v2993, %v3041
        %v3070 = vadd.f32 %v2994, %v3037
        %v3071 = vadd.f32 %v2995, %v3041
        %v3072 = vadd.f32 %v2996, %v3037
        %v3073 = vadd.f32 %v2997, %v3041
        %v3074 = vadd.f32 %v2998, %v3037
        %v3075 = vadd.f32 %v2999, %v3041
        %v3076 = vadd.f32 %v3000, %v3037
        %v3077 = vadd.f32 %v3001, %v3041
        %v3078 = vadd.f32 %v3002, %v3037
        %v3079 = vadd.f32 %v3003, %v3041
        %v3080 = vadd.f32 %v3004, %v3037
        %v3081 = vadd.f32 %v3005, %v3041
        %v3082 = vadd.f32 %v3006, %v3037
        %v3083 = vadd.f32 %v3007, %v3041
        %v3084 = vadd.f32 %v3008, %v3037
        %v3085 = vadd.f32 %v3009, %v3041
        %v3086 = vadd.f32 %v3010, %v3037
        %v3087 = vadd.f32 %v3011, %v3041
        %v3088 = vadd.f32 %v3012, %v3037
        %v3089 = vadd.f32 %v3013, %v3041
        %v3090 = vadd.f32 %v3014, %v3037
        %v3091 = vadd.f32 %v3015, %v3041
        %v3092 = vadd.f32 %v3016, %v3037
        %v3093 = vadd.f32 %v3017, %v3041
        %v3094 = vadd.f32 %v3018, %v3037
        %v3095 = vadd.f32 %v3019, %v3041
        %v3096 = vadd.f32 %v3020, %v3037
        %v3097 = vadd.f32 %v3021, %v3041
        %v3098 = vadd.f32 %v3022, %v3037
        %v3099 = vadd.f32 %v3023, %v3041
        %v3100 = vadd.f32 %v3024, %v3037
        %v3101 = vadd.f32 %v3025, %v3041
        %v3102 = vadd.f32 %v3026, %v3037
        %v3103 = vadd.f32 %v3027, %v3041
        %v3104 = vadd.f32 %v3028, %v3037
        %v3105 = vadd.f32 %v3029, %v3041
        %v3106 = vadd.f32 %v3030, %v3037
        %v3107 = vadd.f32 %v3031, %v3041
        %v3108 = vmax.f32 %v3044, 0.0
        %v3109 = vmax.f32 %v3045, 0.0
        %v3110 = vmax.f32 %v3046, 0.0
        %v3111 = vmax.f32 %v3047, 0.0
        %v3112 = vmax.f32 %v3048, 0.0
        %v3113 = vmax.f32 %v3049, 0.0
        %v3114 = vmax.f32 %v3050, 0.0
        %v3115 = vmax.f32 %v3051, 0.0
        %v3116 = vmax.f32 %v3052, 0.0
        %v3117 = vmax.f32 %v3053, 0.0
        %v3118 = vmax.f32 %v3054, 0.0
        %v3119 = vmax.f32 %v3055, 0.0
        %v3120 = vmax.f32 %v3056, 0.0
        %v3121 = vmax.f32 %v3057, 0.0
        %v3122 = vmax.f32 %v3058, 0.0
        %v3123 = vmax.f32 %v3059, 0.0
        %v3124 = vmax.f32 %v3060, 0.0
        %v3125 = vmax.f32 %v3061, 0.0
        %v3126 = vmax.f32 %v3062, 0.0
        %v3127 = vmax.f32 %v3063, 0.0
        %v3128 = vmax.f32 %v3064, 0.0
        %v3129 = vmax.f32 %v3065, 0.0
        %v3130 = vmax.f32 %v3066, 0.0
        %v3131 = vmax.f32 %v3067, 0.0
        %v3132 = vmax.f32 %v3068, 0.0
        %v3133 = vmax.f32 %v3069, 0.0
        %v3134 = vmax.f32 %v3070, 0.0
        %v3135 = vmax.f32 %v3071, 0.0
        %v3136 = vmax.f32 %v3072, 0.0
        %v3137 = vmax.f32 %v3073, 0.0
        %v3138 = vmax.f32 %v3074, 0.0
        %v3139 = vmax.f32 %v3075, 0.0
        %v3140 = vmax.f32 %v3076, 0.0
        %v3141 = vmax.f32 %v3077, 0.0
        %v3142 = vmax.f32 %v3078, 0.0
        %v3143 = vmax.f32 %v3079, 0.0
        %v3144 = vmax.f32 %v3080, 0.0
        %v3145 = vmax.f32 %v3081, 0.0
        %v3146 = vmax.f32 %v3082, 0.0
        %v3147 = vmax.f32 %v3083, 0.0
        %v3148 = vmax.f32 %v3084, 0.0
        %v3149 = vmax.f32 %v3085, 0.0
        %v3150 = vmax.f32 %v3086, 0.0
        %v3151 = vmax.f32 %v3087, 0.0
        %v3152 = vmax.f32 %v3088, 0.0
        %v3153 = vmax.f32 %v3089, 0.0
        %v3154 = vmax.f32 %v3090, 0.0
        %v3155 = vmax.f32 %v3091, 0.0
        %v3156 = vmax.f32 %v3092, 0.0
        %v3157 = vmax.f32 %v3093, 0.0
        %v3158 = vmax.f32 %v3094, 0.0
        %v3159 = vmax.f32 %v3095, 0.0
        %v3160 = vmax.f32 %v3096, 0.0
        %v3161 = vmax.f32 %v3097, 0.0
        %v3162 = vmax.f32 %v3098, 0.0
        %v3163 = vmax.f32 %v3099, 0.0
        %v3164 = vmax.f32 %v3100, 0.0
        %v3165 = vmax.f32 %v3101, 0.0
        %v3166 = vmax.f32 %v3102, 0.0
        %v3167 = vmax.f32 %v3103, 0.0
        %v3168 = vmax.f32 %v3104, 0.0
        %v3169 = vmax.f32 %v3105, 0.0
        %v3170 = vmax.f32 %v3106, 0.0
        %v3171 = vmax.f32 %v3107, 0.0
        %v3172 = vpack.c.bf16 %v3110, %v3108
        %v3173 = vpack.c.bf16 %v3111, %v3109
        %v3174 = vpack.c.bf16 %v3114, %v3112
        %v3175 = vpack.c.bf16 %v3115, %v3113
        %v3176 = vpack.c.bf16 %v3118, %v3116
        %v3177 = vpack.c.bf16 %v3119, %v3117
        %v3178 = vpack.c.bf16 %v3122, %v3120
        %v3179 = vpack.c.bf16 %v3123, %v3121
        %v3180 = vpack.c.bf16 %v3126, %v3124
        %v3181 = vpack.c.bf16 %v3127, %v3125
        %v3182 = vpack.c.bf16 %v3130, %v3128
        %v3183 = vpack.c.bf16 %v3131, %v3129
        %v3184 = vpack.c.bf16 %v3134, %v3132
        %v3185 = vpack.c.bf16 %v3135, %v3133
        %v3186 = vpack.c.bf16 %v3138, %v3136
        %v3187 = vpack.c.bf16 %v3139, %v3137
        %v3188 = vpack.c.bf16 %v3142, %v3140
        %v3189 = vpack.c.bf16 %v3143, %v3141
        %v3190 = vpack.c.bf16 %v3146, %v3144
        %v3191 = vpack.c.bf16 %v3147, %v3145
        %v3192 = vpack.c.bf16 %v3150, %v3148
        %v3193 = vpack.c.bf16 %v3151, %v3149
        %v3194 = vpack.c.bf16 %v3154, %v3152
        %v3195 = vpack.c.bf16 %v3155, %v3153
        %v3196 = vpack.c.bf16 %v3158, %v3156
        %v3197 = vpack.c.bf16 %v3159, %v3157
        %v3198 = vpack.c.bf16 %v3162, %v3160
        %v3199 = vpack.c.bf16 %v3163, %v3161
        %v3200 = vpack.c.bf16 %v3166, %v3164
        %v3201 = vpack.c.bf16 %v3167, %v3165
        %v3202 = vpack.c.bf16 %v3170, %v3168
        %v3203 = vpack.c.bf16 %v3171, %v3169
        %v3204 = vld [vmem:[%s4] sm:$0xf]
        %v3205 = vld [vmem:[%s4 + $0x4] sm:$0xf]
        %v3206 = vld [vmem:[%s4 + $0x8] sm:$0xf]
        %v3207 = vld [vmem:[%s4 + $0xc] sm:$0xf]
        %v3208 = vld [vmem:[%s4 + $0x10] sm:$0xf]
        %v3209 = vld [vmem:[%s4 + $0x14] sm:$0xf]
        %v3210 = vld [vmem:[%s4 + $0x18] sm:$0xf]
        %v3211 = vld [vmem:[%s4 + $0x1c] sm:$0xf]
        %v3212 = vld [vmem:[%s4 + $0x20] sm:$0xf]
        %v3213 = vld [vmem:[%s4 + $0x24] sm:$0xf]
        %v3214 = vld [vmem:[%s4 + $0x28] sm:$0xf]
        %v3215 = vld [vmem:[%s4 + $0x2c] sm:$0xf]
        %v3216 = vld [vmem:[%s4 + $0x30] sm:$0xf]
        %v3217 = vld [vmem:[%s4 + $0x34] sm:$0xf]
        %v3218 = vld [vmem:[%s4 + $0x38] sm:$0xf]
        %v3219 = vld [vmem:[%s4 + $0x3c] sm:$0xf]
        %v3220 = vld [vmem:[%s4 + $0x40] sm:$0xf]
        %v3221 = vld [vmem:[%s4 + $0x44] sm:$0xf]
        %v3222 = vld [vmem:[%s4 + $0x48] sm:$0xf]
        %v3223 = vld [vmem:[%s4 + $0x4c] sm:$0xf]
        %v3224 = vld [vmem:[%s4 + $0x50] sm:$0xf]
        %v3225 = vld [vmem:[%s4 + $0x54] sm:$0xf]
        %v3226 = vld [vmem:[%s4 + $0x58] sm:$0xf]
        %v3227 = vld [vmem:[%s4 + $0x5c] sm:$0xf]
        %v3228 = vld [vmem:[%s4 + $0x60] sm:$0xf]
        %v3229 = vld [vmem:[%s4 + $0x64] sm:$0xf]
        %v3230 = vld [vmem:[%s4 + $0x68] sm:$0xf]
        %v3231 = vld [vmem:[%s4 + $0x6c] sm:$0xf]
        %v3232 = vld [vmem:[%s4 + $0x70] sm:$0xf]
        %v3233 = vld [vmem:[%s4 + $0x74] sm:$0xf]
        %v3234 = vld [vmem:[%s4 + $0x78] sm:$0xf]
        %v3235 = vld [vmem:[%s4 + $0x7c] sm:$0xf]
        %v3236 = vld [vmem:[%s6 + $0x5] sm:$0x1]
        %v3238 = vlaneseq
        %v3239 = vshrl.u32 %v3238, 7
        %v3240 = vsub.s32 0, %v3239
        %v3241 = vrot.slane %v3236, %v3240
        %v3275 = vunpack.c.l.b16 %v3204
        %v3276 = vunpack.c.l.b16 %v3205
        %v3277 = vunpack.c.l.b16 %v3206
        %v3278 = vunpack.c.l.b16 %v3207
        %v3279 = vunpack.c.l.b16 %v3208
        %v3280 = vunpack.c.l.b16 %v3209
        %v3281 = vunpack.c.l.b16 %v3210
        %v3282 = vunpack.c.l.b16 %v3211
        %v3283 = vunpack.c.l.b16 %v3212
        %v3284 = vunpack.c.l.b16 %v3213
        %v3285 = vunpack.c.l.b16 %v3214
        %v3286 = vunpack.c.l.b16 %v3215
        %v3287 = vunpack.c.l.b16 %v3216
        %v3288 = vunpack.c.l.b16 %v3217
        %v3289 = vunpack.c.l.b16 %v3218
        %v3290 = vunpack.c.l.b16 %v3219
        %v3291 = vunpack.c.l.b16 %v3220
        %v3292 = vunpack.c.l.b16 %v3221
        %v3293 = vunpack.c.l.b16 %v3222
        %v3294 = vunpack.c.l.b16 %v3223
        %v3295 = vunpack.c.l.b16 %v3224
        %v3296 = vunpack.c.l.b16 %v3225
        %v3297 = vunpack.c.l.b16 %v3226
        %v3298 = vunpack.c.l.b16 %v3227
        %v3299 = vunpack.c.l.b16 %v3228
        %v3300 = vunpack.c.l.b16 %v3229
        %v3301 = vunpack.c.l.b16 %v3230
        %v3302 = vunpack.c.l.b16 %v3231
        %v3303 = vunpack.c.l.b16 %v3232
        %v3304 = vunpack.c.l.b16 %v3233
        %v3305 = vunpack.c.l.b16 %v3234
        %v3306 = vunpack.c.l.b16 %v3235
        %v3307 = vpack.c.b16 %v3276, %v3275
        %v3308 = vpack.c.b16 %v3278, %v3277
        %v3309 = vpack.c.b16 %v3280, %v3279
        %v3310 = vpack.c.b16 %v3282, %v3281
        %v3311 = vpack.c.b16 %v3284, %v3283
        %v3312 = vpack.c.b16 %v3286, %v3285
        %v3313 = vpack.c.b16 %v3288, %v3287
        %v3314 = vpack.c.b16 %v3290, %v3289
        %v3315 = vpack.c.b16 %v3292, %v3291
        %v3316 = vpack.c.b16 %v3294, %v3293
        %v3317 = vpack.c.b16 %v3296, %v3295
        %v3318 = vpack.c.b16 %v3298, %v3297
        %v3319 = vpack.c.b16 %v3300, %v3299
        %v3320 = vpack.c.b16 %v3302, %v3301
        %v3321 = vpack.c.b16 %v3304, %v3303
        %v3322 = vpack.c.b16 %v3306, %v3305
        %3339 = vmatprep.subr.bf16.mxu0 0
        %3340 = vmatpush1.bf16.msra.mxu0 %v3307
        %3341 = vmatprep.subr.bf16.mxu0 0
        %3342 = vmatpush1.bf16.msra.mxu0 %v3308
        %3343 = vmatprep.subr.bf16.mxu0 0
        %3344 = vmatpush1.bf16.msra.mxu0 %v3309
        %3345 = vmatprep.subr.bf16.mxu0 0
        %3346 = vmatpush1.bf16.msra.mxu0 %v3310
        %3347 = vmatprep.subr.bf16.mxu0 0
        %3348 = vmatpush1.bf16.msra.mxu0 %v3311
        %3349 = vmatprep.subr.bf16.mxu0 0
        %3350 = vmatpush1.bf16.msra.mxu0 %v3312
        %3351 = vmatprep.subr.bf16.mxu0 0
        %3352 = vmatpush1.bf16.msra.mxu0 %v3313
        %3353 = vmatprep.subr.bf16.mxu0 0
        %3354 = vmatpush1.bf16.msra.mxu0 %v3314
        %3355 = vmatprep.subr.bf16.mxu0 0
        %3356 = vmatpush1.bf16.msra.mxu0 %v3315
        %3357 = vmatprep.subr.bf16.mxu0 0
        %3358 = vmatpush1.bf16.msra.mxu0 %v3316
        %3359 = vmatprep.subr.bf16.mxu0 0
        %3360 = vmatpush1.bf16.msra.mxu0 %v3317
        %3361 = vmatprep.subr.bf16.mxu0 0
        %3362 = vmatpush1.bf16.msra.mxu0 %v3318
        %3363 = vmatprep.subr.bf16.mxu0 0
        %3364 = vmatpush1.bf16.msra.mxu0 %v3319
        %3365 = vmatprep.subr.bf16.mxu0 0
        %3366 = vmatpush1.bf16.msra.mxu0 %v3320
        %3367 = vmatprep.subr.bf16.mxu0 0
        %3368 = vmatpush1.bf16.msra.mxu0 %v3321
        %3369 = vmatprep.subr.bf16.mxu0 0
        %3370 = vmatpush1.bf16.msra.mxu0 %v3322
        %3371 = vmatprep.mubr.bf16.mxu0 %v3173
        %3372 = vmatmul.mubr.bf16.gmra.mrb[0].mxu0 %v3172
        %v3373 = vpop.f32.mrb[0].mxu0
        %v3374 = vadd.f32 %v3241, %v3373
        %v3375 = vpop.f32.mrb[0].mxu0
        %v3376 = vpop.f32.mrb[0].mxu0
        %v3377 = vadd.f32 %v3241, %v3376
        %v3378 = vpop.f32.mrb[0].mxu0
        %3379 = vmatprep.mubr.bf16.mxu0 %v3175
        %3380 = vmatmul.mubr.bf16.gmra.mrb[0].mxu0 %v3174
        %v3381 = vpop.f32.mrb[0].mxu0
        %v3382 = vadd.f32 %v3241, %v3381
        %v3383 = vpop.f32.mrb[0].mxu0
        %v3384 = vpop.f32.mrb[0].mxu0
        %v3385 = vadd.f32 %v3241, %v3384
        %v3386 = vpop.f32.mrb[0].mxu0
        %3387 = vmatprep.mubr.bf16.mxu0 %v3177
        %3388 = vmatmul.mubr.bf16.gmra.mrb[0].mxu0 %v3176
        %v3389 = vpop.f32.mrb[0].mxu0
        %v3390 = vadd.f32 %v3241, %v3389
        %v3391 = vpop.f32.mrb[0].mxu0
        %v3392 = vpop.f32.mrb[0].mxu0
        %v3393 = vadd.f32 %v3241, %v3392
        %v3394 = vpop.f32.mrb[0].mxu0
        %3395 = vmatprep.mubr.bf16.mxu0 %v3179
        %3396 = vmatmul.mubr.bf16.gmra.mrb[0].mxu0 %v3178
        %v3397 = vpop.f32.mrb[0].mxu0
        %v3398 = vadd.f32 %v3241, %v3397
        %v3399 = vpop.f32.mrb[0].mxu0
        %v3400 = vpop.f32.mrb[0].mxu0
        %v3401 = vadd.f32 %v3241, %v3400
        %v3402 = vpop.f32.mrb[0].mxu0
        %3403 = vmatprep.mubr.bf16.mxu0 %v3181
        %3404 = vmatmul.mubr.bf16.gmra.mrb[0].mxu0 %v3180
        %v3405 = vpop.f32.mrb[0].mxu0
        %v3406 = vadd.f32 %v3241, %v3405
        %v3407 = vpop.f32.mrb[0].mxu0
        %v3408 = vpop.f32.mrb[0].mxu0
        %v3409 = vadd.f32 %v3241, %v3408
        %v3410 = vpop.f32.mrb[0].mxu0
        %3411 = vmatprep.mubr.bf16.mxu0 %v3183
        %3412 = vmatmul.mubr.bf16.gmra.mrb[0].mxu0 %v3182
        %v3413 = vpop.f32.mrb[0].mxu0
        %v3414 = vadd.f32 %v3241, %v3413
        %v3415 = vpop.f32.mrb[0].mxu0
        %v3416 = vpop.f32.mrb[0].mxu0
        %v3417 = vadd.f32 %v3241, %v3416
        %v3418 = vpop.f32.mrb[0].mxu0
        %3419 = vmatprep.mubr.bf16.mxu0 %v3185
        %3420 = vmatmul.mubr.bf16.gmra.mrb[0].mxu0 %v3184
        %v3421 = vpop.f32.mrb[0].mxu0
        %v3422 = vadd.f32 %v3241, %v3421
        %v3423 = vpop.f32.mrb[0].mxu0
        %v3424 = vpop.f32.mrb[0].mxu0
        %v3425 = vadd.f32 %v3241, %v3424
        %v3426 = vpop.f32.mrb[0].mxu0
        %3427 = vmatprep.mubr.bf16.mxu0 %v3187
        %3428 = vmatmul.mubr.bf16.gmra.mrb[0].mxu0 %v3186
        %v3429 = vpop.f32.mrb[0].mxu0
        %v3430 = vadd.f32 %v3241, %v3429
        %v3431 = vpop.f32.mrb[0].mxu0
        %v3432 = vpop.f32.mrb[0].mxu0
        %v3433 = vadd.f32 %v3241, %v3432
        %v3434 = vpop.f32.mrb[0].mxu0
        %3435 = vmatprep.mubr.bf16.mxu0 %v3189
        %3436 = vmatmul.mubr.bf16.gmra.mrb[0].mxu0 %v3188
        %v3437 = vpop.f32.mrb[0].mxu0
        %v3438 = vadd.f32 %v3241, %v3437
        %v3439 = vpop.f32.mrb[0].mxu0
        %v3440 = vpop.f32.mrb[0].mxu0
        %v3441 = vadd.f32 %v3241, %v3440
        %v3442 = vpop.f32.mrb[0].mxu0
        %3443 = vmatprep.mubr.bf16.mxu0 %v3191
        %3444 = vmatmul.mubr.bf16.gmra.mrb[0].mxu0 %v3190
        %v3445 = vpop.f32.mrb[0].mxu0
        %v3446 = vadd.f32 %v3241, %v3445
        %v3447 = vpop.f32.mrb[0].mxu0
        %v3448 = vpop.f32.mrb[0].mxu0
        %v3449 = vadd.f32 %v3241, %v3448
        %v3450 = vpop.f32.mrb[0].mxu0
        %3451 = vmatprep.mubr.bf16.mxu0 %v3193
        %3452 = vmatmul.mubr.bf16.gmra.mrb[0].mxu0 %v3192
        %v3453 = vpop.f32.mrb[0].mxu0
        %v3454 = vadd.f32 %v3241, %v3453
        %v3455 = vpop.f32.mrb[0].mxu0
        %v3456 = vpop.f32.mrb[0].mxu0
        %v3457 = vadd.f32 %v3241, %v3456
        %v3458 = vpop.f32.mrb[0].mxu0
        %3459 = vmatprep.mubr.bf16.mxu0 %v3195
        %3460 = vmatmul.mubr.bf16.gmra.mrb[0].mxu0 %v3194
        %v3461 = vpop.f32.mrb[0].mxu0
        %v3462 = vadd.f32 %v3241, %v3461
        %v3463 = vpop.f32.mrb[0].mxu0
        %v3464 = vpop.f32.mrb[0].mxu0
        %v3465 = vadd.f32 %v3241, %v3464
        %v3466 = vpop.f32.mrb[0].mxu0
        %3467 = vmatprep.mubr.bf16.mxu0 %v3197
        %3468 = vmatmul.mubr.bf16.gmra.mrb[0].mxu0 %v3196
        %v3469 = vpop.f32.mrb[0].mxu0
        %v3470 = vadd.f32 %v3241, %v3469
        %v3471 = vpop.f32.mrb[0].mxu0
        %v3472 = vpop.f32.mrb[0].mxu0
        %v3473 = vadd.f32 %v3241, %v3472
        %v3474 = vpop.f32.mrb[0].mxu0
        %3475 = vmatprep.mubr.bf16.mxu0 %v3199
        %3476 = vmatmul.mubr.bf16.gmra.mrb[0].mxu0 %v3198
        %v3477 = vpop.f32.mrb[0].mxu0
        %v3478 = vadd.f32 %v3241, %v3477
        %v3479 = vpop.f32.mrb[0].mxu0
        %v3480 = vpop.f32.mrb[0].mxu0
        %v3481 = vadd.f32 %v3241, %v3480
        %v3482 = vpop.f32.mrb[0].mxu0
        %3483 = vmatprep.mubr.bf16.mxu0 %v3201
        %3484 = vmatmul.mubr.bf16.gmra.mrb[0].mxu0 %v3200
        %v3485 = vpop.f32.mrb[0].mxu0
        %v3486 = vadd.f32 %v3241, %v3485
        %v3487 = vpop.f32.mrb[0].mxu0
        %v3488 = vpop.f32.mrb[0].mxu0
        %v3489 = vadd.f32 %v3241, %v3488
        %v3490 = vpop.f32.mrb[0].mxu0
        %3491 = vmatprep.mubr.bf16.mxu0 %v3203
        %3492 = vmatmul.mubr.bf16.gmra.mrb[0].mxu0 %v3202
        %v3493 = vpop.f32.mrb[0].mxu0
        %v3494 = vadd.f32 %v3241, %v3493
        %v3495 = vpop.f32.mrb[0].mxu0
        %v3496 = vpop.f32.mrb[0].mxu0
        %v3497 = vadd.f32 %v3241, %v3496
        %v3498 = vpop.f32.mrb[0].mxu0
        %3499 = vdwg.mxu0
        %v3500 = vadd.f32 %v3374, %v894
        %v3501 = vadd.f32 %v3377, %v895
        %v3502 = vadd.f32 %v3382, %v896
        %v3503 = vadd.f32 %v3385, %v897
        %v3504 = vadd.f32 %v3390, %v898
        %v3505 = vadd.f32 %v3393, %v899
        %v3506 = vadd.f32 %v3398, %v900
        %v3507 = vadd.f32 %v3401, %v901
        %v3508 = vadd.f32 %v3406, %v902
        %v3509 = vadd.f32 %v3409, %v903
        %v3510 = vadd.f32 %v3414, %v904
        %v3511 = vadd.f32 %v3417, %v905
        %v3512 = vadd.f32 %v3422, %v906
        %v3513 = vadd.f32 %v3425, %v907
        %v3514 = vadd.f32 %v3430, %v908
        %v3515 = vadd.f32 %v3433, %v909
        %v3516 = vadd.f32 %v3438, %v910
        %v3517 = vadd.f32 %v3441, %v911
        %v3518 = vadd.f32 %v3446, %v912
        %v3519 = vadd.f32 %v3449, %v913
        %v3520 = vadd.f32 %v3454, %v914
        %v3521 = vadd.f32 %v3457, %v915
        %v3522 = vadd.f32 %v3462, %v916
        %v3523 = vadd.f32 %v3465, %v917
        %v3524 = vadd.f32 %v3470, %v918
        %v3525 = vadd.f32 %v3473, %v919
        %v3526 = vadd.f32 %v3478, %v920
        %v3527 = vadd.f32 %v3481, %v921
        %v3528 = vadd.f32 %v3486, %v922
        %v3529 = vadd.f32 %v3489, %v923
        %v3530 = vadd.f32 %v3494, %v924
        %v3531 = vadd.f32 %v3497, %v925
        %v3532 = vpack.c.bf16 %v3501, %v3500
        %v3533 = vpack.c.bf16 %v3503, %v3502
        %v3534 = vpack.c.bf16 %v3505, %v3504
        %v3535 = vpack.c.bf16 %v3507, %v3506
        %v3536 = vpack.c.bf16 %v3509, %v3508
        %v3537 = vpack.c.bf16 %v3511, %v3510
        %v3538 = vpack.c.bf16 %v3513, %v3512
        %v3539 = vpack.c.bf16 %v3515, %v3514
        %v3540 = vpack.c.bf16 %v3517, %v3516
        %v3541 = vpack.c.bf16 %v3519, %v3518
        %v3542 = vpack.c.bf16 %v3521, %v3520
        %v3543 = vpack.c.bf16 %v3523, %v3522
        %v3544 = vpack.c.bf16 %v3525, %v3524
        %v3545 = vpack.c.bf16 %v3527, %v3526
        %v3546 = vpack.c.bf16 %v3529, %v3528
        %v3547 = vpack.c.bf16 %v3531, %v3530
        %v3548 = vld [vmem:[%s5] sm:$0xff]
        %v3549 = vld [vmem:[%s5 + $0x8] sm:$0xff]
        %v3550 = vld [vmem:[%s5 + $0x10] sm:$0xff]
        %v3551 = vld [vmem:[%s5 + $0x18] sm:$0xff]
        %v3552 = vld [vmem:[%s5 + $0x20] sm:$0xff]
        %v3553 = vld [vmem:[%s5 + $0x28] sm:$0xff]
        %v3554 = vld [vmem:[%s5 + $0x30] sm:$0xff]
        %v3555 = vld [vmem:[%s5 + $0x38] sm:$0xff]
        %v3556 = vld [vmem:[%s5 + $0x40] sm:$0xff]
        %v3557 = vld [vmem:[%s5 + $0x48] sm:$0xff]
        %v3558 = vld [vmem:[%s5 + $0x50] sm:$0xff]
        %v3559 = vld [vmem:[%s5 + $0x58] sm:$0xff]
        %v3560 = vld [vmem:[%s5 + $0x60] sm:$0xff]
        %v3561 = vld [vmem:[%s5 + $0x68] sm:$0xff]
        %v3562 = vld [vmem:[%s5 + $0x70] sm:$0xff]
        %v3563 = vld [vmem:[%s5 + $0x78] sm:$0xff]
        %v3564 = vld [vmem:[%s5 + $0x80] sm:$0xff]
        %v3565 = vld [vmem:[%s5 + $0x88] sm:$0xff]
        %v3566 = vld [vmem:[%s5 + $0x90] sm:$0xff]
        %v3567 = vld [vmem:[%s5 + $0x98] sm:$0xff]
        %v3568 = vld [vmem:[%s5 + $0xa0] sm:$0xff]
        %v3569 = vld [vmem:[%s5 + $0xa8] sm:$0xff]
        %v3570 = vld [vmem:[%s5 + $0xb0] sm:$0xff]
        %v3571 = vld [vmem:[%s5 + $0xb8] sm:$0xff]
        %v3572 = vld [vmem:[%s5 + $0xc0] sm:$0xff]
        %v3573 = vld [vmem:[%s5 + $0xc8] sm:$0xff]
        %v3574 = vld [vmem:[%s5 + $0xd0] sm:$0xff]
        %v3575 = vld [vmem:[%s5 + $0xd8] sm:$0xff]
        %v3576 = vld [vmem:[%s5 + $0xe0] sm:$0xff]
        %v3577 = vld [vmem:[%s5 + $0xe8] sm:$0xff]
        %v3578 = vld [vmem:[%s5 + $0xf0] sm:$0xff]
        %v3579 = vld [vmem:[%s5 + $0xf8] sm:$0xff]
        %v3580 = vld [vmem:[%s5 + $0x100] sm:$0xff]
        %v3581 = vld [vmem:[%s5 + $0x108] sm:$0xff]
        %v3582 = vld [vmem:[%s5 + $0x110] sm:$0xff]
        %v3583 = vld [vmem:[%s5 + $0x118] sm:$0xff]
        %v3584 = vld [vmem:[%s5 + $0x120] sm:$0xff]
        %v3585 = vld [vmem:[%s5 + $0x128] sm:$0xff]
        %v3586 = vld [vmem:[%s5 + $0x130] sm:$0xff]
        %v3587 = vld [vmem:[%s5 + $0x138] sm:$0xff]
        %v3588 = vld [vmem:[%s5 + $0x140] sm:$0xff]
        %v3589 = vld [vmem:[%s5 + $0x148] sm:$0xff]
        %v3590 = vld [vmem:[%s5 + $0x150] sm:$0xff]
        %v3591 = vld [vmem:[%s5 + $0x158] sm:$0xff]
        %v3592 = vld [vmem:[%s5 + $0x160] sm:$0xff]
        %v3593 = vld [vmem:[%s5 + $0x168] sm:$0xff]
        %v3594 = vld [vmem:[%s5 + $0x170] sm:$0xff]
        %v3595 = vld [vmem:[%s5 + $0x178] sm:$0xff]
        %v3596 = vld [vmem:[%s5 + $0x180] sm:$0xff]
        %v3597 = vld [vmem:[%s5 + $0x188] sm:$0xff]
        %v3598 = vld [vmem:[%s5 + $0x190] sm:$0xff]
        %v3599 = vld [vmem:[%s5 + $0x198] sm:$0xff]
        %v3600 = vld [vmem:[%s5 + $0x1a0] sm:$0xff]
        %v3601 = vld [vmem:[%s5 + $0x1a8] sm:$0xff]
        %v3602 = vld [vmem:[%s5 + $0x1b0] sm:$0xff]
        %v3603 = vld [vmem:[%s5 + $0x1b8] sm:$0xff]
        %v3604 = vld [vmem:[%s5 + $0x1c0] sm:$0xff]
        %v3605 = vld [vmem:[%s5 + $0x1c8] sm:$0xff]
        %v3606 = vld [vmem:[%s5 + $0x1d0] sm:$0xff]
        %v3607 = vld [vmem:[%s5 + $0x1d8] sm:$0xff]
        %v3608 = vld [vmem:[%s5 + $0x1e0] sm:$0xff]
        %v3609 = vld [vmem:[%s5 + $0x1e8] sm:$0xff]
        %v3610 = vld [vmem:[%s5 + $0x1f0] sm:$0xff]
        %v3611 = vld [vmem:[%s5 + $0x1f8] sm:$0xff]
        %v3612 = vld [vmem:[%s6 + $0x6] sm:$0xff]
        %v3614 = vlaneseq
        %v3615 = vshrl.u32 %v3614, 7
        %v3616 = vsub.s32 0, %v3615
        %v3617 = vrot.slane %v3612, %v3616
        %v3618 = vlaneseq
        %v3619 = vshrl.u32 %v3618, 7
        %v3620 = vsub.s32 1, %v3619
        %v3621 = vrot.slane %v3612, %v3620
        %v3622 = vlaneseq
        %v3623 = vshrl.u32 %v3622, 7
        %v3624 = vsub.s32 2, %v3623
        %v3625 = vrot.slane %v3612, %v3624
        %v3626 = vlaneseq
        %v3627 = vshrl.u32 %v3626, 7
        %v3628 = vsub.s32 3, %v3627
        %v3629 = vrot.slane %v3612, %v3628
        %v3630 = vlaneseq
        %v3631 = vshrl.u32 %v3630, 7
        %v3632 = vsub.s32 4, %v3631
        %v3633 = vrot.slane %v3612, %v3632
        %v3634 = vlaneseq
        %v3635 = vshrl.u32 %v3634, 7
        %v3636 = vsub.s32 5, %v3635
        %v3637 = vrot.slane %v3612, %v3636
        %v3638 = vlaneseq
        %v3639 = vshrl.u32 %v3638, 7
        %v3640 = vsub.s32 6, %v3639
        %v3641 = vrot.slane %v3612, %v3640
        %v3642 = vlaneseq
        %v3643 = vshrl.u32 %v3642, 7
        %v3644 = vsub.s32 7, %v3643
        %v3645 = vrot.slane %v3612, %v3644
        %v3718 = vunpack.c.l.b16 %v3548
        %v3719 = vunpack.c.h.b16 %v3548
        %v3720 = vunpack.c.l.b16 %v3549
        %v3721 = vunpack.c.h.b16 %v3549
        %v3722 = vunpack.c.l.b16 %v3550
        %v3723 = vunpack.c.h.b16 %v3550
        %v3724 = vunpack.c.l.b16 %v3551
        %v3725 = vunpack.c.h.b16 %v3551
        %v3726 = vunpack.c.l.b16 %v3552
        %v3727 = vunpack.c.h.b16 %v3552
        %v3728 = vunpack.c.l.b16 %v3553
        %v3729 = vunpack.c.h.b16 %v3553
        %v3730 = vunpack.c.l.b16 %v3554
        %v3731 = vunpack.c.h.b16 %v3554
        %v3732 = vunpack.c.l.b16 %v3555
        %v3733 = vunpack.c.h.b16 %v3555
        %v3734 = vunpack.c.l.b16 %v3556
        %v3735 = vunpack.c.h.b16 %v3556
        %v3736 = vunpack.c.l.b16 %v3557
        %v3737 = vunpack.c.h.b16 %v3557
        %v3738 = vunpack.c.l.b16 %v3558
        %v3739 = vunpack.c.h.b16 %v3558
        %v3740 = vunpack.c.l.b16 %v3559
        %v3741 = vunpack.c.h.b16 %v3559
        %v3742 = vunpack.c.l.b16 %v3560
        %v3743 = vunpack.c.h.b16 %v3560
        %v3744 = vunpack.c.l.b16 %v3561
        %v3745 = vunpack.c.h.b16 %v3561
        %v3746 = vunpack.c.l.b16 %v3562
        %v3747 = vunpack.c.h.b16 %v3562
        %v3748 = vunpack.c.l.b16 %v3563
        %v3749 = vunpack.c.h.b16 %v3563
        %v3750 = vunpack.c.l.b16 %v3564
        %v3751 = vunpack.c.h.b16 %v3564
        %v3752 = vunpack.c.l.b16 %v3565
        %v3753 = vunpack.c.h.b16 %v3565
        %v3754 = vunpack.c.l.b16 %v3566
        %v3755 = vunpack.c.h.b16 %v3566
        %v3756 = vunpack.c.l.b16 %v3567
        %v3757 = vunpack.c.h.b16 %v3567
        %v3758 = vunpack.c.l.b16 %v3568
        %v3759 = vunpack.c.h.b16 %v3568
        %v3760 = vunpack.c.l.b16 %v3569
        %v3761 = vunpack.c.h.b16 %v3569
        %v3762 = vunpack.c.l.b16 %v3570
        %v3763 = vunpack.c.h.b16 %v3570
        %v3764 = vunpack.c.l.b16 %v3571
        %v3765 = vunpack.c.h.b16 %v3571
        %v3766 = vunpack.c.l.b16 %v3572
        %v3767 = vunpack.c.h.b16 %v3572
        %v3768 = vunpack.c.l.b16 %v3573
        %v3769 = vunpack.c.h.b16 %v3573
        %v3770 = vunpack.c.l.b16 %v3574
        %v3771 = vunpack.c.h.b16 %v3574
        %v3772 = vunpack.c.l.b16 %v3575
        %v3773 = vunpack.c.h.b16 %v3575
        %v3774 = vunpack.c.l.b16 %v3576
        %v3775 = vunpack.c.h.b16 %v3576
        %v3776 = vunpack.c.l.b16 %v3577
        %v3777 = vunpack.c.h.b16 %v3577
        %v3778 = vunpack.c.l.b16 %v3578
        %v3779 = vunpack.c.h.b16 %v3578
        %v3780 = vunpack.c.l.b16 %v3579
        %v3781 = vunpack.c.h.b16 %v3579
        %v3782 = vunpack.c.l.b16 %v3580
        %v3783 = vunpack.c.h.b16 %v3580
        %v3784 = vunpack.c.l.b16 %v3581
        %v3785 = vunpack.c.h.b16 %v3581
        %v3786 = vunpack.c.l.b16 %v3582
        %v3787 = vunpack.c.h.b16 %v3582
        %v3788 = vunpack.c.l.b16 %v3583
        %v3789 = vunpack.c.h.b16 %v3583
        %v3790 = vunpack.c.l.b16 %v3584
        %v3791 = vunpack.c.h.b16 %v3584
        %v3792 = vunpack.c.l.b16 %v3585
        %v3793 = vunpack.c.h.b16 %v3585
        %v3794 = vunpack.c.l.b16 %v3586
        %v3795 = vunpack.c.h.b16 %v3586
        %v3796 = vunpack.c.l.b16 %v3587
        %v3797 = vunpack.c.h.b16 %v3587
        %v3798 = vunpack.c.l.b16 %v3588
        %v3799 = vunpack.c.h.b16 %v3588
        %v3800 = vunpack.c.l.b16 %v3589
        %v3801 = vunpack.c.h.b16 %v3589
        %v3802 = vunpack.c.l.b16 %v3590
        %v3803 = vunpack.c.h.b16 %v3590
        %v3804 = vunpack.c.l.b16 %v3591
        %v3805 = vunpack.c.h.b16 %v3591
        %v3806 = vunpack.c.l.b16 %v3592
        %v3807 = vunpack.c.h.b16 %v3592
        %v3808 = vunpack.c.l.b16 %v3593
        %v3809 = vunpack.c.h.b16 %v3593
        %v3810 = vunpack.c.l.b16 %v3594
        %v3811 = vunpack.c.h.b16 %v3594
        %v3812 = vunpack.c.l.b16 %v3595
        %v3813 = vunpack.c.h.b16 %v3595
        %v3814 = vunpack.c.l.b16 %v3596
        %v3815 = vunpack.c.h.b16 %v3596
        %v3816 = vunpack.c.l.b16 %v3597
        %v3817 = vunpack.c.h.b16 %v3597
        %v3818 = vunpack.c.l.b16 %v3598
        %v3819 = vunpack.c.h.b16 %v3598
        %v3820 = vunpack.c.l.b16 %v3599
        %v3821 = vunpack.c.h.b16 %v3599
        %v3822 = vunpack.c.l.b16 %v3600
        %v3823 = vunpack.c.h.b16 %v3600
        %v3824 = vunpack.c.l.b16 %v3601
        %v3825 = vunpack.c.h.b16 %v3601
        %v3826 = vunpack.c.l.b16 %v3602
        %v3827 = vunpack.c.h.b16 %v3602
        %v3828 = vunpack.c.l.b16 %v3603
        %v3829 = vunpack.c.h.b16 %v3603
        %v3830 = vunpack.c.l.b16 %v3604
        %v3831 = vunpack.c.h.b16 %v3604
        %v3832 = vunpack.c.l.b16 %v3605
        %v3833 = vunpack.c.h.b16 %v3605
        %v3834 = vunpack.c.l.b16 %v3606
        %v3835 = vunpack.c.h.b16 %v3606
        %v3836 = vunpack.c.l.b16 %v3607
        %v3837 = vunpack.c.h.b16 %v3607
        %v3838 = vunpack.c.l.b16 %v3608
        %v3839 = vunpack.c.h.b16 %v3608
        %v3840 = vunpack.c.l.b16 %v3609
        %v3841 = vunpack.c.h.b16 %v3609
        %v3842 = vunpack.c.l.b16 %v3610
        %v3843 = vunpack.c.h.b16 %v3610
        %v3844 = vunpack.c.l.b16 %v3611
        %v3845 = vunpack.c.h.b16 %v3611
        %v3846 = vpack.c.b16 %v3726, %v3718
        %v3847 = vpack.c.b16 %v3727, %v3719
        %v3848 = vpack.c.b16 %v3728, %v3720
        %v3849 = vpack.c.b16 %v3729, %v3721
        %v3850 = vpack.c.b16 %v3730, %v3722
        %v3851 = vpack.c.b16 %v3731, %v3723
        %v3852 = vpack.c.b16 %v3732, %v3724
        %v3853 = vpack.c.b16 %v3733, %v3725
        %v3854 = vpack.c.b16 %v3742, %v3734
        %v3855 = vpack.c.b16 %v3743, %v3735
        %v3856 = vpack.c.b16 %v3744, %v3736
        %v3857 = vpack.c.b16 %v3745, %v3737
        %v3858 = vpack.c.b16 %v3746, %v3738
        %v3859 = vpack.c.b16 %v3747, %v3739
        %v3860 = vpack.c.b16 %v3748, %v3740
        %v3861 = vpack.c.b16 %v3749, %v3741
        %v3862 = vpack.c.b16 %v3758, %v3750
        %v3863 = vpack.c.b16 %v3759, %v3751
        %v3864 = vpack.c.b16 %v3760, %v3752
        %v3865 = vpack.c.b16 %v3761, %v3753
        %v3866 = vpack.c.b16 %v3762, %v3754
        %v3867 = vpack.c.b16 %v3763, %v3755
        %v3868 = vpack.c.b16 %v3764, %v3756
        %v3869 = vpack.c.b16 %v3765, %v3757
        %v3870 = vpack.c.b16 %v3774, %v3766
        %v3871 = vpack.c.b16 %v3775, %v3767
        %v3872 = vpack.c.b16 %v3776, %v3768
        %v3873 = vpack.c.b16 %v3777, %v3769
        %v3874 = vpack.c.b16 %v3778, %v3770
        %v3875 = vpack.c.b16 %v3779, %v3771
        %v3876 = vpack.c.b16 %v3780, %v3772
        %v3877 = vpack.c.b16 %v3781, %v3773
        %v3878 = vpack.c.b16 %v3790, %v3782
        %v3879 = vpack.c.b16 %v3791, %v3783
        %v3880 = vpack.c.b16 %v3792, %v3784
        %v3881 = vpack.c.b16 %v3793, %v3785
        %v3882 = vpack.c.b16 %v3794, %v3786
        %v3883 = vpack.c.b16 %v3795, %v3787
        %v3884 = vpack.c.b16 %v3796, %v3788
        %v3885 = vpack.c.b16 %v3797, %v3789
        %v3886 = vpack.c.b16 %v3806, %v3798
        %v3887 = vpack.c.b16 %v3807, %v3799
        %v3888 = vpack.c.b16 %v3808, %v3800
        %v3889 = vpack.c.b16 %v3809, %v3801
        %v3890 = vpack.c.b16 %v3810, %v3802
        %v3891 = vpack.c.b16 %v3811, %v3803
        %v3892 = vpack.c.b16 %v3812, %v3804
        %v3893 = vpack.c.b16 %v3813, %v3805
        %v3894 = vpack.c.b16 %v3822, %v3814
        %v3895 = vpack.c.b16 %v3823, %v3815
        %v3896 = vpack.c.b16 %v3824, %v3816
        %v3897 = vpack.c.b16 %v3825, %v3817
        %v3898 = vpack.c.b16 %v3826, %v3818
        %v3899 = vpack.c.b16 %v3827, %v3819
        %v3900 = vpack.c.b16 %v3828, %v3820
        %v3901 = vpack.c.b16 %v3829, %v3821
        %v3902 = vpack.c.b16 %v3838, %v3830
        %v3903 = vpack.c.b16 %v3839, %v3831
        %v3904 = vpack.c.b16 %v3840, %v3832
        %v3905 = vpack.c.b16 %v3841, %v3833
        %v3906 = vpack.c.b16 %v3842, %v3834
        %v3907 = vpack.c.b16 %v3843, %v3835
        %v3908 = vpack.c.b16 %v3844, %v3836
        %v3909 = vpack.c.b16 %v3845, %v3837
        %3974 = vmatprep.subr.bf16.mxu0 %v3847
        %3975 = vmatpush1.bf16.msra.mxu0 %v3846
        %3976 = vmatprep.subr.bf16.mxu0 %v3855
        %3977 = vmatpush1.bf16.msra.mxu0 %v3854
        %3978 = vmatprep.subr.bf16.mxu0 %v3863
        %3979 = vmatpush1.bf16.msra.mxu0 %v3862
        %3980 = vmatprep.subr.bf16.mxu0 %v3871
        %3981 = vmatpush1.bf16.msra.mxu0 %v3870
        %3982 = vmatprep.subr.bf16.mxu0 %v3879
        %3983 = vmatpush1.bf16.msra.mxu0 %v3878
        %3984 = vmatprep.subr.bf16.mxu0 %v3887
        %3985 = vmatpush1.bf16.msra.mxu0 %v3886
        %3986 = vmatprep.subr.bf16.mxu0 %v3895
        %3987 = vmatpush1.bf16.msra.mxu0 %v3894
        %3988 = vmatprep.subr.bf16.mxu0 %v3903
        %3989 = vmatpush1.bf16.msra.mxu0 %v3902
        %3990 = vmatprep.subr.bf16.mxu0 0
        %3991 = vmatpush1.bf16.msra.mxu0 0
        %3992 = vmatprep.subr.bf16.mxu0 0
        %3993 = vmatpush1.bf16.msra.mxu0 0
        %3994 = vmatprep.subr.bf16.mxu0 0
        %3995 = vmatpush1.bf16.msra.mxu0 0
        %3996 = vmatprep.subr.bf16.mxu0 0
        %3997 = vmatpush1.bf16.msra.mxu0 0
        %3998 = vmatprep.subr.bf16.mxu0 0
        %3999 = vmatpush1.bf16.msra.mxu0 0
        %4000 = vmatprep.subr.bf16.mxu0 0
        %4001 = vmatpush1.bf16.msra.mxu0 0
        %4002 = vmatprep.subr.bf16.mxu0 0
        %4003 = vmatpush1.bf16.msra.mxu0 0
        %4004 = vmatprep.subr.bf16.mxu0 0
        %4005 = vmatpush1.bf16.msra.mxu0 0
        %4006 = vmatprep.mubr.bf16.mxu0 0
        %4007 = vmatmul.mubr.bf16.gmra.mrb[0].mxu0 %v3532
        %v4008 = vpop.f32.mrb[0].mxu0
        %v4009 = vadd.f32 %v3617, %v4008
        %v4010 = vpop.f32.mrb[0].mxu0
        %v4011 = vadd.f32 %v3621, %v4010
        %v4012 = vpop.f32.mrb[0].mxu0
        %v4013 = vadd.f32 %v3617, %v4012
        %v4014 = vpop.f32.mrb[0].mxu0
        %v4015 = vadd.f32 %v3621, %v4014
        %4016 = vmatprep.mubr.bf16.mxu0 0
        %4017 = vmatmul.mubr.bf16.gmra.mrb[0].mxu0 %v3533
        %v4018 = vpop.f32.mrb[0].mxu0
        %v4019 = vadd.f32 %v3617, %v4018
        %v4020 = vpop.f32.mrb[0].mxu0
        %v4021 = vadd.f32 %v3621, %v4020
        %v4022 = vpop.f32.mrb[0].mxu0
        %v4023 = vadd.f32 %v3617, %v4022
        %v4024 = vpop.f32.mrb[0].mxu0
        %v4025 = vadd.f32 %v3621, %v4024
        %4026 = vmatprep.mubr.bf16.mxu0 0
        %4027 = vmatmul.mubr.bf16.gmra.mrb[0].mxu0 %v3534
        %v4028 = vpop.f32.mrb[0].mxu0
        %v4029 = vadd.f32 %v3617, %v4028
        %v4030 = vpop.f32.mrb[0].mxu0
        %v4031 = vadd.f32 %v3621, %v4030
        %v4032 = vpop.f32.mrb[0].mxu0
        %v4033 = vadd.f32 %v3617, %v4032
        %v4034 = vpop.f32.mrb[0].mxu0
        %v4035 = vadd.f32 %v3621, %v4034
        %4036 = vmatprep.mubr.bf16.mxu0 0
        %4037 = vmatmul.mubr.bf16.gmra.mrb[0].mxu0 %v3535
        %v4038 = vpop.f32.mrb[0].mxu0
        %v4039 = vadd.f32 %v3617, %v4038
        %v4040 = vpop.f32.mrb[0].mxu0
        %v4041 = vadd.f32 %v3621, %v4040
        %v4042 = vpop.f32.mrb[0].mxu0
        %v4043 = vadd.f32 %v3617, %v4042
        %v4044 = vpop.f32.mrb[0].mxu0
        %v4045 = vadd.f32 %v3621, %v4044
        %4046 = vmatprep.mubr.bf16.mxu0 0
        %4047 = vmatmul.mubr.bf16.gmra.mrb[0].mxu0 %v3536
        %v4048 = vpop.f32.mrb[0].mxu0
        %v4049 = vadd.f32 %v3617, %v4048
        %v4050 = vpop.f32.mrb[0].mxu0
        %v4051 = vadd.f32 %v3621, %v4050
        %v4052 = vpop.f32.mrb[0].mxu0
        %v4053 = vadd.f32 %v3617, %v4052
        %v4054 = vpop.f32.mrb[0].mxu0
        %v4055 = vadd.f32 %v3621, %v4054
        %4056 = vmatprep.mubr.bf16.mxu0 0
        %4057 = vmatmul.mubr.bf16.gmra.mrb[0].mxu0 %v3537
        %v4058 = vpop.f32.mrb[0].mxu0
        %v4059 = vadd.f32 %v3617, %v4058
        %v4060 = vpop.f32.mrb[0].mxu0
        %v4061 = vadd.f32 %v3621, %v4060
        %v4062 = vpop.f32.mrb[0].mxu0
        %v4063 = vadd.f32 %v3617, %v4062
        %v4064 = vpop.f32.mrb[0].mxu0
        %v4065 = vadd.f32 %v3621, %v4064
        %4066 = vmatprep.mubr.bf16.mxu0 0
        %4067 = vmatmul.mubr.bf16.gmra.mrb[0].mxu0 %v3538
        %v4068 = vpop.f32.mrb[0].mxu0
        %v4069 = vadd.f32 %v3617, %v4068
        %v4070 = vpop.f32.mrb[0].mxu0
        %v4071 = vadd.f32 %v3621, %v4070
        %v4072 = vpop.f32.mrb[0].mxu0
        %v4073 = vadd.f32 %v3617, %v4072
        %v4074 = vpop.f32.mrb[0].mxu0
        %v4075 = vadd.f32 %v3621, %v4074
        %4076 = vmatprep.mubr.bf16.mxu0 0
        %4077 = vmatmul.mubr.bf16.gmra.mrb[0].mxu0 %v3539
        %v4078 = vpop.f32.mrb[0].mxu0
        %v4079 = vadd.f32 %v3617, %v4078
        %v4080 = vpop.f32.mrb[0].mxu0
        %v4081 = vadd.f32 %v3621, %v4080
        %v4082 = vpop.f32.mrb[0].mxu0
        %v4083 = vadd.f32 %v3617, %v4082
        %v4084 = vpop.f32.mrb[0].mxu0
        %v4085 = vadd.f32 %v3621, %v4084
        %4086 = vmatprep.mubr.bf16.mxu0 0
        %4087 = vmatmul.mubr.bf16.gmra.mrb[0].mxu0 %v3540
        %v4088 = vpop.f32.mrb[0].mxu0
        %v4089 = vadd.f32 %v3617, %v4088
        %v4090 = vpop.f32.mrb[0].mxu0
        %v4091 = vadd.f32 %v3621, %v4090
        %v4092 = vpop.f32.mrb[0].mxu0
        %v4093 = vadd.f32 %v3617, %v4092
        %v4094 = vpop.f32.mrb[0].mxu0
        %v4095 = vadd.f32 %v3621, %v4094
        %4096 = vmatprep.mubr.bf16.mxu0 0
        %4097 = vmatmul.mubr.bf16.gmra.mrb[0].mxu0 %v3541
        %v4098 = vpop.f32.mrb[0].mxu0
        %v4099 = vadd.f32 %v3617, %v4098
        %v4100 = vpop.f32.mrb[0].mxu0
        %v4101 = vadd.f32 %v3621, %v4100
        %v4102 = vpop.f32.mrb[0].mxu0
        %v4103 = vadd.f32 %v3617, %v4102
        %v4104 = vpop.f32.mrb[0].mxu0
        %v4105 = vadd.f32 %v3621, %v4104
        %4106 = vmatprep.mubr.bf16.mxu0 0
        %4107 = vmatmul.mubr.bf16.gmra.mrb[0].mxu0 %v3542
        %v4108 = vpop.f32.mrb[0].mxu0
        %v4109 = vadd.f32 %v3617, %v4108
        %v4110 = vpop.f32.mrb[0].mxu0
        %v4111 = vadd.f32 %v3621, %v4110
        %v4112 = vpop.f32.mrb[0].mxu0
        %v4113 = vadd.f32 %v3617, %v4112
        %v4114 = vpop.f32.mrb[0].mxu0
        %v4115 = vadd.f32 %v3621, %v4114
        %4116 = vmatprep.mubr.bf16.mxu0 0
        %4117 = vmatmul.mubr.bf16.gmra.mrb[0].mxu0 %v3543
        %v4118 = vpop.f32.mrb[0].mxu0
        %v4119 = vadd.f32 %v3617, %v4118
        %v4120 = vpop.f32.mrb[0].mxu0
        %v4121 = vadd.f32 %v3621, %v4120
        %v4122 = vpop.f32.mrb[0].mxu0
        %v4123 = vadd.f32 %v3617, %v4122
        %v4124 = vpop.f32.mrb[0].mxu0
        %v4125 = vadd.f32 %v3621, %v4124
        %4126 = vmatprep.mubr.bf16.mxu0 0
        %4127 = vmatmul.mubr.bf16.gmra.mrb[0].mxu0 %v3544
        %v4128 = vpop.f32.mrb[0].mxu0
        %v4129 = vadd.f32 %v3617, %v4128
        %v4130 = vpop.f32.mrb[0].mxu0
        %v4131 = vadd.f32 %v3621, %v4130
        %v4132 = vpop.f32.mrb[0].mxu0
        %v4133 = vadd.f32 %v3617, %v4132
        %v4134 = vpop.f32.mrb[0].mxu0
        %v4135 = vadd.f32 %v3621, %v4134
        %4136 = vmatprep.mubr.bf16.mxu0 0
        %4137 = vmatmul.mubr.bf16.gmra.mrb[0].mxu0 %v3545
        %v4138 = vpop.f32.mrb[0].mxu0
        %v4139 = vadd.f32 %v3617, %v4138
        %v4140 = vpop.f32.mrb[0].mxu0
        %v4141 = vadd.f32 %v3621, %v4140
        %v4142 = vpop.f32.mrb[0].mxu0
        %v4143 = vadd.f32 %v3617, %v4142
        %v4144 = vpop.f32.mrb[0].mxu0
        %v4145 = vadd.f32 %v3621, %v4144
        %4146 = vmatprep.mubr.bf16.mxu0 0
        %4147 = vmatmul.mubr.bf16.gmra.mrb[0].mxu0 %v3546
        %v4148 = vpop.f32.mrb[0].mxu0
        %v4149 = vadd.f32 %v3617, %v4148
        %v4150 = vpop.f32.mrb[0].mxu0
        %v4151 = vadd.f32 %v3621, %v4150
        %v4152 = vpop.f32.mrb[0].mxu0
        %v4153 = vadd.f32 %v3617, %v4152
        %v4154 = vpop.f32.mrb[0].mxu0
        %v4155 = vadd.f32 %v3621, %v4154
        %4156 = vmatprep.mubr.bf16.mxu0 0
        %4157 = vmatmul.mubr.bf16.gmra.mrb[0].mxu0 %v3547
        %v4158 = vpop.f32.mrb[0].mxu0
        %v4159 = vadd.f32 %v3617, %v4158
        %v4160 = vpop.f32.mrb[0].mxu0
        %v4161 = vadd.f32 %v3621, %v4160
        %v4162 = vpop.f32.mrb[0].mxu0
        %v4163 = vadd.f32 %v3617, %v4162
        %v4164 = vpop.f32.mrb[0].mxu0
        %v4165 = vadd.f32 %v3621, %v4164
        %4166 = vdwg.mxu0
        %4167 = vmatprep.subr.bf16.mxu0 %v3849
        %4168 = vmatpush1.bf16.msra.mxu0 %v3848
        %4169 = vmatprep.subr.bf16.mxu0 %v3857
        %4170 = vmatpush1.bf16.msra.mxu0 %v3856
        %4171 = vmatprep.subr.bf16.mxu0 %v3865
        %4172 = vmatpush1.bf16.msra.mxu0 %v3864
        %4173 = vmatprep.subr.bf16.mxu0 %v3873
        %4174 = vmatpush1.bf16.msra.mxu0 %v3872
        %4175 = vmatprep.subr.bf16.mxu0 %v3881
        %4176 = vmatpush1.bf16.msra.mxu0 %v3880
        %4177 = vmatprep.subr.bf16.mxu0 %v3889
        %4178 = vmatpush1.bf16.msra.mxu0 %v3888
        %4179 = vmatprep.subr.bf16.mxu0 %v3897
        %4180 = vmatpush1.bf16.msra.mxu0 %v3896
        %4181 = vmatprep.subr.bf16.mxu0 %v3905
        %4182 = vmatpush1.bf16.msra.mxu0 %v3904
        %4183 = vmatprep.subr.bf16.mxu0 0
        %4184 = vmatpush1.bf16.msra.mxu0 0
        %4185 = vmatprep.subr.bf16.mxu0 0
        %4186 = vmatpush1.bf16.msra.mxu0 0
        %4187 = vmatprep.subr.bf16.mxu0 0
        %4188 = vmatpush1.bf16.msra.mxu0 0
        %4189 = vmatprep.subr.bf16.mxu0 0
        %4190 = vmatpush1.bf16.msra.mxu0 0
        %4191 = vmatprep.subr.bf16.mxu0 0
        %4192 = vmatpush1.bf16.msra.mxu0 0
        %4193 = vmatprep.subr.bf16.mxu0 0
        %4194 = vmatpush1.bf16.msra.mxu0 0
        %4195 = vmatprep.subr.bf16.mxu0 0
        %4196 = vmatpush1.bf16.msra.mxu0 0
        %4197 = vmatprep.subr.bf16.mxu0 0
        %4198 = vmatpush1.bf16.msra.mxu0 0
        %4199 = vmatprep.mubr.bf16.mxu0 0
        %4200 = vmatmul.mubr.bf16.gmra.mrb[0].mxu0 %v3532
        %v4201 = vpop.f32.mrb[0].mxu0
        %v4202 = vadd.f32 %v3625, %v4201
        %v4203 = vpop.f32.mrb[0].mxu0
        %v4204 = vadd.f32 %v3629, %v4203
        %v4205 = vpop.f32.mrb[0].mxu0
        %v4206 = vadd.f32 %v3625, %v4205
        %v4207 = vpop.f32.mrb[0].mxu0
        %v4208 = vadd.f32 %v3629, %v4207
        %4209 = vmatprep.mubr.bf16.mxu0 0
        %4210 = vmatmul.mubr.bf16.gmra.mrb[0].mxu0 %v3533
        %v4211 = vpop.f32.mrb[0].mxu0
        %v4212 = vadd.f32 %v3625, %v4211
        %v4213 = vpop.f32.mrb[0].mxu0
        %v4214 = vadd.f32 %v3629, %v4213
        %v4215 = vpop.f32.mrb[0].mxu0
        %v4216 = vadd.f32 %v3625, %v4215
        %v4217 = vpop.f32.mrb[0].mxu0
        %v4218 = vadd.f32 %v3629, %v4217
        %4219 = vmatprep.mubr.bf16.mxu0 0
        %4220 = vmatmul.mubr.bf16.gmra.mrb[0].mxu0 %v3534
        %v4221 = vpop.f32.mrb[0].mxu0
        %v4222 = vadd.f32 %v3625, %v4221
        %v4223 = vpop.f32.mrb[0].mxu0
        %v4224 = vadd.f32 %v3629, %v4223
        %v4225 = vpop.f32.mrb[0].mxu0
        %v4226 = vadd.f32 %v3625, %v4225
        %v4227 = vpop.f32.mrb[0].mxu0
        %v4228 = vadd.f32 %v3629, %v4227
        %4229 = vmatprep.mubr.bf16.mxu0 0
        %4230 = vmatmul.mubr.bf16.gmra.mrb[0].mxu0 %v3535
        %v4231 = vpop.f32.mrb[0].mxu0
        %v4232 = vadd.f32 %v3625, %v4231
        %v4233 = vpop.f32.mrb[0].mxu0
        %v4234 = vadd.f32 %v3629, %v4233
        %v4235 = vpop.f32.mrb[0].mxu0
        %v4236 = vadd.f32 %v3625, %v4235
        %v4237 = vpop.f32.mrb[0].mxu0
        %v4238 = vadd.f32 %v3629, %v4237
        %4239 = vmatprep.mubr.bf16.mxu0 0
        %4240 = vmatmul.mubr.bf16.gmra.mrb[0].mxu0 %v3536
        %v4241 = vpop.f32.mrb[0].mxu0
        %v4242 = vadd.f32 %v3625, %v4241
        %v4243 = vpop.f32.mrb[0].mxu0
        %v4244 = vadd.f32 %v3629, %v4243
        %v4245 = vpop.f32.mrb[0].mxu0
        %v4246 = vadd.f32 %v3625, %v4245
        %v4247 = vpop.f32.mrb[0].mxu0
        %v4248 = vadd.f32 %v3629, %v4247
        %4249 = vmatprep.mubr.bf16.mxu0 0
        %4250 = vmatmul.mubr.bf16.gmra.mrb[0].mxu0 %v3537
        %v4251 = vpop.f32.mrb[0].mxu0
        %v4252 = vadd.f32 %v3625, %v4251
        %v4253 = vpop.f32.mrb[0].mxu0
        %v4254 = vadd.f32 %v3629, %v4253
        %v4255 = vpop.f32.mrb[0].mxu0
        %v4256 = vadd.f32 %v3625, %v4255
        %v4257 = vpop.f32.mrb[0].mxu0
        %v4258 = vadd.f32 %v3629, %v4257
        %4259 = vmatprep.mubr.bf16.mxu0 0
        %4260 = vmatmul.mubr.bf16.gmra.mrb[0].mxu0 %v3538
        %v4261 = vpop.f32.mrb[0].mxu0
        %v4262 = vadd.f32 %v3625, %v4261
        %v4263 = vpop.f32.mrb[0].mxu0
        %v4264 = vadd.f32 %v3629, %v4263
        %v4265 = vpop.f32.mrb[0].mxu0
        %v4266 = vadd.f32 %v3625, %v4265
        %v4267 = vpop.f32.mrb[0].mxu0
        %v4268 = vadd.f32 %v3629, %v4267
        %4269 = vmatprep.mubr.bf16.mxu0 0
        %4270 = vmatmul.mubr.bf16.gmra.mrb[0].mxu0 %v3539
        %v4271 = vpop.f32.mrb[0].mxu0
        %v4272 = vadd.f32 %v3625, %v4271
        %v4273 = vpop.f32.mrb[0].mxu0
        %v4274 = vadd.f32 %v3629, %v4273
        %v4275 = vpop.f32.mrb[0].mxu0
        %v4276 = vadd.f32 %v3625, %v4275
        %v4277 = vpop.f32.mrb[0].mxu0
        %v4278 = vadd.f32 %v3629, %v4277
        %4279 = vmatprep.mubr.bf16.mxu0 0
        %4280 = vmatmul.mubr.bf16.gmra.mrb[0].mxu0 %v3540
        %v4281 = vpop.f32.mrb[0].mxu0
        %v4282 = vadd.f32 %v3625, %v4281
        %v4283 = vpop.f32.mrb[0].mxu0
        %v4284 = vadd.f32 %v3629, %v4283
        %v4285 = vpop.f32.mrb[0].mxu0
        %v4286 = vadd.f32 %v3625, %v4285
        %v4287 = vpop.f32.mrb[0].mxu0
        %v4288 = vadd.f32 %v3629, %v4287
        %4289 = vmatprep.mubr.bf16.mxu0 0
        %4290 = vmatmul.mubr.bf16.gmra.mrb[0].mxu0 %v3541
        %v4291 = vpop.f32.mrb[0].mxu0
        %v4292 = vadd.f32 %v3625, %v4291
        %v4293 = vpop.f32.mrb[0].mxu0
        %v4294 = vadd.f32 %v3629, %v4293
        %v4295 = vpop.f32.mrb[0].mxu0
        %v4296 = vadd.f32 %v3625, %v4295
        %v4297 = vpop.f32.mrb[0].mxu0
        %v4298 = vadd.f32 %v3629, %v4297
        %4299 = vmatprep.mubr.bf16.mxu0 0
        %4300 = vmatmul.mubr.bf16.gmra.mrb[0].mxu0 %v3542
        %v4301 = vpop.f32.mrb[0].mxu0
        %v4302 = vadd.f32 %v3625, %v4301
        %v4303 = vpop.f32.mrb[0].mxu0
        %v4304 = vadd.f32 %v3629, %v4303
        %v4305 = vpop.f32.mrb[0].mxu0
        %v4306 = vadd.f32 %v3625, %v4305
        %v4307 = vpop.f32.mrb[0].mxu0
        %v4308 = vadd.f32 %v3629, %v4307
        %4309 = vmatprep.mubr.bf16.mxu0 0
        %4310 = vmatmul.mubr.bf16.gmra.mrb[0].mxu0 %v3543
        %v4311 = vpop.f32.mrb[0].mxu0
        %v4312 = vadd.f32 %v3625, %v4311
        %v4313 = vpop.f32.mrb[0].mxu0
        %v4314 = vadd.f32 %v3629, %v4313
        %v4315 = vpop.f32.mrb[0].mxu0
        %v4316 = vadd.f32 %v3625, %v4315
        %v4317 = vpop.f32.mrb[0].mxu0
        %v4318 = vadd.f32 %v3629, %v4317
        %4319 = vmatprep.mubr.bf16.mxu0 0
        %4320 = vmatmul.mubr.bf16.gmra.mrb[0].mxu0 %v3544
        %v4321 = vpop.f32.mrb[0].mxu0
        %v4322 = vadd.f32 %v3625, %v4321
        %v4323 = vpop.f32.mrb[0].mxu0
        %v4324 = vadd.f32 %v3629, %v4323
        %v4325 = vpop.f32.mrb[0].mxu0
        %v4326 = vadd.f32 %v3625, %v4325
        %v4327 = vpop.f32.mrb[0].mxu0
        %v4328 = vadd.f32 %v3629, %v4327
        %4329 = vmatprep.mubr.bf16.mxu0 0
        %4330 = vmatmul.mubr.bf16.gmra.mrb[0].mxu0 %v3545
        %v4331 = vpop.f32.mrb[0].mxu0
        %v4332 = vadd.f32 %v3625, %v4331
        %v4333 = vpop.f32.mrb[0].mxu0
        %v4334 = vadd.f32 %v3629, %v4333
        %v4335 = vpop.f32.mrb[0].mxu0
        %v4336 = vadd.f32 %v3625, %v4335
        %v4337 = vpop.f32.mrb[0].mxu0
        %v4338 = vadd.f32 %v3629, %v4337
        %4339 = vmatprep.mubr.bf16.mxu0 0
        %4340 = vmatmul.mubr.bf16.gmra.mrb[0].mxu0 %v3546
        %v4341 = vpop.f32.mrb[0].mxu0
        %v4342 = vadd.f32 %v3625, %v4341
        %v4343 = vpop.f32.mrb[0].mxu0
        %v4344 = vadd.f32 %v3629, %v4343
        %v4345 = vpop.f32.mrb[0].mxu0
        %v4346 = vadd.f32 %v3625, %v4345
        %v4347 = vpop.f32.mrb[0].mxu0
        %v4348 = vadd.f32 %v3629, %v4347
        %4349 = vmatprep.mubr.bf16.mxu0 0
        %4350 = vmatmul.mubr.bf16.gmra.mrb[0].mxu0 %v3547
        %v4351 = vpop.f32.mrb[0].mxu0
        %v4352 = vadd.f32 %v3625, %v4351
        %v4353 = vpop.f32.mrb[0].mxu0
        %v4354 = vadd.f32 %v3629, %v4353
        %v4355 = vpop.f32.mrb[0].mxu0
        %v4356 = vadd.f32 %v3625, %v4355
        %v4357 = vpop.f32.mrb[0].mxu0
        %v4358 = vadd.f32 %v3629, %v4357
        %4359 = vdwg.mxu0
        %4360 = vmatprep.subr.bf16.mxu0 %v3851
        %4361 = vmatpush1.bf16.msra.mxu0 %v3850
        %4362 = vmatprep.subr.bf16.mxu0 %v3859
        %4363 = vmatpush1.bf16.msra.mxu0 %v3858
        %4364 = vmatprep.subr.bf16.mxu0 %v3867
        %4365 = vmatpush1.bf16.msra.mxu0 %v3866
        %4366 = vmatprep.subr.bf16.mxu0 %v3875
        %4367 = vmatpush1.bf16.msra.mxu0 %v3874
        %4368 = vmatprep.subr.bf16.mxu0 %v3883
        %4369 = vmatpush1.bf16.msra.mxu0 %v3882
        %4370 = vmatprep.subr.bf16.mxu0 %v3891
        %4371 = vmatpush1.bf16.msra.mxu0 %v3890
        %4372 = vmatprep.subr.bf16.mxu0 %v3899
        %4373 = vmatpush1.bf16.msra.mxu0 %v3898
        %4374 = vmatprep.subr.bf16.mxu0 %v3907
        %4375 = vmatpush1.bf16.msra.mxu0 %v3906
        %4376 = vmatprep.subr.bf16.mxu0 0
        %4377 = vmatpush1.bf16.msra.mxu0 0
        %4378 = vmatprep.subr.bf16.mxu0 0
        %4379 = vmatpush1.bf16.msra.mxu0 0
        %4380 = vmatprep.subr.bf16.mxu0 0
        %4381 = vmatpush1.bf16.msra.mxu0 0
        %4382 = vmatprep.subr.bf16.mxu0 0
        %4383 = vmatpush1.bf16.msra.mxu0 0
        %4384 = vmatprep.subr.bf16.mxu0 0
        %4385 = vmatpush1.bf16.msra.mxu0 0
        %4386 = vmatprep.subr.bf16.mxu0 0
        %4387 = vmatpush1.bf16.msra.mxu0 0
        %4388 = vmatprep.subr.bf16.mxu0 0
        %4389 = vmatpush1.bf16.msra.mxu0 0
        %4390 = vmatprep.subr.bf16.mxu0 0
        %4391 = vmatpush1.bf16.msra.mxu0 0
        %4392 = vmatprep.mubr.bf16.mxu0 0
        %4393 = vmatmul.mubr.bf16.gmra.mrb[0].mxu0 %v3532
        %v4394 = vpop.f32.mrb[0].mxu0
        %v4395 = vadd.f32 %v3633, %v4394
        %v4396 = vpop.f32.mrb[0].mxu0
        %v4397 = vadd.f32 %v3637, %v4396
        %v4398 = vpop.f32.mrb[0].mxu0
        %v4399 = vadd.f32 %v3633, %v4398
        %v4400 = vpop.f32.mrb[0].mxu0
        %v4401 = vadd.f32 %v3637, %v4400
        %4402 = vmatprep.mubr.bf16.mxu0 0
        %4403 = vmatmul.mubr.bf16.gmra.mrb[0].mxu0 %v3533
        %v4404 = vpop.f32.mrb[0].mxu0
        %v4405 = vadd.f32 %v3633, %v4404
        %v4406 = vpop.f32.mrb[0].mxu0
        %v4407 = vadd.f32 %v3637, %v4406
        %v4408 = vpop.f32.mrb[0].mxu0
        %v4409 = vadd.f32 %v3633, %v4408
        %v4410 = vpop.f32.mrb[0].mxu0
        %v4411 = vadd.f32 %v3637, %v4410
        %4412 = vmatprep.mubr.bf16.mxu0 0
        %4413 = vmatmul.mubr.bf16.gmra.mrb[0].mxu0 %v3534
        %v4414 = vpop.f32.mrb[0].mxu0
        %v4415 = vadd.f32 %v3633, %v4414
        %v4416 = vpop.f32.mrb[0].mxu0
        %v4417 = vadd.f32 %v3637, %v4416
        %v4418 = vpop.f32.mrb[0].mxu0
        %v4419 = vadd.f32 %v3633, %v4418
        %v4420 = vpop.f32.mrb[0].mxu0
        %v4421 = vadd.f32 %v3637, %v4420
        %4422 = vmatprep.mubr.bf16.mxu0 0
        %4423 = vmatmul.mubr.bf16.gmra.mrb[0].mxu0 %v3535
        %v4424 = vpop.f32.mrb[0].mxu0
        %v4425 = vadd.f32 %v3633, %v4424
        %v4426 = vpop.f32.mrb[0].mxu0
        %v4427 = vadd.f32 %v3637, %v4426
        %v4428 = vpop.f32.mrb[0].mxu0
        %v4429 = vadd.f32 %v3633, %v4428
        %v4430 = vpop.f32.mrb[0].mxu0
        %v4431 = vadd.f32 %v3637, %v4430
        %4432 = vmatprep.mubr.bf16.mxu0 0
        %4433 = vmatmul.mubr.bf16.gmra.mrb[0].mxu0 %v3536
        %v4434 = vpop.f32.mrb[0].mxu0
        %v4435 = vadd.f32 %v3633, %v4434
        %v4436 = vpop.f32.mrb[0].mxu0
        %v4437 = vadd.f32 %v3637, %v4436
        %v4438 = vpop.f32.mrb[0].mxu0
        %v4439 = vadd.f32 %v3633, %v4438
        %v4440 = vpop.f32.mrb[0].mxu0
        %v4441 = vadd.f32 %v3637, %v4440
        %4442 = vmatprep.mubr.bf16.mxu0 0
        %4443 = vmatmul.mubr.bf16.gmra.mrb[0].mxu0 %v3537
        %v4444 = vpop.f32.mrb[0].mxu0
        %v4445 = vadd.f32 %v3633, %v4444
        %v4446 = vpop.f32.mrb[0].mxu0
        %v4447 = vadd.f32 %v3637, %v4446
        %v4448 = vpop.f32.mrb[0].mxu0
        %v4449 = vadd.f32 %v3633, %v4448
        %v4450 = vpop.f32.mrb[0].mxu0
        %v4451 = vadd.f32 %v3637, %v4450
        %4452 = vmatprep.mubr.bf16.mxu0 0
        %4453 = vmatmul.mubr.bf16.gmra.mrb[0].mxu0 %v3538
        %v4454 = vpop.f32.mrb[0].mxu0
        %v4455 = vadd.f32 %v3633, %v4454
        %v4456 = vpop.f32.mrb[0].mxu0
        %v4457 = vadd.f32 %v3637, %v4456
        %v4458 = vpop.f32.mrb[0].mxu0
        %v4459 = vadd.f32 %v3633, %v4458
        %v4460 = vpop.f32.mrb[0].mxu0
        %v4461 = vadd.f32 %v3637, %v4460
        %4462 = vmatprep.mubr.bf16.mxu0 0
        %4463 = vmatmul.mubr.bf16.gmra.mrb[0].mxu0 %v3539
        %v4464 = vpop.f32.mrb[0].mxu0
        %v4465 = vadd.f32 %v3633, %v4464
        %v4466 = vpop.f32.mrb[0].mxu0
        %v4467 = vadd.f32 %v3637, %v4466
        %v4468 = vpop.f32.mrb[0].mxu0
        %v4469 = vadd.f32 %v3633, %v4468
        %v4470 = vpop.f32.mrb[0].mxu0
        %v4471 = vadd.f32 %v3637, %v4470
        %4472 = vmatprep.mubr.bf16.mxu0 0
        %4473 = vmatmul.mubr.bf16.gmra.mrb[0].mxu0 %v3540
        %v4474 = vpop.f32.mrb[0].mxu0
        %v4475 = vadd.f32 %v3633, %v4474
        %v4476 = vpop.f32.mrb[0].mxu0
        %v4477 = vadd.f32 %v3637, %v4476
        %v4478 = vpop.f32.mrb[0].mxu0
        %v4479 = vadd.f32 %v3633, %v4478
        %v4480 = vpop.f32.mrb[0].mxu0
        %v4481 = vadd.f32 %v3637, %v4480
        %4482 = vmatprep.mubr.bf16.mxu0 0
        %4483 = vmatmul.mubr.bf16.gmra.mrb[0].mxu0 %v3541
        %v4484 = vpop.f32.mrb[0].mxu0
        %v4485 = vadd.f32 %v3633, %v4484
        %v4486 = vpop.f32.mrb[0].mxu0
        %v4487 = vadd.f32 %v3637, %v4486
        %v4488 = vpop.f32.mrb[0].mxu0
        %v4489 = vadd.f32 %v3633, %v4488
        %v4490 = vpop.f32.mrb[0].mxu0
        %v4491 = vadd.f32 %v3637, %v4490
        %4492 = vmatprep.mubr.bf16.mxu0 0
        %4493 = vmatmul.mubr.bf16.gmra.mrb[0].mxu0 %v3542
        %v4494 = vpop.f32.mrb[0].mxu0
        %v4495 = vadd.f32 %v3633, %v4494
        %v4496 = vpop.f32.mrb[0].mxu0
        %v4497 = vadd.f32 %v3637, %v4496
        %v4498 = vpop.f32.mrb[0].mxu0
        %v4499 = vadd.f32 %v3633, %v4498
        %v4500 = vpop.f32.mrb[0].mxu0
        %v4501 = vadd.f32 %v3637, %v4500
        %4502 = vmatprep.mubr.bf16.mxu0 0
        %4503 = vmatmul.mubr.bf16.gmra.mrb[0].mxu0 %v3543
        %v4504 = vpop.f32.mrb[0].mxu0
        %v4505 = vadd.f32 %v3633, %v4504
        %v4506 = vpop.f32.mrb[0].mxu0
        %v4507 = vadd.f32 %v3637, %v4506
        %v4508 = vpop.f32.mrb[0].mxu0
        %v4509 = vadd.f32 %v3633, %v4508
        %v4510 = vpop.f32.mrb[0].mxu0
        %v4511 = vadd.f32 %v3637, %v4510
        %4512 = vmatprep.mubr.bf16.mxu0 0
        %4513 = vmatmul.mubr.bf16.gmra.mrb[0].mxu0 %v3544
        %v4514 = vpop.f32.mrb[0].mxu0
        %v4515 = vadd.f32 %v3633, %v4514
        %v4516 = vpop.f32.mrb[0].mxu0
        %v4517 = vadd.f32 %v3637, %v4516
        %v4518 = vpop.f32.mrb[0].mxu0
        %v4519 = vadd.f32 %v3633, %v4518
        %v4520 = vpop.f32.mrb[0].mxu0
        %v4521 = vadd.f32 %v3637, %v4520
        %4522 = vmatprep.mubr.bf16.mxu0 0
        %4523 = vmatmul.mubr.bf16.gmra.mrb[0].mxu0 %v3545
        %v4524 = vpop.f32.mrb[0].mxu0
        %v4525 = vadd.f32 %v3633, %v4524
        %v4526 = vpop.f32.mrb[0].mxu0
        %v4527 = vadd.f32 %v3637, %v4526
        %v4528 = vpop.f32.mrb[0].mxu0
        %v4529 = vadd.f32 %v3633, %v4528
        %v4530 = vpop.f32.mrb[0].mxu0
        %v4531 = vadd.f32 %v3637, %v4530
        %4532 = vmatprep.mubr.bf16.mxu0 0
        %4533 = vmatmul.mubr.bf16.gmra.mrb[0].mxu0 %v3546
        %v4534 = vpop.f32.mrb[0].mxu0
        %v4535 = vadd.f32 %v3633, %v4534
        %v4536 = vpop.f32.mrb[0].mxu0
        %v4537 = vadd.f32 %v3637, %v4536
        %v4538 = vpop.f32.mrb[0].mxu0
        %v4539 = vadd.f32 %v3633, %v4538
        %v4540 = vpop.f32.mrb[0].mxu0
        %v4541 = vadd.f32 %v3637, %v4540
        %4542 = vmatprep.mubr.bf16.mxu0 0
        %4543 = vmatmul.mubr.bf16.gmra.mrb[0].mxu0 %v3547
        %v4544 = vpop.f32.mrb[0].mxu0
        %v4545 = vadd.f32 %v3633, %v4544
        %v4546 = vpop.f32.mrb[0].mxu0
        %v4547 = vadd.f32 %v3637, %v4546
        %v4548 = vpop.f32.mrb[0].mxu0
        %v4549 = vadd.f32 %v3633, %v4548
        %v4550 = vpop.f32.mrb[0].mxu0
        %v4551 = vadd.f32 %v3637, %v4550
        %4552 = vdwg.mxu0
        %4553 = vmatprep.subr.bf16.mxu0 %v3853
        %4554 = vmatpush1.bf16.msra.mxu0 %v3852
        %4555 = vmatprep.subr.bf16.mxu0 %v3861
        %4556 = vmatpush1.bf16.msra.mxu0 %v3860
        %4557 = vmatprep.subr.bf16.mxu0 %v3869
        %4558 = vmatpush1.bf16.msra.mxu0 %v3868
        %4559 = vmatprep.subr.bf16.mxu0 %v3877
        %4560 = vmatpush1.bf16.msra.mxu0 %v3876
        %4561 = vmatprep.subr.bf16.mxu0 %v3885
        %4562 = vmatpush1.bf16.msra.mxu0 %v3884
        %4563 = vmatprep.subr.bf16.mxu0 %v3893
        %4564 = vmatpush1.bf16.msra.mxu0 %v3892
        %4565 = vmatprep.subr.bf16.mxu0 %v3901
        %4566 = vmatpush1.bf16.msra.mxu0 %v3900
        %4567 = vmatprep.subr.bf16.mxu0 %v3909
        %4568 = vmatpush1.bf16.msra.mxu0 %v3908
        %4569 = vmatprep.subr.bf16.mxu0 0
        %4570 = vmatpush1.bf16.msra.mxu0 0
        %4571 = vmatprep.subr.bf16.mxu0 0
        %4572 = vmatpush1.bf16.msra.mxu0 0
        %4573 = vmatprep.subr.bf16.mxu0 0
        %4574 = vmatpush1.bf16.msra.mxu0 0
        %4575 = vmatprep.subr.bf16.mxu0 0
        %4576 = vmatpush1.bf16.msra.mxu0 0
        %4577 = vmatprep.subr.bf16.mxu0 0
        %4578 = vmatpush1.bf16.msra.mxu0 0
        %4579 = vmatprep.subr.bf16.mxu0 0
        %4580 = vmatpush1.bf16.msra.mxu0 0
        %4581 = vmatprep.subr.bf16.mxu0 0
        %4582 = vmatpush1.bf16.msra.mxu0 0
        %4583 = vmatprep.subr.bf16.mxu0 0
        %4584 = vmatpush1.bf16.msra.mxu0 0
        %4585 = vmatprep.mubr.bf16.mxu0 0
        %4586 = vmatmul.mubr.bf16.gmra.mrb[0].mxu0 %v3532
        %v4587 = vpop.f32.mrb[0].mxu0
        %v4588 = vadd.f32 %v3641, %v4587
        %v4589 = vpop.f32.mrb[0].mxu0
        %v4590 = vadd.f32 %v3645, %v4589
        %v4591 = vpop.f32.mrb[0].mxu0
        %v4592 = vadd.f32 %v3641, %v4591
        %v4593 = vpop.f32.mrb[0].mxu0
        %v4594 = vadd.f32 %v3645, %v4593
        %4595 = vmatprep.mubr.bf16.mxu0 0
        %4596 = vmatmul.mubr.bf16.gmra.mrb[0].mxu0 %v3533
        %v4597 = vpop.f32.mrb[0].mxu0
        %v4598 = vadd.f32 %v3641, %v4597
        %v4599 = vpop.f32.mrb[0].mxu0
        %v4600 = vadd.f32 %v3645, %v4599
        %v4601 = vpop.f32.mrb[0].mxu0
        %v4602 = vadd.f32 %v3641, %v4601
        %v4603 = vpop.f32.mrb[0].mxu0
        %v4604 = vadd.f32 %v3645, %v4603
        %4605 = vmatprep.mubr.bf16.mxu0 0
        %4606 = vmatmul.mubr.bf16.gmra.mrb[0].mxu0 %v3534
        %v4607 = vpop.f32.mrb[0].mxu0
        %v4608 = vadd.f32 %v3641, %v4607
        %v4609 = vpop.f32.mrb[0].mxu0
        %v4610 = vadd.f32 %v3645, %v4609
        %v4611 = vpop.f32.mrb[0].mxu0
        %v4612 = vadd.f32 %v3641, %v4611
        %v4613 = vpop.f32.mrb[0].mxu0
        %v4614 = vadd.f32 %v3645, %v4613
        %4615 = vmatprep.mubr.bf16.mxu0 0
        %4616 = vmatmul.mubr.bf16.gmra.mrb[0].mxu0 %v3535
        %v4617 = vpop.f32.mrb[0].mxu0
        %v4618 = vadd.f32 %v3641, %v4617
        %v4619 = vpop.f32.mrb[0].mxu0
        %v4620 = vadd.f32 %v3645, %v4619
        %v4621 = vpop.f32.mrb[0].mxu0
        %v4622 = vadd.f32 %v3641, %v4621
        %v4623 = vpop.f32.mrb[0].mxu0
        %v4624 = vadd.f32 %v3645, %v4623
        %4625 = vmatprep.mubr.bf16.mxu0 0
        %4626 = vmatmul.mubr.bf16.gmra.mrb[0].mxu0 %v3536
        %v4627 = vpop.f32.mrb[0].mxu0
        %v4628 = vadd.f32 %v3641, %v4627
        %v4629 = vpop.f32.mrb[0].mxu0
        %v4630 = vadd.f32 %v3645, %v4629
        %v4631 = vpop.f32.mrb[0].mxu0
        %v4632 = vadd.f32 %v3641, %v4631
        %v4633 = vpop.f32.mrb[0].mxu0
        %v4634 = vadd.f32 %v3645, %v4633
        %4635 = vmatprep.mubr.bf16.mxu0 0
        %4636 = vmatmul.mubr.bf16.gmra.mrb[0].mxu0 %v3537
        %v4637 = vpop.f32.mrb[0].mxu0
        %v4638 = vadd.f32 %v3641, %v4637
        %v4639 = vpop.f32.mrb[0].mxu0
        %v4640 = vadd.f32 %v3645, %v4639
        %v4641 = vpop.f32.mrb[0].mxu0
        %v4642 = vadd.f32 %v3641, %v4641
        %v4643 = vpop.f32.mrb[0].mxu0
        %v4644 = vadd.f32 %v3645, %v4643
        %4645 = vmatprep.mubr.bf16.mxu0 0
        %4646 = vmatmul.mubr.bf16.gmra.mrb[0].mxu0 %v3538
        %v4647 = vpop.f32.mrb[0].mxu0
        %v4648 = vadd.f32 %v3641, %v4647
        %v4649 = vpop.f32.mrb[0].mxu0
        %v4650 = vadd.f32 %v3645, %v4649
        %v4651 = vpop.f32.mrb[0].mxu0
        %v4652 = vadd.f32 %v3641, %v4651
        %v4653 = vpop.f32.mrb[0].mxu0
        %v4654 = vadd.f32 %v3645, %v4653
        %4655 = vmatprep.mubr.bf16.mxu0 0
        %4656 = vmatmul.mubr.bf16.gmra.mrb[0].mxu0 %v3539
        %v4657 = vpop.f32.mrb[0].mxu0
        %v4658 = vadd.f32 %v3641, %v4657
        %v4659 = vpop.f32.mrb[0].mxu0
        %v4660 = vadd.f32 %v3645, %v4659
        %v4661 = vpop.f32.mrb[0].mxu0
        %v4662 = vadd.f32 %v3641, %v4661
        %v4663 = vpop.f32.mrb[0].mxu0
        %v4664 = vadd.f32 %v3645, %v4663
        %4665 = vmatprep.mubr.bf16.mxu0 0
        %4666 = vmatmul.mubr.bf16.gmra.mrb[0].mxu0 %v3540
        %v4667 = vpop.f32.mrb[0].mxu0
        %v4668 = vadd.f32 %v3641, %v4667
        %v4669 = vpop.f32.mrb[0].mxu0
        %v4670 = vadd.f32 %v3645, %v4669
        %v4671 = vpop.f32.mrb[0].mxu0
        %v4672 = vadd.f32 %v3641, %v4671
        %v4673 = vpop.f32.mrb[0].mxu0
        %v4674 = vadd.f32 %v3645, %v4673
        %4675 = vmatprep.mubr.bf16.mxu0 0
        %4676 = vmatmul.mubr.bf16.gmra.mrb[0].mxu0 %v3541
        %v4677 = vpop.f32.mrb[0].mxu0
        %v4678 = vadd.f32 %v3641, %v4677
        %v4679 = vpop.f32.mrb[0].mxu0
        %v4680 = vadd.f32 %v3645, %v4679
        %v4681 = vpop.f32.mrb[0].mxu0
        %v4682 = vadd.f32 %v3641, %v4681
        %v4683 = vpop.f32.mrb[0].mxu0
        %v4684 = vadd.f32 %v3645, %v4683
        %4685 = vmatprep.mubr.bf16.mxu0 0
        %4686 = vmatmul.mubr.bf16.gmra.mrb[0].mxu0 %v3542
        %v4687 = vpop.f32.mrb[0].mxu0
        %v4688 = vadd.f32 %v3641, %v4687
        %v4689 = vpop.f32.mrb[0].mxu0
        %v4690 = vadd.f32 %v3645, %v4689
        %v4691 = vpop.f32.mrb[0].mxu0
        %v4692 = vadd.f32 %v3641, %v4691
        %v4693 = vpop.f32.mrb[0].mxu0
        %v4694 = vadd.f32 %v3645, %v4693
        %4695 = vmatprep.mubr.bf16.mxu0 0
        %4696 = vmatmul.mubr.bf16.gmra.mrb[0].mxu0 %v3543
        %v4697 = vpop.f32.mrb[0].mxu0
        %v4698 = vadd.f32 %v3641, %v4697
        %v4699 = vpop.f32.mrb[0].mxu0
        %v4700 = vadd.f32 %v3645, %v4699
        %v4701 = vpop.f32.mrb[0].mxu0
        %v4702 = vadd.f32 %v3641, %v4701
        %v4703 = vpop.f32.mrb[0].mxu0
        %v4704 = vadd.f32 %v3645, %v4703
        %4705 = vmatprep.mubr.bf16.mxu0 0
        %4706 = vmatmul.mubr.bf16.gmra.mrb[0].mxu0 %v3544
        %v4707 = vpop.f32.mrb[0].mxu0
        %v4708 = vadd.f32 %v3641, %v4707
        %v4709 = vpop.f32.mrb[0].mxu0
        %v4710 = vadd.f32 %v3645, %v4709
        %v4711 = vpop.f32.mrb[0].mxu0
        %v4712 = vadd.f32 %v3641, %v4711
        %v4713 = vpop.f32.mrb[0].mxu0
        %v4714 = vadd.f32 %v3645, %v4713
        %4715 = vmatprep.mubr.bf16.mxu0 0
        %4716 = vmatmul.mubr.bf16.gmra.mrb[0].mxu0 %v3545
        %v4717 = vpop.f32.mrb[0].mxu0
        %v4718 = vadd.f32 %v3641, %v4717
        %v4719 = vpop.f32.mrb[0].mxu0
        %v4720 = vadd.f32 %v3645, %v4719
        %v4721 = vpop.f32.mrb[0].mxu0
        %v4722 = vadd.f32 %v3641, %v4721
        %v4723 = vpop.f32.mrb[0].mxu0
        %v4724 = vadd.f32 %v3645, %v4723
        %4725 = vmatprep.mubr.bf16.mxu0 0
        %4726 = vmatmul.mubr.bf16.gmra.mrb[0].mxu0 %v3546
        %v4727 = vpop.f32.mrb[0].mxu0
        %v4728 = vadd.f32 %v3641, %v4727
        %v4729 = vpop.f32.mrb[0].mxu0
        %v4730 = vadd.f32 %v3645, %v4729
        %v4731 = vpop.f32.mrb[0].mxu0
        %v4732 = vadd.f32 %v3641, %v4731
        %v4733 = vpop.f32.mrb[0].mxu0
        %v4734 = vadd.f32 %v3645, %v4733
        %4735 = vmatprep.mubr.bf16.mxu0 0
        %4736 = vmatmul.mubr.bf16.gmra.mrb[0].mxu0 %v3547
        %v4737 = vpop.f32.mrb[0].mxu0
        %v4738 = vadd.f32 %v3641, %v4737
        %v4739 = vpop.f32.mrb[0].mxu0
        %v4740 = vadd.f32 %v3645, %v4739
        %v4741 = vpop.f32.mrb[0].mxu0
        %v4742 = vadd.f32 %v3641, %v4741
        %v4743 = vpop.f32.mrb[0].mxu0
        %v4744 = vadd.f32 %v3645, %v4743
        %4745 = vdwg.mxu0
        %v4746 = vadd.f32 %v4009, 3.0
        %v4747 = vadd.f32 %v4011, 3.0
        %v4748 = vadd.f32 %v4202, 3.0
        %v4749 = vadd.f32 %v4204, 3.0
        %v4750 = vadd.f32 %v4395, 3.0
        %v4751 = vadd.f32 %v4397, 3.0
        %v4752 = vadd.f32 %v4588, 3.0
        %v4753 = vadd.f32 %v4590, 3.0
        %v4754 = vadd.f32 %v4013, 3.0
        %v4755 = vadd.f32 %v4015, 3.0
        %v4756 = vadd.f32 %v4206, 3.0
        %v4757 = vadd.f32 %v4208, 3.0
        %v4758 = vadd.f32 %v4399, 3.0
        %v4759 = vadd.f32 %v4401, 3.0
        %v4760 = vadd.f32 %v4592, 3.0
        %v4761 = vadd.f32 %v4594, 3.0
        %v4762 = vadd.f32 %v4019, 3.0
        %v4763 = vadd.f32 %v4021, 3.0
        %v4764 = vadd.f32 %v4212, 3.0
        %v4765 = vadd.f32 %v4214, 3.0
        %v4766 = vadd.f32 %v4405, 3.0
        %v4767 = vadd.f32 %v4407, 3.0
        %v4768 = vadd.f32 %v4598, 3.0
        %v4769 = vadd.f32 %v4600, 3.0
        %v4770 = vadd.f32 %v4023, 3.0
        %v4771 = vadd.f32 %v4025, 3.0
        %v4772 = vadd.f32 %v4216, 3.0
        %v4773 = vadd.f32 %v4218, 3.0
        %v4774 = vadd.f32 %v4409, 3.0
        %v4775 = vadd.f32 %v4411, 3.0
        %v4776 = vadd.f32 %v4602, 3.0
        %v4777 = vadd.f32 %v4604, 3.0
        %v4778 = vadd.f32 %v4029, 3.0
        %v4779 = vadd.f32 %v4031, 3.0
        %v4780 = vadd.f32 %v4222, 3.0
        %v4781 = vadd.f32 %v4224, 3.0
        %v4782 = vadd.f32 %v4415, 3.0
        %v4783 = vadd.f32 %v4417, 3.0
        %v4784 = vadd.f32 %v4608, 3.0
        %v4785 = vadd.f32 %v4610, 3.0
        %v4786 = vadd.f32 %v4033, 3.0
        %v4787 = vadd.f32 %v4035, 3.0
        %v4788 = vadd.f32 %v4226, 3.0
        %v4789 = vadd.f32 %v4228, 3.0
        %v4790 = vadd.f32 %v4419, 3.0
        %v4791 = vadd.f32 %v4421, 3.0
        %v4792 = vadd.f32 %v4612, 3.0
        %v4793 = vadd.f32 %v4614, 3.0
        %v4794 = vadd.f32 %v4039, 3.0
        %v4795 = vadd.f32 %v4041, 3.0
        %v4796 = vadd.f32 %v4232, 3.0
        %v4797 = vadd.f32 %v4234, 3.0
        %v4798 = vadd.f32 %v4425, 3.0
        %v4799 = vadd.f32 %v4427, 3.0
        %v4800 = vadd.f32 %v4618, 3.0
        %v4801 = vadd.f32 %v4620, 3.0
        %v4802 = vadd.f32 %v4043, 3.0
        %v4803 = vadd.f32 %v4045, 3.0
        %v4804 = vadd.f32 %v4236, 3.0
        %v4805 = vadd.f32 %v4238, 3.0
        %v4806 = vadd.f32 %v4429, 3.0
        %v4807 = vadd.f32 %v4431, 3.0
        %v4808 = vadd.f32 %v4622, 3.0
        %v4809 = vadd.f32 %v4624, 3.0
        %v4810 = vadd.f32 %v4049, 3.0
        %v4811 = vadd.f32 %v4051, 3.0
        %v4812 = vadd.f32 %v4242, 3.0
        %v4813 = vadd.f32 %v4244, 3.0
        %v4814 = vadd.f32 %v4435, 3.0
        %v4815 = vadd.f32 %v4437, 3.0
        %v4816 = vadd.f32 %v4628, 3.0
        %v4817 = vadd.f32 %v4630, 3.0
        %v4818 = vadd.f32 %v4053, 3.0
        %v4819 = vadd.f32 %v4055, 3.0
        %v4820 = vadd.f32 %v4246, 3.0
        %v4821 = vadd.f32 %v4248, 3.0
        %v4822 = vadd.f32 %v4439, 3.0
        %v4823 = vadd.f32 %v4441, 3.0
        %v4824 = vadd.f32 %v4632, 3.0
        %v4825 = vadd.f32 %v4634, 3.0
        %v4826 = vadd.f32 %v4059, 3.0
        %v4827 = vadd.f32 %v4061, 3.0
        %v4828 = vadd.f32 %v4252, 3.0
        %v4829 = vadd.f32 %v4254, 3.0
        %v4830 = vadd.f32 %v4445, 3.0
        %v4831 = vadd.f32 %v4447, 3.0
        %v4832 = vadd.f32 %v4638, 3.0
        %v4833 = vadd.f32 %v4640, 3.0
        %v4834 = vadd.f32 %v4063, 3.0
        %v4835 = vadd.f32 %v4065, 3.0
        %v4836 = vadd.f32 %v4256, 3.0
        %v4837 = vadd.f32 %v4258, 3.0
        %v4838 = vadd.f32 %v4449, 3.0
        %v4839 = vadd.f32 %v4451, 3.0
        %v4840 = vadd.f32 %v4642, 3.0
        %v4841 = vadd.f32 %v4644, 3.0
        %v4842 = vadd.f32 %v4069, 3.0
        %v4843 = vadd.f32 %v4071, 3.0
        %v4844 = vadd.f32 %v4262, 3.0
        %v4845 = vadd.f32 %v4264, 3.0
        %v4846 = vadd.f32 %v4455, 3.0
        %v4847 = vadd.f32 %v4457, 3.0
        %v4848 = vadd.f32 %v4648, 3.0
        %v4849 = vadd.f32 %v4650, 3.0
        %v4850 = vadd.f32 %v4073, 3.0
        %v4851 = vadd.f32 %v4075, 3.0
        %v4852 = vadd.f32 %v4266, 3.0
        %v4853 = vadd.f32 %v4268, 3.0
        %v4854 = vadd.f32 %v4459, 3.0
        %v4855 = vadd.f32 %v4461, 3.0
        %v4856 = vadd.f32 %v4652, 3.0
        %v4857 = vadd.f32 %v4654, 3.0
        %v4858 = vadd.f32 %v4079, 3.0
        %v4859 = vadd.f32 %v4081, 3.0
        %v4860 = vadd.f32 %v4272, 3.0
        %v4861 = vadd.f32 %v4274, 3.0
        %v4862 = vadd.f32 %v4465, 3.0
        %v4863 = vadd.f32 %v4467, 3.0
        %v4864 = vadd.f32 %v4658, 3.0
        %v4865 = vadd.f32 %v4660, 3.0
        %v4866 = vadd.f32 %v4083, 3.0
        %v4867 = vadd.f32 %v4085, 3.0
        %v4868 = vadd.f32 %v4276, 3.0
        %v4869 = vadd.f32 %v4278, 3.0
        %v4870 = vadd.f32 %v4469, 3.0
        %v4871 = vadd.f32 %v4471, 3.0
        %v4872 = vadd.f32 %v4662, 3.0
        %v4873 = vadd.f32 %v4664, 3.0
        %v4874 = vadd.f32 %v4089, 3.0
        %v4875 = vadd.f32 %v4091, 3.0
        %v4876 = vadd.f32 %v4282, 3.0
        %v4877 = vadd.f32 %v4284, 3.0
        %v4878 = vadd.f32 %v4475, 3.0
        %v4879 = vadd.f32 %v4477, 3.0
        %v4880 = vadd.f32 %v4668, 3.0
        %v4881 = vadd.f32 %v4670, 3.0
        %v4882 = vadd.f32 %v4093, 3.0
        %v4883 = vadd.f32 %v4095, 3.0
        %v4884 = vadd.f32 %v4286, 3.0
        %v4885 = vadd.f32 %v4288, 3.0
        %v4886 = vadd.f32 %v4479, 3.0
        %v4887 = vadd.f32 %v4481, 3.0
        %v4888 = vadd.f32 %v4672, 3.0
        %v4889 = vadd.f32 %v4674, 3.0
        %v4890 = vadd.f32 %v4099, 3.0
        %v4891 = vadd.f32 %v4101, 3.0
        %v4892 = vadd.f32 %v4292, 3.0
        %v4893 = vadd.f32 %v4294, 3.0
        %v4894 = vadd.f32 %v4485, 3.0
        %v4895 = vadd.f32 %v4487, 3.0
        %v4896 = vadd.f32 %v4678, 3.0
        %v4897 = vadd.f32 %v4680, 3.0
        %v4898 = vadd.f32 %v4103, 3.0
        %v4899 = vadd.f32 %v4105, 3.0
        %v4900 = vadd.f32 %v4296, 3.0
        %v4901 = vadd.f32 %v4298, 3.0
        %v4902 = vadd.f32 %v4489, 3.0
        %v4903 = vadd.f32 %v4491, 3.0
        %v4904 = vadd.f32 %v4682, 3.0
        %v4905 = vadd.f32 %v4684, 3.0
        %v4906 = vadd.f32 %v4109, 3.0
        %v4907 = vadd.f32 %v4111, 3.0
        %v4908 = vadd.f32 %v4302, 3.0
        %v4909 = vadd.f32 %v4304, 3.0
        %v4910 = vadd.f32 %v4495, 3.0
        %v4911 = vadd.f32 %v4497, 3.0
        %v4912 = vadd.f32 %v4688, 3.0
        %v4913 = vadd.f32 %v4690, 3.0
        %v4914 = vadd.f32 %v4113, 3.0
        %v4915 = vadd.f32 %v4115, 3.0
        %v4916 = vadd.f32 %v4306, 3.0
        %v4917 = vadd.f32 %v4308, 3.0
        %v4918 = vadd.f32 %v4499, 3.0
        %v4919 = vadd.f32 %v4501, 3.0
        %v4920 = vadd.f32 %v4692, 3.0
        %v4921 = vadd.f32 %v4694, 3.0
        %v4922 = vadd.f32 %v4119, 3.0
        %v4923 = vadd.f32 %v4121, 3.0
        %v4924 = vadd.f32 %v4312, 3.0
        %v4925 = vadd.f32 %v4314, 3.0
        %v4926 = vadd.f32 %v4505, 3.0
        %v4927 = vadd.f32 %v4507, 3.0
        %v4928 = vadd.f32 %v4698, 3.0
        %v4929 = vadd.f32 %v4700, 3.0
        %v4930 = vadd.f32 %v4123, 3.0
        %v4931 = vadd.f32 %v4125, 3.0
        %v4932 = vadd.f32 %v4316, 3.0
        %v4933 = vadd.f32 %v4318, 3.0
        %v4934 = vadd.f32 %v4509, 3.0
        %v4935 = vadd.f32 %v4511, 3.0
        %v4936 = vadd.f32 %v4702, 3.0
        %v4937 = vadd.f32 %v4704, 3.0
        %v4938 = vadd.f32 %v4129, 3.0
        %v4939 = vadd.f32 %v4131, 3.0
        %v4940 = vadd.f32 %v4322, 3.0
        %v4941 = vadd.f32 %v4324, 3.0
        %v4942 = vadd.f32 %v4515, 3.0
        %v4943 = vadd.f32 %v4517, 3.0
        %v4944 = vadd.f32 %v4708, 3.0
        %v4945 = vadd.f32 %v4710, 3.0
        %v4946 = vadd.f32 %v4133, 3.0
        %v4947 = vadd.f32 %v4135, 3.0
        %v4948 = vadd.f32 %v4326, 3.0
        %v4949 = vadd.f32 %v4328, 3.0
        %v4950 = vadd.f32 %v4519, 3.0
        %v4951 = vadd.f32 %v4521, 3.0
        %v4952 = vadd.f32 %v4712, 3.0
        %v4953 = vadd.f32 %v4714, 3.0
        %v4954 = vadd.f32 %v4139, 3.0
        %v4955 = vadd.f32 %v4141, 3.0
        %v4956 = vadd.f32 %v4332, 3.0
        %v4957 = vadd.f32 %v4334, 3.0
        %v4958 = vadd.f32 %v4525, 3.0
        %v4959 = vadd.f32 %v4527, 3.0
        %v4960 = vadd.f32 %v4718, 3.0
        %v4961 = vadd.f32 %v4720, 3.0
        %v4962 = vadd.f32 %v4143, 3.0
        %v4963 = vadd.f32 %v4145, 3.0
        %v4964 = vadd.f32 %v4336, 3.0
        %v4965 = vadd.f32 %v4338, 3.0
        %v4966 = vadd.f32 %v4529, 3.0
        %v4967 = vadd.f32 %v4531, 3.0
        %v4968 = vadd.f32 %v4722, 3.0
        %v4969 = vadd.f32 %v4724, 3.0
        %v4970 = vadd.f32 %v4149, 3.0
        %v4971 = vadd.f32 %v4151, 3.0
        %v4972 = vadd.f32 %v4342, 3.0
        %v4973 = vadd.f32 %v4344, 3.0
        %v4974 = vadd.f32 %v4535, 3.0
        %v4975 = vadd.f32 %v4537, 3.0
        %v4976 = vadd.f32 %v4728, 3.0
        %v4977 = vadd.f32 %v4730, 3.0
        %v4978 = vadd.f32 %v4153, 3.0
        %v4979 = vadd.f32 %v4155, 3.0
        %v4980 = vadd.f32 %v4346, 3.0
        %v4981 = vadd.f32 %v4348, 3.0
        %v4982 = vadd.f32 %v4539, 3.0
        %v4983 = vadd.f32 %v4541, 3.0
        %v4984 = vadd.f32 %v4732, 3.0
        %v4985 = vadd.f32 %v4734, 3.0
        %v4986 = vadd.f32 %v4159, 3.0
        %v4987 = vadd.f32 %v4161, 3.0
        %v4988 = vadd.f32 %v4352, 3.0
        %v4989 = vadd.f32 %v4354, 3.0
        %v4990 = vadd.f32 %v4545, 3.0
        %v4991 = vadd.f32 %v4547, 3.0
        %v4992 = vadd.f32 %v4738, 3.0
        %v4993 = vadd.f32 %v4740, 3.0
        %v4994 = vadd.f32 %v4163, 3.0
        %v4995 = vadd.f32 %v4165, 3.0
        %v4996 = vadd.f32 %v4356, 3.0
        %v4997 = vadd.f32 %v4358, 3.0
        %v4998 = vadd.f32 %v4549, 3.0
        %v4999 = vadd.f32 %v4551, 3.0
        %v5000 = vadd.f32 %v4742, 3.0
        %v5001 = vadd.f32 %v4744, 3.0
        %v5002 = vmax.f32 %v4746, 0.0
        %v5003 = vmax.f32 %v4747, 0.0
        %v5004 = vmax.f32 %v4748, 0.0
        %v5005 = vmax.f32 %v4749, 0.0
        %v5006 = vmax.f32 %v4750, 0.0
        %v5007 = vmax.f32 %v4751, 0.0
        %v5008 = vmax.f32 %v4752, 0.0
        %v5009 = vmax.f32 %v4753, 0.0
        %v5010 = vmax.f32 %v4754, 0.0
        %v5011 = vmax.f32 %v4755, 0.0
        %v5012 = vmax.f32 %v4756, 0.0
        %v5013 = vmax.f32 %v4757, 0.0
        %v5014 = vmax.f32 %v4758, 0.0
        %v5015 = vmax.f32 %v4759, 0.0
        %v5016 = vmax.f32 %v4760, 0.0
        %v5017 = vmax.f32 %v4761, 0.0
        %v5018 = vmax.f32 %v4762, 0.0
        %v5019 = vmax.f32 %v4763, 0.0
        %v5020 = vmax.f32 %v4764, 0.0
        %v5021 = vmax.f32 %v4765, 0.0
        %v5022 = vmax.f32 %v4766, 0.0
        %v5023 = vmax.f32 %v4767, 0.0
        %v5024 = vmax.f32 %v4768, 0.0
        %v5025 = vmax.f32 %v4769, 0.0
        %v5026 = vmax.f32 %v4770, 0.0
        %v5027 = vmax.f32 %v4771, 0.0
        %v5028 = vmax.f32 %v4772, 0.0
        %v5029 = vmax.f32 %v4773, 0.0
        %v5030 = vmax.f32 %v4774, 0.0
        %v5031 = vmax.f32 %v4775, 0.0
        %v5032 = vmax.f32 %v4776, 0.0
        %v5033 = vmax.f32 %v4777, 0.0
        %v5034 = vmax.f32 %v4778, 0.0
        %v5035 = vmax.f32 %v4779, 0.0
        %v5036 = vmax.f32 %v4780, 0.0
        %v5037 = vmax.f32 %v4781, 0.0
        %v5038 = vmax.f32 %v4782, 0.0
        %v5039 = vmax.f32 %v4783, 0.0
        %v5040 = vmax.f32 %v4784, 0.0
        %v5041 = vmax.f32 %v4785, 0.0
        %v5042 = vmax.f32 %v4786, 0.0
        %v5043 = vmax.f32 %v4787, 0.0
        %v5044 = vmax.f32 %v4788, 0.0
        %v5045 = vmax.f32 %v4789, 0.0
        %v5046 = vmax.f32 %v4790, 0.0
        %v5047 = vmax.f32 %v4791, 0.0
        %v5048 = vmax.f32 %v4792, 0.0
        %v5049 = vmax.f32 %v4793, 0.0
        %v5050 = vmax.f32 %v4794, 0.0
        %v5051 = vmax.f32 %v4795, 0.0
        %v5052 = vmax.f32 %v4796, 0.0
        %v5053 = vmax.f32 %v4797, 0.0
        %v5054 = vmax.f32 %v4798, 0.0
        %v5055 = vmax.f32 %v4799, 0.0
        %v5056 = vmax.f32 %v4800, 0.0
        %v5057 = vmax.f32 %v4801, 0.0
        %v5058 = vmax.f32 %v4802, 0.0
        %v5059 = vmax.f32 %v4803, 0.0
        %v5060 = vmax.f32 %v4804, 0.0
        %v5061 = vmax.f32 %v4805, 0.0
        %v5062 = vmax.f32 %v4806, 0.0
        %v5063 = vmax.f32 %v4807, 0.0
        %v5064 = vmax.f32 %v4808, 0.0
        %v5065 = vmax.f32 %v4809, 0.0
        %v5066 = vmax.f32 %v4810, 0.0
        %v5067 = vmax.f32 %v4811, 0.0
        %v5068 = vmax.f32 %v4812, 0.0
        %v5069 = vmax.f32 %v4813, 0.0
        %v5070 = vmax.f32 %v4814, 0.0
        %v5071 = vmax.f32 %v4815, 0.0
        %v5072 = vmax.f32 %v4816, 0.0
        %v5073 = vmax.f32 %v4817, 0.0
        %v5074 = vmax.f32 %v4818, 0.0
        %v5075 = vmax.f32 %v4819, 0.0
        %v5076 = vmax.f32 %v4820, 0.0
        %v5077 = vmax.f32 %v4821, 0.0
        %v5078 = vmax.f32 %v4822, 0.0
        %v5079 = vmax.f32 %v4823, 0.0
        %v5080 = vmax.f32 %v4824, 0.0
        %v5081 = vmax.f32 %v4825, 0.0
        %v5082 = vmax.f32 %v4826, 0.0
        %v5083 = vmax.f32 %v4827, 0.0
        %v5084 = vmax.f32 %v4828, 0.0
        %v5085 = vmax.f32 %v4829, 0.0
        %v5086 = vmax.f32 %v4830, 0.0
        %v5087 = vmax.f32 %v4831, 0.0
        %v5088 = vmax.f32 %v4832, 0.0
        %v5089 = vmax.f32 %v4833, 0.0
        %v5090 = vmax.f32 %v4834, 0.0
        %v5091 = vmax.f32 %v4835, 0.0
        %v5092 = vmax.f32 %v4836, 0.0
        %v5093 = vmax.f32 %v4837, 0.0
        %v5094 = vmax.f32 %v4838, 0.0
        %v5095 = vmax.f32 %v4839, 0.0
        %v5096 = vmax.f32 %v4840, 0.0
        %v5097 = vmax.f32 %v4841, 0.0
        %v5098 = vmax.f32 %v4842, 0.0
        %v5099 = vmax.f32 %v4843, 0.0
        %v5100 = vmax.f32 %v4844, 0.0
        %v5101 = vmax.f32 %v4845, 0.0
        %v5102 = vmax.f32 %v4846, 0.0
        %v5103 = vmax.f32 %v4847, 0.0
        %v5104 = vmax.f32 %v4848, 0.0
        %v5105 = vmax.f32 %v4849, 0.0
        %v5106 = vmax.f32 %v4850, 0.0
        %v5107 = vmax.f32 %v4851, 0.0
        %v5108 = vmax.f32 %v4852, 0.0
        %v5109 = vmax.f32 %v4853, 0.0
        %v5110 = vmax.f32 %v4854, 0.0
        %v5111 = vmax.f32 %v4855, 0.0
        %v5112 = vmax.f32 %v4856, 0.0
        %v5113 = vmax.f32 %v4857, 0.0
        %v5114 = vmax.f32 %v4858, 0.0
        %v5115 = vmax.f32 %v4859, 0.0
        %v5116 = vmax.f32 %v4860, 0.0
        %v5117 = vmax.f32 %v4861, 0.0
        %v5118 = vmax.f32 %v4862, 0.0
        %v5119 = vmax.f32 %v4863, 0.0
        %v5120 = vmax.f32 %v4864, 0.0
        %v5121 = vmax.f32 %v4865, 0.0
        %v5122 = vmax.f32 %v4866, 0.0
        %v5123 = vmax.f32 %v4867, 0.0
        %v5124 = vmax.f32 %v4868, 0.0
        %v5125 = vmax.f32 %v4869, 0.0
        %v5126 = vmax.f32 %v4870, 0.0
        %v5127 = vmax.f32 %v4871, 0.0
        %v5128 = vmax.f32 %v4872, 0.0
        %v5129 = vmax.f32 %v4873, 0.0
        %v5130 = vmax.f32 %v4874, 0.0
        %v5131 = vmax.f32 %v4875, 0.0
        %v5132 = vmax.f32 %v4876, 0.0
        %v5133 = vmax.f32 %v4877, 0.0
        %v5134 = vmax.f32 %v4878, 0.0
        %v5135 = vmax.f32 %v4879, 0.0
        %v5136 = vmax.f32 %v4880, 0.0
        %v5137 = vmax.f32 %v4881, 0.0
        %v5138 = vmax.f32 %v4882, 0.0
        %v5139 = vmax.f32 %v4883, 0.0
        %v5140 = vmax.f32 %v4884, 0.0
        %v5141 = vmax.f32 %v4885, 0.0
        %v5142 = vmax.f32 %v4886, 0.0
        %v5143 = vmax.f32 %v4887, 0.0
        %v5144 = vmax.f32 %v4888, 0.0
        %v5145 = vmax.f32 %v4889, 0.0
        %v5146 = vmax.f32 %v4890, 0.0
        %v5147 = vmax.f32 %v4891, 0.0
        %v5148 = vmax.f32 %v4892, 0.0
        %v5149 = vmax.f32 %v4893, 0.0
        %v5150 = vmax.f32 %v4894, 0.0
        %v5151 = vmax.f32 %v4895, 0.0
        %v5152 = vmax.f32 %v4896, 0.0
        %v5153 = vmax.f32 %v4897, 0.0
        %v5154 = vmax.f32 %v4898, 0.0
        %v5155 = vmax.f32 %v4899, 0.0
        %v5156 = vmax.f32 %v4900, 0.0
        %v5157 = vmax.f32 %v4901, 0.0
        %v5158 = vmax.f32 %v4902, 0.0
        %v5159 = vmax.f32 %v4903, 0.0
        %v5160 = vmax.f32 %v4904, 0.0
        %v5161 = vmax.f32 %v4905, 0.0
        %v5162 = vmax.f32 %v4906, 0.0
        %v5163 = vmax.f32 %v4907, 0.0
        %v5164 = vmax.f32 %v4908, 0.0
        %v5165 = vmax.f32 %v4909, 0.0
        %v5166 = vmax.f32 %v4910, 0.0
        %v5167 = vmax.f32 %v4911, 0.0
        %v5168 = vmax.f32 %v4912, 0.0
        %v5169 = vmax.f32 %v4913, 0.0
        %v5170 = vmax.f32 %v4914, 0.0
        %v5171 = vmax.f32 %v4915, 0.0
        %v5172 = vmax.f32 %v4916, 0.0
        %v5173 = vmax.f32 %v4917, 0.0
        %v5174 = vmax.f32 %v4918, 0.0
        %v5175 = vmax.f32 %v4919, 0.0
        %v5176 = vmax.f32 %v4920, 0.0
        %v5177 = vmax.f32 %v4921, 0.0
        %v5178 = vmax.f32 %v4922, 0.0
        %v5179 = vmax.f32 %v4923, 0.0
        %v5180 = vmax.f32 %v4924, 0.0
        %v5181 = vmax.f32 %v4925, 0.0
        %v5182 = vmax.f32 %v4926, 0.0
        %v5183 = vmax.f32 %v4927, 0.0
        %v5184 = vmax.f32 %v4928, 0.0
        %v5185 = vmax.f32 %v4929, 0.0
        %v5186 = vmax.f32 %v4930, 0.0
        %v5187 = vmax.f32 %v4931, 0.0
        %v5188 = vmax.f32 %v4932, 0.0
        %v5189 = vmax.f32 %v4933, 0.0
        %v5190 = vmax.f32 %v4934, 0.0
        %v5191 = vmax.f32 %v4935, 0.0
        %v5192 = vmax.f32 %v4936, 0.0
        %v5193 = vmax.f32 %v4937, 0.0
        %v5194 = vmax.f32 %v4938, 0.0
        %v5195 = vmax.f32 %v4939, 0.0
        %v5196 = vmax.f32 %v4940, 0.0
        %v5197 = vmax.f32 %v4941, 0.0
        %v5198 = vmax.f32 %v4942, 0.0
        %v5199 = vmax.f32 %v4943, 0.0
        %v5200 = vmax.f32 %v4944, 0.0
        %v5201 = vmax.f32 %v4945, 0.0
        %v5202 = vmax.f32 %v4946, 0.0
        %v5203 = vmax.f32 %v4947, 0.0
        %v5204 = vmax.f32 %v4948, 0.0
        %v5205 = vmax.f32 %v4949, 0.0
        %v5206 = vmax.f32 %v4950, 0.0
        %v5207 = vmax.f32 %v4951, 0.0
        %v5208 = vmax.f32 %v4952, 0.0
        %v5209 = vmax.f32 %v4953, 0.0
        %v5210 = vmax.f32 %v4954, 0.0
        %v5211 = vmax.f32 %v4955, 0.0
        %v5212 = vmax.f32 %v4956, 0.0
        %v5213 = vmax.f32 %v4957, 0.0
        %v5214 = vmax.f32 %v4958, 0.0
        %v5215 = vmax.f32 %v4959, 0.0
        %v5216 = vmax.f32 %v4960, 0.0
        %v5217 = vmax.f32 %v4961, 0.0
        %v5218 = vmax.f32 %v4962, 0.0
        %v5219 = vmax.f32 %v4963, 0.0
        %v5220 = vmax.f32 %v4964, 0.0
        %v5221 = vmax.f32 %v4965, 0.0
        %v5222 = vmax.f32 %v4966, 0.0
        %v5223 = vmax.f32 %v4967, 0.0
        %v5224 = vmax.f32 %v4968, 0.0
        %v5225 = vmax.f32 %v4969, 0.0
        %v5226 = vmax.f32 %v4970, 0.0
        %v5227 = vmax.f32 %v4971, 0.0
        %v5228 = vmax.f32 %v4972, 0.0
        %v5229 = vmax.f32 %v4973, 0.0
        %v5230 = vmax.f32 %v4974, 0.0
        %v5231 = vmax.f32 %v4975, 0.0
        %v5232 = vmax.f32 %v4976, 0.0
        %v5233 = vmax.f32 %v4977, 0.0
        %v5234 = vmax.f32 %v4978, 0.0
        %v5235 = vmax.f32 %v4979, 0.0
        %v5236 = vmax.f32 %v4980, 0.0
        %v5237 = vmax.f32 %v4981, 0.0
        %v5238 = vmax.f32 %v4982, 0.0
        %v5239 = vmax.f32 %v4983, 0.0
        %v5240 = vmax.f32 %v4984, 0.0
        %v5241 = vmax.f32 %v4985, 0.0
        %v5242 = vmax.f32 %v4986, 0.0
        %v5243 = vmax.f32 %v4987, 0.0
        %v5244 = vmax.f32 %v4988, 0.0
        %v5245 = vmax.f32 %v4989, 0.0
        %v5246 = vmax.f32 %v4990, 0.0
        %v5247 = vmax.f32 %v4991, 0.0
        %v5248 = vmax.f32 %v4992, 0.0
        %v5249 = vmax.f32 %v4993, 0.0
        %v5250 = vmax.f32 %v4994, 0.0
        %v5251 = vmax.f32 %v4995, 0.0
        %v5252 = vmax.f32 %v4996, 0.0
        %v5253 = vmax.f32 %v4997, 0.0
        %v5254 = vmax.f32 %v4998, 0.0
        %v5255 = vmax.f32 %v4999, 0.0
        %v5256 = vmax.f32 %v5000, 0.0
        %v5257 = vmax.f32 %v5001, 0.0
        %v5258 = vmin.f32 %v5002, 6.0
        %v5259 = vmin.f32 %v5003, 6.0
        %v5260 = vmin.f32 %v5004, 6.0
        %v5261 = vmin.f32 %v5005, 6.0
        %v5262 = vmin.f32 %v5006, 6.0
        %v5263 = vmin.f32 %v5007, 6.0
        %v5264 = vmin.f32 %v5008, 6.0
        %v5265 = vmin.f32 %v5009, 6.0
        %v5266 = vmin.f32 %v5010, 6.0
        %v5267 = vmin.f32 %v5011, 6.0
        %v5268 = vmin.f32 %v5012, 6.0
        %v5269 = vmin.f32 %v5013, 6.0
        %v5270 = vmin.f32 %v5014, 6.0
        %v5271 = vmin.f32 %v5015, 6.0
        %v5272 = vmin.f32 %v5016, 6.0
        %v5273 = vmin.f32 %v5017, 6.0
        %v5274 = vmin.f32 %v5018, 6.0
        %v5275 = vmin.f32 %v5019, 6.0
        %v5276 = vmin.f32 %v5020, 6.0
        %v5277 = vmin.f32 %v5021, 6.0
        %v5278 = vmin.f32 %v5022, 6.0
        %v5279 = vmin.f32 %v5023, 6.0
        %v5280 = vmin.f32 %v5024, 6.0
        %v5281 = vmin.f32 %v5025, 6.0
        %v5282 = vmin.f32 %v5026, 6.0
        %v5283 = vmin.f32 %v5027, 6.0
        %v5284 = vmin.f32 %v5028, 6.0
        %v5285 = vmin.f32 %v5029, 6.0
        %v5286 = vmin.f32 %v5030, 6.0
        %v5287 = vmin.f32 %v5031, 6.0
        %v5288 = vmin.f32 %v5032, 6.0
        %v5289 = vmin.f32 %v5033, 6.0
        %v5290 = vmin.f32 %v5034, 6.0
        %v5291 = vmin.f32 %v5035, 6.0
        %v5292 = vmin.f32 %v5036, 6.0
        %v5293 = vmin.f32 %v5037, 6.0
        %v5294 = vmin.f32 %v5038, 6.0
        %v5295 = vmin.f32 %v5039, 6.0
        %v5296 = vmin.f32 %v5040, 6.0
        %v5297 = vmin.f32 %v5041, 6.0
        %v5298 = vmin.f32 %v5042, 6.0
        %v5299 = vmin.f32 %v5043, 6.0
        %v5300 = vmin.f32 %v5044, 6.0
        %v5301 = vmin.f32 %v5045, 6.0
        %v5302 = vmin.f32 %v5046, 6.0
        %v5303 = vmin.f32 %v5047, 6.0
        %v5304 = vmin.f32 %v5048, 6.0
        %v5305 = vmin.f32 %v5049, 6.0
        %v5306 = vmin.f32 %v5050, 6.0
        %v5307 = vmin.f32 %v5051, 6.0
        %v5308 = vmin.f32 %v5052, 6.0
        %v5309 = vmin.f32 %v5053, 6.0
        %v5310 = vmin.f32 %v5054, 6.0
        %v5311 = vmin.f32 %v5055, 6.0
        %v5312 = vmin.f32 %v5056, 6.0
        %v5313 = vmin.f32 %v5057, 6.0
        %v5314 = vmin.f32 %v5058, 6.0
        %v5315 = vmin.f32 %v5059, 6.0
        %v5316 = vmin.f32 %v5060, 6.0
        %v5317 = vmin.f32 %v5061, 6.0
        %v5318 = vmin.f32 %v5062, 6.0
        %v5319 = vmin.f32 %v5063, 6.0
        %v5320 = vmin.f32 %v5064, 6.0
        %v5321 = vmin.f32 %v5065, 6.0
        %v5322 = vmin.f32 %v5066, 6.0
        %v5323 = vmin.f32 %v5067, 6.0
        %v5324 = vmin.f32 %v5068, 6.0
        %v5325 = vmin.f32 %v5069, 6.0
        %v5326 = vmin.f32 %v5070, 6.0
        %v5327 = vmin.f32 %v5071, 6.0
        %v5328 = vmin.f32 %v5072, 6.0
        %v5329 = vmin.f32 %v5073, 6.0
        %v5330 = vmin.f32 %v5074, 6.0
        %v5331 = vmin.f32 %v5075, 6.0
        %v5332 = vmin.f32 %v5076, 6.0
        %v5333 = vmin.f32 %v5077, 6.0
        %v5334 = vmin.f32 %v5078, 6.0
        %v5335 = vmin.f32 %v5079, 6.0
        %v5336 = vmin.f32 %v5080, 6.0
        %v5337 = vmin.f32 %v5081, 6.0
        %v5338 = vmin.f32 %v5082, 6.0
        %v5339 = vmin.f32 %v5083, 6.0
        %v5340 = vmin.f32 %v5084, 6.0
        %v5341 = vmin.f32 %v5085, 6.0
        %v5342 = vmin.f32 %v5086, 6.0
        %v5343 = vmin.f32 %v5087, 6.0
        %v5344 = vmin.f32 %v5088, 6.0
        %v5345 = vmin.f32 %v5089, 6.0
        %v5346 = vmin.f32 %v5090, 6.0
        %v5347 = vmin.f32 %v5091, 6.0
        %v5348 = vmin.f32 %v5092, 6.0
        %v5349 = vmin.f32 %v5093, 6.0
        %v5350 = vmin.f32 %v5094, 6.0
        %v5351 = vmin.f32 %v5095, 6.0
        %v5352 = vmin.f32 %v5096, 6.0
        %v5353 = vmin.f32 %v5097, 6.0
        %v5354 = vmin.f32 %v5098, 6.0
        %v5355 = vmin.f32 %v5099, 6.0
        %v5356 = vmin.f32 %v5100, 6.0
        %v5357 = vmin.f32 %v5101, 6.0
        %v5358 = vmin.f32 %v5102, 6.0
        %v5359 = vmin.f32 %v5103, 6.0
        %v5360 = vmin.f32 %v5104, 6.0
        %v5361 = vmin.f32 %v5105, 6.0
        %v5362 = vmin.f32 %v5106, 6.0
        %v5363 = vmin.f32 %v5107, 6.0
        %v5364 = vmin.f32 %v5108, 6.0
        %v5365 = vmin.f32 %v5109, 6.0
        %v5366 = vmin.f32 %v5110, 6.0
        %v5367 = vmin.f32 %v5111, 6.0
        %v5368 = vmin.f32 %v5112, 6.0
        %v5369 = vmin.f32 %v5113, 6.0
        %v5370 = vmin.f32 %v5114, 6.0
        %v5371 = vmin.f32 %v5115, 6.0
        %v5372 = vmin.f32 %v5116, 6.0
        %v5373 = vmin.f32 %v5117, 6.0
        %v5374 = vmin.f32 %v5118, 6.0
        %v5375 = vmin.f32 %v5119, 6.0
        %v5376 = vmin.f32 %v5120, 6.0
        %v5377 = vmin.f32 %v5121, 6.0
        %v5378 = vmin.f32 %v5122, 6.0
        %v5379 = vmin.f32 %v5123, 6.0
        %v5380 = vmin.f32 %v5124, 6.0
        %v5381 = vmin.f32 %v5125, 6.0
        %v5382 = vmin.f32 %v5126, 6.0
        %v5383 = vmin.f32 %v5127, 6.0
        %v5384 = vmin.f32 %v5128, 6.0
        %v5385 = vmin.f32 %v5129, 6.0
        %v5386 = vmin.f32 %v5130, 6.0
        %v5387 = vmin.f32 %v5131, 6.0
        %v5388 = vmin.f32 %v5132, 6.0
        %v5389 = vmin.f32 %v5133, 6.0
        %v5390 = vmin.f32 %v5134, 6.0
        %v5391 = vmin.f32 %v5135, 6.0
        %v5392 = vmin.f32 %v5136, 6.0
        %v5393 = vmin.f32 %v5137, 6.0
        %v5394 = vmin.f32 %v5138, 6.0
        %v5395 = vmin.f32 %v5139, 6.0
        %v5396 = vmin.f32 %v5140, 6.0
        %v5397 = vmin.f32 %v5141, 6.0
        %v5398 = vmin.f32 %v5142, 6.0
        %v5399 = vmin.f32 %v5143, 6.0
        %v5400 = vmin.f32 %v5144, 6.0
        %v5401 = vmin.f32 %v5145, 6.0
        %v5402 = vmin.f32 %v5146, 6.0
        %v5403 = vmin.f32 %v5147, 6.0
        %v5404 = vmin.f32 %v5148, 6.0
        %v5405 = vmin.f32 %v5149, 6.0
        %v5406 = vmin.f32 %v5150, 6.0
        %v5407 = vmin.f32 %v5151, 6.0
        %v5408 = vmin.f32 %v5152, 6.0
        %v5409 = vmin.f32 %v5153, 6.0
        %v5410 = vmin.f32 %v5154, 6.0
        %v5411 = vmin.f32 %v5155, 6.0
        %v5412 = vmin.f32 %v5156, 6.0
        %v5413 = vmin.f32 %v5157, 6.0
        %v5414 = vmin.f32 %v5158, 6.0
        %v5415 = vmin.f32 %v5159, 6.0
        %v5416 = vmin.f32 %v5160, 6.0
        %v5417 = vmin.f32 %v5161, 6.0
        %v5418 = vmin.f32 %v5162, 6.0
        %v5419 = vmin.f32 %v5163, 6.0
        %v5420 = vmin.f32 %v5164, 6.0
        %v5421 = vmin.f32 %v5165, 6.0
        %v5422 = vmin.f32 %v5166, 6.0
        %v5423 = vmin.f32 %v5167, 6.0
        %v5424 = vmin.f32 %v5168, 6.0
        %v5425 = vmin.f32 %v5169, 6.0
        %v5426 = vmin.f32 %v5170, 6.0
        %v5427 = vmin.f32 %v5171, 6.0
        %v5428 = vmin.f32 %v5172, 6.0
        %v5429 = vmin.f32 %v5173, 6.0
        %v5430 = vmin.f32 %v5174, 6.0
        %v5431 = vmin.f32 %v5175, 6.0
        %v5432 = vmin.f32 %v5176, 6.0
        %v5433 = vmin.f32 %v5177, 6.0
        %v5434 = vmin.f32 %v5178, 6.0
        %v5435 = vmin.f32 %v5179, 6.0
        %v5436 = vmin.f32 %v5180, 6.0
        %v5437 = vmin.f32 %v5181, 6.0
        %v5438 = vmin.f32 %v5182, 6.0
        %v5439 = vmin.f32 %v5183, 6.0
        %v5440 = vmin.f32 %v5184, 6.0
        %v5441 = vmin.f32 %v5185, 6.0
        %v5442 = vmin.f32 %v5186, 6.0
        %v5443 = vmin.f32 %v5187, 6.0
        %v5444 = vmin.f32 %v5188, 6.0
        %v5445 = vmin.f32 %v5189, 6.0
        %v5446 = vmin.f32 %v5190, 6.0
        %v5447 = vmin.f32 %v5191, 6.0
        %v5448 = vmin.f32 %v5192, 6.0
        %v5449 = vmin.f32 %v5193, 6.0
        %v5450 = vmin.f32 %v5194, 6.0
        %v5451 = vmin.f32 %v5195, 6.0
        %v5452 = vmin.f32 %v5196, 6.0
        %v5453 = vmin.f32 %v5197, 6.0
        %v5454 = vmin.f32 %v5198, 6.0
        %v5455 = vmin.f32 %v5199, 6.0
        %v5456 = vmin.f32 %v5200, 6.0
        %v5457 = vmin.f32 %v5201, 6.0
        %v5458 = vmin.f32 %v5202, 6.0
        %v5459 = vmin.f32 %v5203, 6.0
        %v5460 = vmin.f32 %v5204, 6.0
        %v5461 = vmin.f32 %v5205, 6.0
        %v5462 = vmin.f32 %v5206, 6.0
        %v5463 = vmin.f32 %v5207, 6.0
        %v5464 = vmin.f32 %v5208, 6.0
        %v5465 = vmin.f32 %v5209, 6.0
        %v5466 = vmin.f32 %v5210, 6.0
        %v5467 = vmin.f32 %v5211, 6.0
        %v5468 = vmin.f32 %v5212, 6.0
        %v5469 = vmin.f32 %v5213, 6.0
        %v5470 = vmin.f32 %v5214, 6.0
        %v5471 = vmin.f32 %v5215, 6.0
        %v5472 = vmin.f32 %v5216, 6.0
        %v5473 = vmin.f32 %v5217, 6.0
        %v5474 = vmin.f32 %v5218, 6.0
        %v5475 = vmin.f32 %v5219, 6.0
        %v5476 = vmin.f32 %v5220, 6.0
        %v5477 = vmin.f32 %v5221, 6.0
        %v5478 = vmin.f32 %v5222, 6.0
        %v5479 = vmin.f32 %v5223, 6.0
        %v5480 = vmin.f32 %v5224, 6.0
        %v5481 = vmin.f32 %v5225, 6.0
        %v5482 = vmin.f32 %v5226, 6.0
        %v5483 = vmin.f32 %v5227, 6.0
        %v5484 = vmin.f32 %v5228, 6.0
        %v5485 = vmin.f32 %v5229, 6.0
        %v5486 = vmin.f32 %v5230, 6.0
        %v5487 = vmin.f32 %v5231, 6.0
        %v5488 = vmin.f32 %v5232, 6.0
        %v5489 = vmin.f32 %v5233, 6.0
        %v5490 = vmin.f32 %v5234, 6.0
        %v5491 = vmin.f32 %v5235, 6.0
        %v5492 = vmin.f32 %v5236, 6.0
        %v5493 = vmin.f32 %v5237, 6.0
        %v5494 = vmin.f32 %v5238, 6.0
        %v5495 = vmin.f32 %v5239, 6.0
        %v5496 = vmin.f32 %v5240, 6.0
        %v5497 = vmin.f32 %v5241, 6.0
        %v5498 = vmin.f32 %v5242, 6.0
        %v5499 = vmin.f32 %v5243, 6.0
        %v5500 = vmin.f32 %v5244, 6.0
        %v5501 = vmin.f32 %v5245, 6.0
        %v5502 = vmin.f32 %v5246, 6.0
        %v5503 = vmin.f32 %v5247, 6.0
        %v5504 = vmin.f32 %v5248, 6.0
        %v5505 = vmin.f32 %v5249, 6.0
        %v5506 = vmin.f32 %v5250, 6.0
        %v5507 = vmin.f32 %v5251, 6.0
        %v5508 = vmin.f32 %v5252, 6.0
        %v5509 = vmin.f32 %v5253, 6.0
        %v5510 = vmin.f32 %v5254, 6.0
        %v5511 = vmin.f32 %v5255, 6.0
        %v5512 = vmin.f32 %v5256, 6.0
        %v5513 = vmin.f32 %v5257, 6.0
        %v5514 = vmul.f32 %v4009, %v5258
        %v5515 = vmul.f32 %v4011, %v5259
        %v5516 = vmul.f32 %v4202, %v5260
        %v5517 = vmul.f32 %v4204, %v5261
        %v5518 = vmul.f32 %v4395, %v5262
        %v5519 = vmul.f32 %v4397, %v5263
        %v5520 = vmul.f32 %v4588, %v5264
        %v5521 = vmul.f32 %v4590, %v5265
        %v5522 = vmul.f32 %v4013, %v5266
        %v5523 = vmul.f32 %v4015, %v5267
        %v5524 = vmul.f32 %v4206, %v5268
        %v5525 = vmul.f32 %v4208, %v5269
        %v5526 = vmul.f32 %v4399, %v5270
        %v5527 = vmul.f32 %v4401, %v5271
        %v5528 = vmul.f32 %v4592, %v5272
        %v5529 = vmul.f32 %v4594, %v5273
        %v5530 = vmul.f32 %v4019, %v5274
        %v5531 = vmul.f32 %v4021, %v5275
        %v5532 = vmul.f32 %v4212, %v5276
        %v5533 = vmul.f32 %v4214, %v5277
        %v5534 = vmul.f32 %v4405, %v5278
        %v5535 = vmul.f32 %v4407, %v5279
        %v5536 = vmul.f32 %v4598, %v5280
        %v5537 = vmul.f32 %v4600, %v5281
        %v5538 = vmul.f32 %v4023, %v5282
        %v5539 = vmul.f32 %v4025, %v5283
        %v5540 = vmul.f32 %v4216, %v5284
        %v5541 = vmul.f32 %v4218, %v5285
        %v5542 = vmul.f32 %v4409, %v5286
        %v5543 = vmul.f32 %v4411, %v5287
        %v5544 = vmul.f32 %v4602, %v5288
        %v5545 = vmul.f32 %v4604, %v5289
        %v5546 = vmul.f32 %v4029, %v5290
        %v5547 = vmul.f32 %v4031, %v5291
        %v5548 = vmul.f32 %v4222, %v5292
        %v5549 = vmul.f32 %v4224, %v5293
        %v5550 = vmul.f32 %v4415, %v5294
        %v5551 = vmul.f32 %v4417, %v5295
        %v5552 = vmul.f32 %v4608, %v5296
        %v5553 = vmul.f32 %v4610, %v5297
        %v5554 = vmul.f32 %v4033, %v5298
        %v5555 = vmul.f32 %v4035, %v5299
        %v5556 = vmul.f32 %v4226, %v5300
        %v5557 = vmul.f32 %v4228, %v5301
        %v5558 = vmul.f32 %v4419, %v5302
        %v5559 = vmul.f32 %v4421, %v5303
        %v5560 = vmul.f32 %v4612, %v5304
        %v5561 = vmul.f32 %v4614, %v5305
        %v5562 = vmul.f32 %v4039, %v5306
        %v5563 = vmul.f32 %v4041, %v5307
        %v5564 = vmul.f32 %v4232, %v5308
        %v5565 = vmul.f32 %v4234, %v5309
        %v5566 = vmul.f32 %v4425, %v5310
        %v5567 = vmul.f32 %v4427, %v5311
        %v5568 = vmul.f32 %v4618, %v5312
        %v5569 = vmul.f32 %v4620, %v5313
        %v5570 = vmul.f32 %v4043, %v5314
        %v5571 = vmul.f32 %v4045, %v5315
        %v5572 = vmul.f32 %v4236, %v5316
        %v5573 = vmul.f32 %v4238, %v5317
        %v5574 = vmul.f32 %v4429, %v5318
        %v5575 = vmul.f32 %v4431, %v5319
        %v5576 = vmul.f32 %v4622, %v5320
        %v5577 = vmul.f32 %v4624, %v5321
        %v5578 = vmul.f32 %v4049, %v5322
        %v5579 = vmul.f32 %v4051, %v5323
        %v5580 = vmul.f32 %v4242, %v5324
        %v5581 = vmul.f32 %v4244, %v5325
        %v5582 = vmul.f32 %v4435, %v5326
        %v5583 = vmul.f32 %v4437, %v5327
        %v5584 = vmul.f32 %v4628, %v5328
        %v5585 = vmul.f32 %v4630, %v5329
        %v5586 = vmul.f32 %v4053, %v5330
        %v5587 = vmul.f32 %v4055, %v5331
        %v5588 = vmul.f32 %v4246, %v5332
        %v5589 = vmul.f32 %v4248, %v5333
        %v5590 = vmul.f32 %v4439, %v5334
        %v5591 = vmul.f32 %v4441, %v5335
        %v5592 = vmul.f32 %v4632, %v5336
        %v5593 = vmul.f32 %v4634, %v5337
        %v5594 = vmul.f32 %v4059, %v5338
        %v5595 = vmul.f32 %v4061, %v5339
        %v5596 = vmul.f32 %v4252, %v5340
        %v5597 = vmul.f32 %v4254, %v5341
        %v5598 = vmul.f32 %v4445, %v5342
        %v5599 = vmul.f32 %v4447, %v5343
        %v5600 = vmul.f32 %v4638, %v5344
        %v5601 = vmul.f32 %v4640, %v5345
        %v5602 = vmul.f32 %v4063, %v5346
        %v5603 = vmul.f32 %v4065, %v5347
        %v5604 = vmul.f32 %v4256, %v5348
        %v5605 = vmul.f32 %v4258, %v5349
        %v5606 = vmul.f32 %v4449, %v5350
        %v5607 = vmul.f32 %v4451, %v5351
        %v5608 = vmul.f32 %v4642, %v5352
        %v5609 = vmul.f32 %v4644, %v5353
        %v5610 = vmul.f32 %v4069, %v5354
        %v5611 = vmul.f32 %v4071, %v5355
        %v5612 = vmul.f32 %v4262, %v5356
        %v5613 = vmul.f32 %v4264, %v5357
        %v5614 = vmul.f32 %v4455, %v5358
        %v5615 = vmul.f32 %v4457, %v5359
        %v5616 = vmul.f32 %v4648, %v5360
        %v5617 = vmul.f32 %v4650, %v5361
        %v5618 = vmul.f32 %v4073, %v5362
        %v5619 = vmul.f32 %v4075, %v5363
        %v5620 = vmul.f32 %v4266, %v5364
        %v5621 = vmul.f32 %v4268, %v5365
        %v5622 = vmul.f32 %v4459, %v5366
        %v5623 = vmul.f32 %v4461, %v5367
        %v5624 = vmul.f32 %v4652, %v5368
        %v5625 = vmul.f32 %v4654, %v5369
        %v5626 = vmul.f32 %v4079, %v5370
        %v5627 = vmul.f32 %v4081, %v5371
        %v5628 = vmul.f32 %v4272, %v5372
        %v5629 = vmul.f32 %v4274, %v5373
        %v5630 = vmul.f32 %v4465, %v5374
        %v5631 = vmul.f32 %v4467, %v5375
        %v5632 = vmul.f32 %v4658, %v5376
        %v5633 = vmul.f32 %v4660, %v5377
        %v5634 = vmul.f32 %v4083, %v5378
        %v5635 = vmul.f32 %v4085, %v5379
        %v5636 = vmul.f32 %v4276, %v5380
        %v5637 = vmul.f32 %v4278, %v5381
        %v5638 = vmul.f32 %v4469, %v5382
        %v5639 = vmul.f32 %v4471, %v5383
        %v5640 = vmul.f32 %v4662, %v5384
        %v5641 = vmul.f32 %v4664, %v5385
        %v5642 = vmul.f32 %v4089, %v5386
        %v5643 = vmul.f32 %v4091, %v5387
        %v5644 = vmul.f32 %v4282, %v5388
        %v5645 = vmul.f32 %v4284, %v5389
        %v5646 = vmul.f32 %v4475, %v5390
        %v5647 = vmul.f32 %v4477, %v5391
        %v5648 = vmul.f32 %v4668, %v5392
        %v5649 = vmul.f32 %v4670, %v5393
        %v5650 = vmul.f32 %v4093, %v5394
        %v5651 = vmul.f32 %v4095, %v5395
        %v5652 = vmul.f32 %v4286, %v5396
        %v5653 = vmul.f32 %v4288, %v5397
        %v5654 = vmul.f32 %v4479, %v5398
        %v5655 = vmul.f32 %v4481, %v5399
        %v5656 = vmul.f32 %v4672, %v5400
        %v5657 = vmul.f32 %v4674, %v5401
        %v5658 = vmul.f32 %v4099, %v5402
        %v5659 = vmul.f32 %v4101, %v5403
        %v5660 = vmul.f32 %v4292, %v5404
        %v5661 = vmul.f32 %v4294, %v5405
        %v5662 = vmul.f32 %v4485, %v5406
        %v5663 = vmul.f32 %v4487, %v5407
        %v5664 = vmul.f32 %v4678, %v5408
        %v5665 = vmul.f32 %v4680, %v5409
        %v5666 = vmul.f32 %v4103, %v5410
        %v5667 = vmul.f32 %v4105, %v5411
        %v5668 = vmul.f32 %v4296, %v5412
        %v5669 = vmul.f32 %v4298, %v5413
        %v5670 = vmul.f32 %v4489, %v5414
        %v5671 = vmul.f32 %v4491, %v5415
        %v5672 = vmul.f32 %v4682, %v5416
        %v5673 = vmul.f32 %v4684, %v5417
        %v5674 = vmul.f32 %v4109, %v5418
        %v5675 = vmul.f32 %v4111, %v5419
        %v5676 = vmul.f32 %v4302, %v5420
        %v5677 = vmul.f32 %v4304, %v5421
        %v5678 = vmul.f32 %v4495, %v5422
        %v5679 = vmul.f32 %v4497, %v5423
        %v5680 = vmul.f32 %v4688, %v5424
        %v5681 = vmul.f32 %v4690, %v5425
        %v5682 = vmul.f32 %v4113, %v5426
        %v5683 = vmul.f32 %v4115, %v5427
        %v5684 = vmul.f32 %v4306, %v5428
        %v5685 = vmul.f32 %v4308, %v5429
        %v5686 = vmul.f32 %v4499, %v5430
        %v5687 = vmul.f32 %v4501, %v5431
        %v5688 = vmul.f32 %v4692, %v5432
        %v5689 = vmul.f32 %v4694, %v5433
        %v5690 = vmul.f32 %v4119, %v5434
        %v5691 = vmul.f32 %v4121, %v5435
        %v5692 = vmul.f32 %v4312, %v5436
        %v5693 = vmul.f32 %v4314, %v5437
        %v5694 = vmul.f32 %v4505, %v5438
        %v5695 = vmul.f32 %v4507, %v5439
        %v5696 = vmul.f32 %v4698, %v5440
        %v5697 = vmul.f32 %v4700, %v5441
        %v5698 = vmul.f32 %v4123, %v5442
        %v5699 = vmul.f32 %v4125, %v5443
        %v5700 = vmul.f32 %v4316, %v5444
        %v5701 = vmul.f32 %v4318, %v5445
        %v5702 = vmul.f32 %v4509, %v5446
        %v5703 = vmul.f32 %v4511, %v5447
        %v5704 = vmul.f32 %v4702, %v5448
        %v5705 = vmul.f32 %v4704, %v5449
        %v5706 = vmul.f32 %v4129, %v5450
        %v5707 = vmul.f32 %v4131, %v5451
        %v5708 = vmul.f32 %v4322, %v5452
        %v5709 = vmul.f32 %v4324, %v5453
        %v5710 = vmul.f32 %v4515, %v5454
        %v5711 = vmul.f32 %v4517, %v5455
        %v5712 = vmul.f32 %v4708, %v5456
        %v5713 = vmul.f32 %v4710, %v5457
        %v5714 = vmul.f32 %v4133, %v5458
        %v5715 = vmul.f32 %v4135, %v5459
        %v5716 = vmul.f32 %v4326, %v5460
        %v5717 = vmul.f32 %v4328, %v5461
        %v5718 = vmul.f32 %v4519, %v5462
        %v5719 = vmul.f32 %v4521, %v5463
        %v5720 = vmul.f32 %v4712, %v5464
        %v5721 = vmul.f32 %v4714, %v5465
        %v5722 = vmul.f32 %v4139, %v5466
        %v5723 = vmul.f32 %v4141, %v5467
        %v5724 = vmul.f32 %v4332, %v5468
        %v5725 = vmul.f32 %v4334, %v5469
        %v5726 = vmul.f32 %v4525, %v5470
        %v5727 = vmul.f32 %v4527, %v5471
        %v5728 = vmul.f32 %v4718, %v5472
        %v5729 = vmul.f32 %v4720, %v5473
        %v5730 = vmul.f32 %v4143, %v5474
        %v5731 = vmul.f32 %v4145, %v5475
        %v5732 = vmul.f32 %v4336, %v5476
        %v5733 = vmul.f32 %v4338, %v5477
        %v5734 = vmul.f32 %v4529, %v5478
        %v5735 = vmul.f32 %v4531, %v5479
        %v5736 = vmul.f32 %v4722, %v5480
        %v5737 = vmul.f32 %v4724, %v5481
        %v5738 = vmul.f32 %v4149, %v5482
        %v5739 = vmul.f32 %v4151, %v5483
        %v5740 = vmul.f32 %v4342, %v5484
        %v5741 = vmul.f32 %v4344, %v5485
        %v5742 = vmul.f32 %v4535, %v5486
        %v5743 = vmul.f32 %v4537, %v5487
        %v5744 = vmul.f32 %v4728, %v5488
        %v5745 = vmul.f32 %v4730, %v5489
        %v5746 = vmul.f32 %v4153, %v5490
        %v5747 = vmul.f32 %v4155, %v5491
        %v5748 = vmul.f32 %v4346, %v5492
        %v5749 = vmul.f32 %v4348, %v5493
        %v5750 = vmul.f32 %v4539, %v5494
        %v5751 = vmul.f32 %v4541, %v5495
        %v5752 = vmul.f32 %v4732, %v5496
        %v5753 = vmul.f32 %v4734, %v5497
        %v5754 = vmul.f32 %v4159, %v5498
        %v5755 = vmul.f32 %v4161, %v5499
        %v5756 = vmul.f32 %v4352, %v5500
        %v5757 = vmul.f32 %v4354, %v5501
        %v5758 = vmul.f32 %v4545, %v5502
        %v5759 = vmul.f32 %v4547, %v5503
        %v5760 = vmul.f32 %v4738, %v5504
        %v5761 = vmul.f32 %v4740, %v5505
        %v5762 = vmul.f32 %v4163, %v5506
        %v5763 = vmul.f32 %v4165, %v5507
        %v5764 = vmul.f32 %v4356, %v5508
        %v5765 = vmul.f32 %v4358, %v5509
        %v5766 = vmul.f32 %v4549, %v5510
        %v5767 = vmul.f32 %v4551, %v5511
        %v5768 = vmul.f32 %v4742, %v5512
        %v5769 = vmul.f32 %v4744, %v5513
        %v5770 = vmul.f32 %v5514, 0.16666667
        %v5771 = vmul.f32 %v5515, 0.16666667
        %v5772 = vmul.f32 %v5516, 0.16666667
        %v5773 = vmul.f32 %v5517, 0.16666667
        %v5774 = vmul.f32 %v5518, 0.16666667
        %v5775 = vmul.f32 %v5519, 0.16666667
        %v5776 = vmul.f32 %v5520, 0.16666667
        %v5777 = vmul.f32 %v5521, 0.16666667
        %v5778 = vmul.f32 %v5522, 0.16666667
        %v5779 = vmul.f32 %v5523, 0.16666667
        %v5780 = vmul.f32 %v5524, 0.16666667
        %v5781 = vmul.f32 %v5525, 0.16666667
        %v5782 = vmul.f32 %v5526, 0.16666667
        %v5783 = vmul.f32 %v5527, 0.16666667
        %v5784 = vmul.f32 %v5528, 0.16666667
        %v5785 = vmul.f32 %v5529, 0.16666667
        %v5786 = vmul.f32 %v5530, 0.16666667
        %v5787 = vmul.f32 %v5531, 0.16666667
        %v5788 = vmul.f32 %v5532, 0.16666667
        %v5789 = vmul.f32 %v5533, 0.16666667
        %v5790 = vmul.f32 %v5534, 0.16666667
        %v5791 = vmul.f32 %v5535, 0.16666667
        %v5792 = vmul.f32 %v5536, 0.16666667
        %v5793 = vmul.f32 %v5537, 0.16666667
        %v5794 = vmul.f32 %v5538, 0.16666667
        %v5795 = vmul.f32 %v5539, 0.16666667
        %v5796 = vmul.f32 %v5540, 0.16666667
        %v5797 = vmul.f32 %v5541, 0.16666667
        %v5798 = vmul.f32 %v5542, 0.16666667
        %v5799 = vmul.f32 %v5543, 0.16666667
        %v5800 = vmul.f32 %v5544, 0.16666667
        %v5801 = vmul.f32 %v5545, 0.16666667
        %v5802 = vmul.f32 %v5546, 0.16666667
        %v5803 = vmul.f32 %v5547, 0.16666667
        %v5804 = vmul.f32 %v5548, 0.16666667
        %v5805 = vmul.f32 %v5549, 0.16666667
        %v5806 = vmul.f32 %v5550, 0.16666667
        %v5807 = vmul.f32 %v5551, 0.16666667
        %v5808 = vmul.f32 %v5552, 0.16666667
        %v5809 = vmul.f32 %v5553, 0.16666667
        %v5810 = vmul.f32 %v5554, 0.16666667
        %v5811 = vmul.f32 %v5555, 0.16666667
        %v5812 = vmul.f32 %v5556, 0.16666667
        %v5813 = vmul.f32 %v5557, 0.16666667
        %v5814 = vmul.f32 %v5558, 0.16666667
        %v5815 = vmul.f32 %v5559, 0.16666667
        %v5816 = vmul.f32 %v5560, 0.16666667
        %v5817 = vmul.f32 %v5561, 0.16666667
        %v5818 = vmul.f32 %v5562, 0.16666667
        %v5819 = vmul.f32 %v5563, 0.16666667
        %v5820 = vmul.f32 %v5564, 0.16666667
        %v5821 = vmul.f32 %v5565, 0.16666667
        %v5822 = vmul.f32 %v5566, 0.16666667
        %v5823 = vmul.f32 %v5567, 0.16666667
        %v5824 = vmul.f32 %v5568, 0.16666667
        %v5825 = vmul.f32 %v5569, 0.16666667
        %v5826 = vmul.f32 %v5570, 0.16666667
        %v5827 = vmul.f32 %v5571, 0.16666667
        %v5828 = vmul.f32 %v5572, 0.16666667
        %v5829 = vmul.f32 %v5573, 0.16666667
        %v5830 = vmul.f32 %v5574, 0.16666667
        %v5831 = vmul.f32 %v5575, 0.16666667
        %v5832 = vmul.f32 %v5576, 0.16666667
        %v5833 = vmul.f32 %v5577, 0.16666667
        %v5834 = vmul.f32 %v5578, 0.16666667
        %v5835 = vmul.f32 %v5579, 0.16666667
        %v5836 = vmul.f32 %v5580, 0.16666667
        %v5837 = vmul.f32 %v5581, 0.16666667
        %v5838 = vmul.f32 %v5582, 0.16666667
        %v5839 = vmul.f32 %v5583, 0.16666667
        %v5840 = vmul.f32 %v5584, 0.16666667
        %v5841 = vmul.f32 %v5585, 0.16666667
        %v5842 = vmul.f32 %v5586, 0.16666667
        %v5843 = vmul.f32 %v5587, 0.16666667
        %v5844 = vmul.f32 %v5588, 0.16666667
        %v5845 = vmul.f32 %v5589, 0.16666667
        %v5846 = vmul.f32 %v5590, 0.16666667
        %v5847 = vmul.f32 %v5591, 0.16666667
        %v5848 = vmul.f32 %v5592, 0.16666667
        %v5849 = vmul.f32 %v5593, 0.16666667
        %v5850 = vmul.f32 %v5594, 0.16666667
        %v5851 = vmul.f32 %v5595, 0.16666667
        %v5852 = vmul.f32 %v5596, 0.16666667
        %v5853 = vmul.f32 %v5597, 0.16666667
        %v5854 = vmul.f32 %v5598, 0.16666667
        %v5855 = vmul.f32 %v5599, 0.16666667
        %v5856 = vmul.f32 %v5600, 0.16666667
        %v5857 = vmul.f32 %v5601, 0.16666667
        %v5858 = vmul.f32 %v5602, 0.16666667
        %v5859 = vmul.f32 %v5603, 0.16666667
        %v5860 = vmul.f32 %v5604, 0.16666667
        %v5861 = vmul.f32 %v5605, 0.16666667
        %v5862 = vmul.f32 %v5606, 0.16666667
        %v5863 = vmul.f32 %v5607, 0.16666667
        %v5864 = vmul.f32 %v5608, 0.16666667
        %v5865 = vmul.f32 %v5609, 0.16666667
        %v5866 = vmul.f32 %v5610, 0.16666667
        %v5867 = vmul.f32 %v5611, 0.16666667
        %v5868 = vmul.f32 %v5612, 0.16666667
        %v5869 = vmul.f32 %v5613, 0.16666667
        %v5870 = vmul.f32 %v5614, 0.16666667
        %v5871 = vmul.f32 %v5615, 0.16666667
        %v5872 = vmul.f32 %v5616, 0.16666667
        %v5873 = vmul.f32 %v5617, 0.16666667
        %v5874 = vmul.f32 %v5618, 0.16666667
        %v5875 = vmul.f32 %v5619, 0.16666667
        %v5876 = vmul.f32 %v5620, 0.16666667
        %v5877 = vmul.f32 %v5621, 0.16666667
        %v5878 = vmul.f32 %v5622, 0.16666667
        %v5879 = vmul.f32 %v5623, 0.16666667
        %v5880 = vmul.f32 %v5624, 0.16666667
        %v5881 = vmul.f32 %v5625, 0.16666667
        %v5882 = vmul.f32 %v5626, 0.16666667
        %v5883 = vmul.f32 %v5627, 0.16666667
        %v5884 = vmul.f32 %v5628, 0.16666667
        %v5885 = vmul.f32 %v5629, 0.16666667
        %v5886 = vmul.f32 %v5630, 0.16666667
        %v5887 = vmul.f32 %v5631, 0.16666667
        %v5888 = vmul.f32 %v5632, 0.16666667
        %v5889 = vmul.f32 %v5633, 0.16666667
        %v5890 = vmul.f32 %v5634, 0.16666667
        %v5891 = vmul.f32 %v5635, 0.16666667
        %v5892 = vmul.f32 %v5636, 0.16666667
        %v5893 = vmul.f32 %v5637, 0.16666667
        %v5894 = vmul.f32 %v5638, 0.16666667
        %v5895 = vmul.f32 %v5639, 0.16666667
        %v5896 = vmul.f32 %v5640, 0.16666667
        %v5897 = vmul.f32 %v5641, 0.16666667
        %v5898 = vmul.f32 %v5642, 0.16666667
        %v5899 = vmul.f32 %v5643, 0.16666667
        %v5900 = vmul.f32 %v5644, 0.16666667
        %v5901 = vmul.f32 %v5645, 0.16666667
        %v5902 = vmul.f32 %v5646, 0.16666667
        %v5903 = vmul.f32 %v5647, 0.16666667
        %v5904 = vmul.f32 %v5648, 0.16666667
        %v5905 = vmul.f32 %v5649, 0.16666667
        %v5906 = vmul.f32 %v5650, 0.16666667
        %v5907 = vmul.f32 %v5651, 0.16666667
        %v5908 = vmul.f32 %v5652, 0.16666667
        %v5909 = vmul.f32 %v5653, 0.16666667
        %v5910 = vmul.f32 %v5654, 0.16666667
        %v5911 = vmul.f32 %v5655, 0.16666667
        %v5912 = vmul.f32 %v5656, 0.16666667
        %v5913 = vmul.f32 %v5657, 0.16666667
        %v5914 = vmul.f32 %v5658, 0.16666667
        %v5915 = vmul.f32 %v5659, 0.16666667
        %v5916 = vmul.f32 %v5660, 0.16666667
        %v5917 = vmul.f32 %v5661, 0.16666667
        %v5918 = vmul.f32 %v5662, 0.16666667
        %v5919 = vmul.f32 %v5663, 0.16666667
        %v5920 = vmul.f32 %v5664, 0.16666667
        %v5921 = vmul.f32 %v5665, 0.16666667
        %v5922 = vmul.f32 %v5666, 0.16666667
        %v5923 = vmul.f32 %v5667, 0.16666667
        %v5924 = vmul.f32 %v5668, 0.16666667
        %v5925 = vmul.f32 %v5669, 0.16666667
        %v5926 = vmul.f32 %v5670, 0.16666667
        %v5927 = vmul.f32 %v5671, 0.16666667
        %v5928 = vmul.f32 %v5672, 0.16666667
        %v5929 = vmul.f32 %v5673, 0.16666667
        %v5930 = vmul.f32 %v5674, 0.16666667
        %v5931 = vmul.f32 %v5675, 0.16666667
        %v5932 = vmul.f32 %v5676, 0.16666667
        %v5933 = vmul.f32 %v5677, 0.16666667
        %v5934 = vmul.f32 %v5678, 0.16666667
        %v5935 = vmul.f32 %v5679, 0.16666667
        %v5936 = vmul.f32 %v5680, 0.16666667
        %v5937 = vmul.f32 %v5681, 0.16666667
        %v5938 = vmul.f32 %v5682, 0.16666667
        %v5939 = vmul.f32 %v5683, 0.16666667
        %v5940 = vmul.f32 %v5684, 0.16666667
        %v5941 = vmul.f32 %v5685, 0.16666667
        %v5942 = vmul.f32 %v5686, 0.16666667
        %v5943 = vmul.f32 %v5687, 0.16666667
        %v5944 = vmul.f32 %v5688, 0.16666667
        %v5945 = vmul.f32 %v5689, 0.16666667
        %v5946 = vmul.f32 %v5690, 0.16666667
        %v5947 = vmul.f32 %v5691, 0.16666667
        %v5948 = vmul.f32 %v5692, 0.16666667
        %v5949 = vmul.f32 %v5693, 0.16666667
        %v5950 = vmul.f32 %v5694, 0.16666667
        %v5951 = vmul.f32 %v5695, 0.16666667
        %v5952 = vmul.f32 %v5696, 0.16666667
        %v5953 = vmul.f32 %v5697, 0.16666667
        %v5954 = vmul.f32 %v5698, 0.16666667
        %v5955 = vmul.f32 %v5699, 0.16666667
        %v5956 = vmul.f32 %v5700, 0.16666667
        %v5957 = vmul.f32 %v5701, 0.16666667
        %v5958 = vmul.f32 %v5702, 0.16666667
        %v5959 = vmul.f32 %v5703, 0.16666667
        %v5960 = vmul.f32 %v5704, 0.16666667
        %v5961 = vmul.f32 %v5705, 0.16666667
        %v5962 = vmul.f32 %v5706, 0.16666667
        %v5963 = vmul.f32 %v5707, 0.16666667
        %v5964 = vmul.f32 %v5708, 0.16666667
        %v5965 = vmul.f32 %v5709, 0.16666667
        %v5966 = vmul.f32 %v5710, 0.16666667
        %v5967 = vmul.f32 %v5711, 0.16666667
        %v5968 = vmul.f32 %v5712, 0.16666667
        %v5969 = vmul.f32 %v5713, 0.16666667
        %v5970 = vmul.f32 %v5714, 0.16666667
        %v5971 = vmul.f32 %v5715, 0.16666667
        %v5972 = vmul.f32 %v5716, 0.16666667
        %v5973 = vmul.f32 %v5717, 0.16666667
        %v5974 = vmul.f32 %v5718, 0.16666667
        %v5975 = vmul.f32 %v5719, 0.16666667
        %v5976 = vmul.f32 %v5720, 0.16666667
        %v5977 = vmul.f32 %v5721, 0.16666667
        %v5978 = vmul.f32 %v5722, 0.16666667
        %v5979 = vmul.f32 %v5723, 0.16666667
        %v5980 = vmul.f32 %v5724, 0.16666667
        %v5981 = vmul.f32 %v5725, 0.16666667
        %v5982 = vmul.f32 %v5726, 0.16666667
        %v5983 = vmul.f32 %v5727, 0.16666667
        %v5984 = vmul.f32 %v5728, 0.16666667
        %v5985 = vmul.f32 %v5729, 0.16666667
        %v5986 = vmul.f32 %v5730, 0.16666667
        %v5987 = vmul.f32 %v5731, 0.16666667
        %v5988 = vmul.f32 %v5732, 0.16666667
        %v5989 = vmul.f32 %v5733, 0.16666667
        %v5990 = vmul.f32 %v5734, 0.16666667
        %v5991 = vmul.f32 %v5735, 0.16666667
        %v5992 = vmul.f32 %v5736, 0.16666667
        %v5993 = vmul.f32 %v5737, 0.16666667
        %v5994 = vmul.f32 %v5738, 0.16666667
        %v5995 = vmul.f32 %v5739, 0.16666667
        %v5996 = vmul.f32 %v5740, 0.16666667
        %v5997 = vmul.f32 %v5741, 0.16666667
        %v5998 = vmul.f32 %v5742, 0.16666667
        %v5999 = vmul.f32 %v5743, 0.16666667
        %v6000 = vmul.f32 %v5744, 0.16666667
        %v6001 = vmul.f32 %v5745, 0.16666667
        %v6002 = vmul.f32 %v5746, 0.16666667
        %v6003 = vmul.f32 %v5747, 0.16666667
        %v6004 = vmul.f32 %v5748, 0.16666667
        %v6005 = vmul.f32 %v5749, 0.16666667
        %v6006 = vmul.f32 %v5750, 0.16666667
        %v6007 = vmul.f32 %v5751, 0.16666667
        %v6008 = vmul.f32 %v5752, 0.16666667
        %v6009 = vmul.f32 %v5753, 0.16666667
        %v6010 = vmul.f32 %v5754, 0.16666667
        %v6011 = vmul.f32 %v5755, 0.16666667
        %v6012 = vmul.f32 %v5756, 0.16666667
        %v6013 = vmul.f32 %v5757, 0.16666667
        %v6014 = vmul.f32 %v5758, 0.16666667
        %v6015 = vmul.f32 %v5759, 0.16666667
        %v6016 = vmul.f32 %v5760, 0.16666667
        %v6017 = vmul.f32 %v5761, 0.16666667
        %v6018 = vmul.f32 %v5762, 0.16666667
        %v6019 = vmul.f32 %v5763, 0.16666667
        %v6020 = vmul.f32 %v5764, 0.16666667
        %v6021 = vmul.f32 %v5765, 0.16666667
        %v6022 = vmul.f32 %v5766, 0.16666667
        %v6023 = vmul.f32 %v5767, 0.16666667
        %v6024 = vmul.f32 %v5768, 0.16666667
        %v6025 = vmul.f32 %v5769, 0.16666667
        %v6026 = vadd.f32 %v5770, %v5778
        %v6027 = vadd.f32 %v6026, %v5786
        %v6028 = vadd.f32 %v6027, %v5794
        %v6029 = vadd.f32 %v6028, %v5802
        %v6030 = vadd.f32 %v6029, %v5810
        %v6031 = vadd.f32 %v6030, %v5818
        %v6032 = vadd.f32 %v6031, %v5826
        %v6033 = vadd.f32 %v6032, %v5834
        %v6034 = vadd.f32 %v6033, %v5842
        %v6035 = vadd.f32 %v6034, %v5850
        %v6036 = vadd.f32 %v6035, %v5858
        %v6037 = vadd.f32 %v6036, %v5866
        %v6038 = vadd.f32 %v6037, %v5874
        %v6039 = vadd.f32 %v6038, %v5882
        %v6040 = vadd.f32 %v6039, %v5890
        %v6041 = vadd.f32 %v6040, %v5898
        %v6042 = vadd.f32 %v6041, %v5906
        %v6043 = vadd.f32 %v6042, %v5914
        %v6044 = vadd.f32 %v6043, %v5922
        %v6045 = vadd.f32 %v6044, %v5930
        %v6046 = vadd.f32 %v6045, %v5938
        %v6047 = vadd.f32 %v6046, %v5946
        %v6048 = vadd.f32 %v6047, %v5954
        %v6049 = vadd.f32 %v6048, %v5962
        %v6050 = vadd.f32 %v6049, %v5970
        %v6051 = vadd.f32 %v6050, %v5978
        %v6052 = vadd.f32 %v6051, %v5986
        %v6053 = vadd.f32 %v6052, %v5994
        %v6054 = vadd.f32 %v6053, %v6002
        %v6055 = vadd.f32 %v6054, %v6010
        %v6056 = vadd.f32 %v6055, %v6018
        %v6057 = vrot.slane %v6056, 4
        %v6058 = vadd.f32 %v6056, %v6057
        %v6059 = vrot.slane %v6058, 2
        %v6060 = vadd.f32 %v6058, %v6059
        %v6061 = vrot.slane %v6060, 1
        %v6062 = vadd.f32 %v6060, %v6061
        %v6063 = vadd.f32 %v5771, %v5779
        %v6064 = vadd.f32 %v6063, %v5787
        %v6065 = vadd.f32 %v6064, %v5795
        %v6066 = vadd.f32 %v6065, %v5803
        %v6067 = vadd.f32 %v6066, %v5811
        %v6068 = vadd.f32 %v6067, %v5819
        %v6069 = vadd.f32 %v6068, %v5827
        %v6070 = vadd.f32 %v6069, %v5835
        %v6071 = vadd.f32 %v6070, %v5843
        %v6072 = vadd.f32 %v6071, %v5851
        %v6073 = vadd.f32 %v6072, %v5859
        %v6074 = vadd.f32 %v6073, %v5867
        %v6075 = vadd.f32 %v6074, %v5875
        %v6076 = vadd.f32 %v6075, %v5883
        %v6077 = vadd.f32 %v6076, %v5891
        %v6078 = vadd.f32 %v6077, %v5899
        %v6079 = vadd.f32 %v6078, %v5907
        %v6080 = vadd.f32 %v6079, %v5915
        %v6081 = vadd.f32 %v6080, %v5923
        %v6082 = vadd.f32 %v6081, %v5931
        %v6083 = vadd.f32 %v6082, %v5939
        %v6084 = vadd.f32 %v6083, %v5947
        %v6085 = vadd.f32 %v6084, %v5955
        %v6086 = vadd.f32 %v6085, %v5963
        %v6087 = vadd.f32 %v6086, %v5971
        %v6088 = vadd.f32 %v6087, %v5979
        %v6089 = vadd.f32 %v6088, %v5987
        %v6090 = vadd.f32 %v6089, %v5995
        %v6091 = vadd.f32 %v6090, %v6003
        %v6092 = vadd.f32 %v6091, %v6011
        %v6093 = vadd.f32 %v6092, %v6019
        %v6094 = vrot.slane %v6093, 4
        %v6095 = vadd.f32 %v6093, %v6094
        %v6096 = vrot.slane %v6095, 2
        %v6097 = vadd.f32 %v6095, %v6096
        %v6098 = vrot.slane %v6097, 1
        %v6099 = vadd.f32 %v6097, %v6098
        %v6100 = vadd.f32 %v5772, %v5780
        %v6101 = vadd.f32 %v6100, %v5788
        %v6102 = vadd.f32 %v6101, %v5796
        %v6103 = vadd.f32 %v6102, %v5804
        %v6104 = vadd.f32 %v6103, %v5812
        %v6105 = vadd.f32 %v6104, %v5820
        %v6106 = vadd.f32 %v6105, %v5828
        %v6107 = vadd.f32 %v6106, %v5836
        %v6108 = vadd.f32 %v6107, %v5844
        %v6109 = vadd.f32 %v6108, %v5852
        %v6110 = vadd.f32 %v6109, %v5860
        %v6111 = vadd.f32 %v6110, %v5868
        %v6112 = vadd.f32 %v6111, %v5876
        %v6113 = vadd.f32 %v6112, %v5884
        %v6114 = vadd.f32 %v6113, %v5892
        %v6115 = vadd.f32 %v6114, %v5900
        %v6116 = vadd.f32 %v6115, %v5908
        %v6117 = vadd.f32 %v6116, %v5916
        %v6118 = vadd.f32 %v6117, %v5924
        %v6119 = vadd.f32 %v6118, %v5932
        %v6120 = vadd.f32 %v6119, %v5940
        %v6121 = vadd.f32 %v6120, %v5948
        %v6122 = vadd.f32 %v6121, %v5956
        %v6123 = vadd.f32 %v6122, %v5964
        %v6124 = vadd.f32 %v6123, %v5972
        %v6125 = vadd.f32 %v6124, %v5980
        %v6126 = vadd.f32 %v6125, %v5988
        %v6127 = vadd.f32 %v6126, %v5996
        %v6128 = vadd.f32 %v6127, %v6004
        %v6129 = vadd.f32 %v6128, %v6012
        %v6130 = vadd.f32 %v6129, %v6020
        %v6131 = vrot.slane %v6130, 4
        %v6132 = vadd.f32 %v6130, %v6131
        %v6133 = vrot.slane %v6132, 2
        %v6134 = vadd.f32 %v6132, %v6133
        %v6135 = vrot.slane %v6134, 1
        %v6136 = vadd.f32 %v6134, %v6135
        %v6137 = vadd.f32 %v5773, %v5781
        %v6138 = vadd.f32 %v6137, %v5789
        %v6139 = vadd.f32 %v6138, %v5797
        %v6140 = vadd.f32 %v6139, %v5805
        %v6141 = vadd.f32 %v6140, %v5813
        %v6142 = vadd.f32 %v6141, %v5821
        %v6143 = vadd.f32 %v6142, %v5829
        %v6144 = vadd.f32 %v6143, %v5837
        %v6145 = vadd.f32 %v6144, %v5845
        %v6146 = vadd.f32 %v6145, %v5853
        %v6147 = vadd.f32 %v6146, %v5861
        %v6148 = vadd.f32 %v6147, %v5869
        %v6149 = vadd.f32 %v6148, %v5877
        %v6150 = vadd.f32 %v6149, %v5885
        %v6151 = vadd.f32 %v6150, %v5893
        %v6152 = vadd.f32 %v6151, %v5901
        %v6153 = vadd.f32 %v6152, %v5909
        %v6154 = vadd.f32 %v6153, %v5917
        %v6155 = vadd.f32 %v6154, %v5925
        %v6156 = vadd.f32 %v6155, %v5933
        %v6157 = vadd.f32 %v6156, %v5941
        %v6158 = vadd.f32 %v6157, %v5949
        %v6159 = vadd.f32 %v6158, %v5957
        %v6160 = vadd.f32 %v6159, %v5965
        %v6161 = vadd.f32 %v6160, %v5973
        %v6162 = vadd.f32 %v6161, %v5981
        %v6163 = vadd.f32 %v6162, %v5989
        %v6164 = vadd.f32 %v6163, %v5997
        %v6165 = vadd.f32 %v6164, %v6005
        %v6166 = vadd.f32 %v6165, %v6013
        %v6167 = vadd.f32 %v6166, %v6021
        %v6168 = vrot.slane %v6167, 4
        %v6169 = vadd.f32 %v6167, %v6168
        %v6170 = vrot.slane %v6169, 2
        %v6171 = vadd.f32 %v6169, %v6170
        %v6172 = vrot.slane %v6171, 1
        %v6173 = vadd.f32 %v6171, %v6172
        %v6174 = vadd.f32 %v5774, %v5782
        %v6175 = vadd.f32 %v6174, %v5790
        %v6176 = vadd.f32 %v6175, %v5798
        %v6177 = vadd.f32 %v6176, %v5806
        %v6178 = vadd.f32 %v6177, %v5814
        %v6179 = vadd.f32 %v6178, %v5822
        %v6180 = vadd.f32 %v6179, %v5830
        %v6181 = vadd.f32 %v6180, %v5838
        %v6182 = vadd.f32 %v6181, %v5846
        %v6183 = vadd.f32 %v6182, %v5854
        %v6184 = vadd.f32 %v6183, %v5862
        %v6185 = vadd.f32 %v6184, %v5870
        %v6186 = vadd.f32 %v6185, %v5878
        %v6187 = vadd.f32 %v6186, %v5886
        %v6188 = vadd.f32 %v6187, %v5894
        %v6189 = vadd.f32 %v6188, %v5902
        %v6190 = vadd.f32 %v6189, %v5910
        %v6191 = vadd.f32 %v6190, %v5918
        %v6192 = vadd.f32 %v6191, %v5926
        %v6193 = vadd.f32 %v6192, %v5934
        %v6194 = vadd.f32 %v6193, %v5942
        %v6195 = vadd.f32 %v6194, %v5950
        %v6196 = vadd.f32 %v6195, %v5958
        %v6197 = vadd.f32 %v6196, %v5966
        %v6198 = vadd.f32 %v6197, %v5974
        %v6199 = vadd.f32 %v6198, %v5982
        %v6200 = vadd.f32 %v6199, %v5990
        %v6201 = vadd.f32 %v6200, %v5998
        %v6202 = vadd.f32 %v6201, %v6006
        %v6203 = vadd.f32 %v6202, %v6014
        %v6204 = vadd.f32 %v6203, %v6022
        %v6205 = vrot.slane %v6204, 4
        %v6206 = vadd.f32 %v6204, %v6205
        %v6207 = vrot.slane %v6206, 2
        %v6208 = vadd.f32 %v6206, %v6207
        %v6209 = vrot.slane %v6208, 1
        %v6210 = vadd.f32 %v6208, %v6209
        %v6211 = vadd.f32 %v5775, %v5783
        %v6212 = vadd.f32 %v6211, %v5791
        %v6213 = vadd.f32 %v6212, %v5799
        %v6214 = vadd.f32 %v6213, %v5807
        %v6215 = vadd.f32 %v6214, %v5815
        %v6216 = vadd.f32 %v6215, %v5823
        %v6217 = vadd.f32 %v6216, %v5831
        %v6218 = vadd.f32 %v6217, %v5839
        %v6219 = vadd.f32 %v6218, %v5847
        %v6220 = vadd.f32 %v6219, %v5855
        %v6221 = vadd.f32 %v6220, %v5863
        %v6222 = vadd.f32 %v6221, %v5871
        %v6223 = vadd.f32 %v6222, %v5879
        %v6224 = vadd.f32 %v6223, %v5887
        %v6225 = vadd.f32 %v6224, %v5895
        %v6226 = vadd.f32 %v6225, %v5903
        %v6227 = vadd.f32 %v6226, %v5911
        %v6228 = vadd.f32 %v6227, %v5919
        %v6229 = vadd.f32 %v6228, %v5927
        %v6230 = vadd.f32 %v6229, %v5935
        %v6231 = vadd.f32 %v6230, %v5943
        %v6232 = vadd.f32 %v6231, %v5951
        %v6233 = vadd.f32 %v6232, %v5959
        %v6234 = vadd.f32 %v6233, %v5967
        %v6235 = vadd.f32 %v6234, %v5975
        %v6236 = vadd.f32 %v6235, %v5983
        %v6237 = vadd.f32 %v6236, %v5991
        %v6238 = vadd.f32 %v6237, %v5999
        %v6239 = vadd.f32 %v6238, %v6007
        %v6240 = vadd.f32 %v6239, %v6015
        %v6241 = vadd.f32 %v6240, %v6023
        %v6242 = vrot.slane %v6241, 4
        %v6243 = vadd.f32 %v6241, %v6242
        %v6244 = vrot.slane %v6243, 2
        %v6245 = vadd.f32 %v6243, %v6244
        %v6246 = vrot.slane %v6245, 1
        %v6247 = vadd.f32 %v6245, %v6246
        %v6248 = vadd.f32 %v5776, %v5784
        %v6249 = vadd.f32 %v6248, %v5792
        %v6250 = vadd.f32 %v6249, %v5800
        %v6251 = vadd.f32 %v6250, %v5808
        %v6252 = vadd.f32 %v6251, %v5816
        %v6253 = vadd.f32 %v6252, %v5824
        %v6254 = vadd.f32 %v6253, %v5832
        %v6255 = vadd.f32 %v6254, %v5840
        %v6256 = vadd.f32 %v6255, %v5848
        %v6257 = vadd.f32 %v6256, %v5856
        %v6258 = vadd.f32 %v6257, %v5864
        %v6259 = vadd.f32 %v6258, %v5872
        %v6260 = vadd.f32 %v6259, %v5880
        %v6261 = vadd.f32 %v6260, %v5888
        %v6262 = vadd.f32 %v6261, %v5896
        %v6263 = vadd.f32 %v6262, %v5904
        %v6264 = vadd.f32 %v6263, %v5912
        %v6265 = vadd.f32 %v6264, %v5920
        %v6266 = vadd.f32 %v6265, %v5928
        %v6267 = vadd.f32 %v6266, %v5936
        %v6268 = vadd.f32 %v6267, %v5944
        %v6269 = vadd.f32 %v6268, %v5952
        %v6270 = vadd.f32 %v6269, %v5960
        %v6271 = vadd.f32 %v6270, %v5968
        %v6272 = vadd.f32 %v6271, %v5976
        %v6273 = vadd.f32 %v6272, %v5984
        %v6274 = vadd.f32 %v6273, %v5992
        %v6275 = vadd.f32 %v6274, %v6000
        %v6276 = vadd.f32 %v6275, %v6008
        %v6277 = vadd.f32 %v6276, %v6016
        %v6278 = vadd.f32 %v6277, %v6024
        %v6279 = vrot.slane %v6278, 4
        %v6280 = vadd.f32 %v6278, %v6279
        %v6281 = vrot.slane %v6280, 2
        %v6282 = vadd.f32 %v6280, %v6281
        %v6283 = vrot.slane %v6282, 1
        %v6284 = vadd.f32 %v6282, %v6283
        %v6285 = vadd.f32 %v5777, %v5785
        %v6286 = vadd.f32 %v6285, %v5793
        %v6287 = vadd.f32 %v6286, %v5801
        %v6288 = vadd.f32 %v6287, %v5809
        %v6289 = vadd.f32 %v6288, %v5817
        %v6290 = vadd.f32 %v6289, %v5825
        %v6291 = vadd.f32 %v6290, %v5833
        %v6292 = vadd.f32 %v6291, %v5841
        %v6293 = vadd.f32 %v6292, %v5849
        %v6294 = vadd.f32 %v6293, %v5857
        %v6295 = vadd.f32 %v6294, %v5865
        %v6296 = vadd.f32 %v6295, %v5873
        %v6297 = vadd.f32 %v6296, %v5881
        %v6298 = vadd.f32 %v6297, %v5889
        %v6299 = vadd.f32 %v6298, %v5897
        %v6300 = vadd.f32 %v6299, %v5905
        %v6301 = vadd.f32 %v6300, %v5913
        %v6302 = vadd.f32 %v6301, %v5921
        %v6303 = vadd.f32 %v6302, %v5929
        %v6304 = vadd.f32 %v6303, %v5937
        %v6305 = vadd.f32 %v6304, %v5945
        %v6306 = vadd.f32 %v6305, %v5953
        %v6307 = vadd.f32 %v6306, %v5961
        %v6308 = vadd.f32 %v6307, %v5969
        %v6309 = vadd.f32 %v6308, %v5977
        %v6310 = vadd.f32 %v6309, %v5985
        %v6311 = vadd.f32 %v6310, %v5993
        %v6312 = vadd.f32 %v6311, %v6001
        %v6313 = vadd.f32 %v6312, %v6009
        %v6314 = vadd.f32 %v6313, %v6017
        %v6315 = vadd.f32 %v6314, %v6025
        %v6316 = vrot.slane %v6315, 4
        %v6317 = vadd.f32 %v6315, %v6316
        %v6318 = vrot.slane %v6317, 2
        %v6319 = vadd.f32 %v6317, %v6318
        %v6320 = vrot.slane %v6319, 1
        %v6321 = vadd.f32 %v6319, %v6320
        %v6322 = vrcp.pop 256.0
        %v6323 = vmul.f32 %v6062, %v6322
        %v6324 = vmul.f32 %v6099, %v6322
        %v6325 = vmul.f32 %v6136, %v6322
        %v6326 = vmul.f32 %v6173, %v6322
        %v6327 = vmul.f32 %v6210, %v6322
        %v6328 = vmul.f32 %v6247, %v6322
        %v6329 = vmul.f32 %v6284, %v6322
        %v6330 = vmul.f32 %v6321, %v6322
        %v6339 = vcombine.low %v6323, %v6324
        %v6340 = vcombine.low %v6325, %v6326
        %v6341 = vcombine.low %v6327, %v6328
        %v6342 = vcombine.low %v6329, %v6330
        %v6344 = vunpack.c.l.s4 1966171168
        %v6345 = vunpack.c.0.s8 %v6344
        %v6346 = vlaneseq
        %v6347 = vshrl.u32 %v6346, 7
        %v6348 = vsub.s32 %v6345, %v6347
        %v6349 = vrot.slane %v6339, %v6348
        %v6351 = vunpack.c.l.s4 1966171168
        %v6352 = vunpack.c.0.s8 %v6351
        %v6353 = vlaneseq
        %v6354 = vshrl.u32 %v6353, 7
        %v6355 = vsub.s32 %v6352, %v6354
        %v6356 = vrot.slane %v6340, %v6355
        %v6358 = vunpack.c.l.s4 1966171168
        %v6359 = vunpack.c.0.s8 %v6358
        %v6360 = vlaneseq
        %v6361 = vshrl.u32 %v6360, 7
        %v6362 = vsub.s32 %v6359, %v6361
        %v6363 = vrot.slane %v6341, %v6362
        %v6365 = vunpack.c.l.s4 1966171168
        %v6366 = vunpack.c.0.s8 %v6365
        %v6367 = vlaneseq
        %v6368 = vshrl.u32 %v6367, 7
        %v6369 = vsub.s32 %v6366, %v6368
        %v6370 = vrot.slane %v6342, %v6369
        %v6371 = vcombine.low %v6349, %v6356
        %v6372 = vcombine.low %v6363, %v6370
        %v6374 = vunpack.c.l.s4 1966171168
        %v6375 = vunpack.c.0.s8 %v6374
        %v6376 = vlaneseq
        %v6377 = vshrl.u32 %v6376, 7
        %v6378 = vsub.s32 %v6375, %v6377
        %v6379 = vrot.slane %v6371, %v6378
        %v6381 = vunpack.c.l.s4 1966171168
        %v6382 = vunpack.c.0.s8 %v6381
        %v6383 = vlaneseq
        %v6384 = vshrl.u32 %v6383, 7
        %v6385 = vsub.s32 %v6382, %v6384
        %v6386 = vrot.slane %v6372, %v6385
        %v6387 = vcombine.low %v6379, %v6386
        %6389 = vst [vmem:[%s271] sm:$0xff] %v6387
        %s6390 = sand.u32 %s181, 1
        %s6391 = scalar_lea.sflag [#allocation3], %s6390
        %s6392 = sand.u32 %s181, 1
        %s6393 = smul.addr %s6392, 8
        %s6394 = scalar_lea.vmem [#allocation2], %s6393
        // Predicated region
        $region49: #{image_encoder_forward.1} parent=47 // pred_check
          %p6395 = pneg %p191
        $region50: #{image_encoder_forward.1} parent=47 // pred_check_branch
          %6397 = sbr.rel (%p6395) target = $region52
        $region51: #{image_encoder_forward.1} parent=47 // pred_region
          %s6399 = ssub.s32 128, 128
          %6400 = vsyncadd %s6391, %s6399
          %s6401 = smul.addr %s21, 8
          %s6402 = smul.addr %s6401, 16
          %s6403 = scalar_lea.hbm %s7, %s6402
          %s6405 = sshll.u32 %s6394, 4
          %s6406 = int_to_ptr.vmem [resolvable:$true] %s6405
          %6408 = dma.vmem_to_hbm [thread:$0]  %s6406, 128, %s6403, %s6391
        $region52: #{image_encoder_forward.1} parent=47 // pred_fallthru
          _
      $region48: #{image_encoder_forward.1} parent=5 // pred_fallthru
        _
      %p6409 = scmp.le.s32.totalorder 2, %s16
      // Predicated region
      $region53: #{image_encoder_forward.1} parent=5 // pred_check
        %p6410 = pneg %p6409
      $region54: #{image_encoder_forward.1} parent=5 // pred_check_branch
        %6412 = sbr.rel (%p6410) target = $region56
      $region55: #{image_encoder_forward.1} parent=5 // pred_region
        %s6413 = ssub.s32 %s16, 2
        // Predicated region
        $region57: #{image_encoder_forward.1} parent=55 // pred_check
          %p6414 = pneg %p197
        $region58: #{image_encoder_forward.1} parent=55 // pred_check_branch
          %6416 = sbr.rel (%p6414) target = $region60
        $region59: #{image_encoder_forward.1} parent=55 // pred_region
          %s6417 = sand.u32 %s182, 1
          %s6418 = scalar_lea.sflag [#allocation3], %s6417
          %s6419 = sand.u32 %s182, 1
          %s6420 = smul.addr %s6419, 8
          %s6421 = scalar_lea.vmem [#allocation2], %s6420
          %6422 = dma.done %s6418, 128
        $region60: #{image_encoder_forward.1} parent=55 // pred_fallthru
          _
      $region56: #{image_encoder_forward.1} parent=5 // pred_fallthru
        _
    $region6: #{image_encoder_forward.1} parent=1 // loop_footer
      %s20 = sadd.s32 1, %s16
    $region7: #{image_encoder_forward.1} parent=1 // loop_footer_branch
      %15 = sbr.rel target = $region3
    $region8: #{image_encoder_forward.1} parent=1 // loop_exit
      _
    %6423 = vsyncpa [#allocation3], 1
    %s6424 = scalar_lea.sflag [#allocation3], 1
    %6425 = vsyncpa %s6424, 1

</llo_original>
